<compile_context>
chip_gen: v6e
topology: v6e:2x2x1
jax: 0.10.0
libtpu: 0.0.40
codegen_flags: <defaults>
</compile_context>

<pallas_src>
import math

import jax
import jax.numpy as jnp
from jax.experimental import pallas as pl
from jax.experimental.pallas import tpu as pltpu

N_HEAD = 8          # hard-coded in TransformerDecoderLayer.__init__
LN_EPS = 1e-5       # torch.nn.LayerNorm default

NUM_SEQ_INPUTS = 4
NUM_WEIGHTS = 21


def _bf16(x):
    return x.astype(jnp.bfloat16)


def _layer_norm(x, w, b):
    """f32 LayerNorm with single-pass variance (E[x^2] - mu^2)."""
    x = x.astype(jnp.float32)
    mu = jnp.mean(x, axis=-1, keepdims=True)
    var = jnp.mean(x * x, axis=-1, keepdims=True) - mu * mu
    return (x - mu) * jax.lax.rsqrt(var + LN_EPS) * w + b


def _mha_core(q_bf, k_bf, v_bf, wfc):
    """Multi-head attention + output projection without any head merge copies.

    q_bf: (Lq, H*dk) bf16 — already scaled by 1/sqrt(dk) (folded into W_q host-side).
    k_bf, v_bf: (Lk, H*dk) bf16.  wfc: (H*dk, D) bf16 (pre-transposed).
    Uses  fc(concat_h o_h) == sum_h o_h @ wfc[h*dk:(h+1)*dk, :]  so the
    head-concatenated attention output is never materialized.
    Returns the projected attention output, (Lq, D) f32.
    """
    Lq, HD = q_bf.shape
    dk = HD // N_HEAD
    D = wfc.shape[-1]
    out = jnp.zeros((Lq, D), jnp.float32)
    for h in range(N_HEAD):                     # static unroll; lane slices are free-ish
        lo, hi = h * dk, (h + 1) * dk
        # scores (temperature already folded into q_bf), softmax in f32
        s = jnp.einsum('qd,kd->qk', q_bf[:, lo:hi], k_bf[:, lo:hi],
                       preferred_element_type=jnp.float32)          # (Lq, Lk) f32
        s = s - jnp.max(s, axis=-1, keepdims=True)
        p = jnp.exp(s)
        p = p * pl.reciprocal(jnp.sum(p, axis=-1, keepdims=True), approx=True)  # EUP
        o_h = jnp.dot(_bf16(p), v_bf[:, lo:hi],
                      preferred_element_type=jnp.float32)            # (Lq, dk) f32
        out = out + jnp.dot(_bf16(o_h), wfc[lo:hi, :],
                            preferred_element_type=jnp.float32)      # partial fc
    return out


def decoder_layer_kernel(*refs):
    tgt_ref, mem_ref, qpos_ref, pos_ref = refs[:NUM_SEQ_INPUTS]
    w_refs = refs[NUM_SEQ_INPUTS:NUM_SEQ_INPUTS + NUM_WEIGHTS]
    out_ref = refs[NUM_SEQ_INPUTS + NUM_WEIGHTS]
    (wqk1, wv1, wfc1, lnsa_w, lnsa_b, n1w, n1b,
     wq2, wk2, wv2, wfc2, lnca_w, lnca_b, n2w, n2b,
     w1, b1, w2, b2, n3w, n3b) = (r[...] for r in w_refs)

    x = tgt_ref[...]       # (Lq, D) f32 — batch dim squeezed by the BlockSpec
    mem = mem_ref[...]     # (Lm, D) f32
    qp = qpos_ref[...]     # (Lq, D)
    pp = pos_ref[...]      # (Lm, D)
    D = x.shape[-1]
    HD = N_HEAD * D

    # ---------------- self-attention block ----------------
    q_in = x + qp                                                # with_pos_embed(tgt, query_pos)
    # Fused Q|K projection (Q half of wqk1 carries the 1/sqrt(d_k) scale).
    qk = _bf16(jnp.dot(_bf16(q_in), wqk1, preferred_element_type=jnp.float32))  # (Lq, 2*HD) bf16
    v1 = _bf16(jnp.dot(_bf16(x), wv1, preferred_element_type=jnp.float32))      # (Lq, HD) bf16
    sa = _mha_core(qk[:, :HD], qk[:, HD:], v1, wfc1)              # (Lq, D) f32
    sa = _layer_norm(sa + q_in, lnsa_w, lnsa_b)                   # MHA internal LN (residual = q)
    t = _layer_norm(x + sa, n1w, n1b)                             # norm1

    # ---------------- cross-attention block ----------------
    q2 = t + qp                                                   # with_pos_embed(tgt, query_pos)
    k2 = mem + pp                                                 # with_pos_embed(memory, pos)
    Q2 = _bf16(jnp.dot(_bf16(q2), wq2, preferred_element_type=jnp.float32))     # scaled by 1/sqrt(d_k)
    K2 = _bf16(jnp.dot(_bf16(k2), wk2, preferred_element_type=jnp.float32))
    V2 = _bf16(jnp.dot(_bf16(mem), wv2, preferred_element_type=jnp.float32))
    ca = _mha_core(Q2, K2, V2, wfc2)
    ca = _layer_norm(ca + q2, lnca_w, lnca_b)                     # MHA internal LN (residual = q)
    t = _layer_norm(t + ca, n2w, n2b)                             # norm2

    # ---------------- feed-forward block ----------------
    h = jnp.maximum(
        jnp.dot(_bf16(t), w1, preferred_element_type=jnp.float32) + b1, 0.0)    # relu(linear1)
    f = jnp.dot(_bf16(h), w2, preferred_element_type=jnp.float32) + b2          # linear2
    t = _layer_norm(t + f, n3w, n3b)                              # norm3

    out_ref[...] = t.astype(out_ref.dtype)


def init_params(key, d_model, dim_feedforward):
    """Deterministic synthetic parameters in PyTorch layout (out_features, in_features)."""
    H = N_HEAD
    ks = jax.random.split(key, 10)
    std_qk = math.sqrt(2.0 / (d_model + d_model))
    std_v = math.sqrt(2.0 / (d_model + d_model))
    std_fc = math.sqrt(2.0 / (H * d_model + d_model))
    nrm = lambda k, shape, std: jax.random.normal(k, shape, jnp.float32) * std
    ones = lambda n: jnp.ones((1, n), jnp.float32)
    zeros = lambda n: jnp.zeros((1, n), jnp.float32)
    return [
        # self attention
        nrm(ks[0], (H * d_model, d_model), std_qk),    # w_qs
        nrm(ks[1], (H * d_model, d_model), std_qk),    # w_ks
        nrm(ks[2], (H * d_model, d_model), std_v),     # w_vs
        nrm(ks[3], (d_model, H * d_model), std_fc),    # fc
        ones(d_model), zeros(d_model),                 # MHA layer_norm
        ones(d_model), zeros(d_model),                 # norm1
        # cross attention
        nrm(ks[4], (H * d_model, d_model), std_qk),
        nrm(ks[5], (H * d_model, d_model), std_qk),
        nrm(ks[6], (H * d_model, d_model), std_v),
        nrm(ks[7], (d_model, H * d_model), std_fc),
        ones(d_model), zeros(d_model),                 # MHA layer_norm
        ones(d_model), zeros(d_model),                 # norm2
        # FFN
        nrm(ks[8], (dim_feedforward, d_model), 1.0 / math.sqrt(d_model)),           # linear1.weight
        zeros(dim_feedforward),                                                      # linear1.bias
        nrm(ks[9], (d_model, dim_feedforward), 1.0 / math.sqrt(dim_feedforward)),   # linear2.weight
        zeros(d_model),                                                              # linear2.bias
        ones(d_model), zeros(d_model),                 # norm3
    ]


def prepare_params(torch_params):
    """Host-side layout plumbing: transpose to (in, out), fold 1/sqrt(d_k) into the
    Q projections, stack self-attn Q|K into one weight, cast matmul weights to bf16."""
    (wq1, wk1, wv1, wfc1, lnsa_w, lnsa_b, n1w, n1b,
     wq2, wk2, wv2, wfc2, lnca_w, lnca_b, n2w, n2b,
     w1, b1, w2, b2, n3w, n3b) = torch_params
    d_model = wq1.shape[1]
    inv_temp = 1.0 / math.sqrt(d_model)     # temperature = d_k ** 0.5, d_k = d_model
    bf = lambda w: w.T.astype(jnp.bfloat16)
    wqk1 = jnp.concatenate([wq1.T * inv_temp, wk1.T], axis=1).astype(jnp.bfloat16)  # (D, 2*H*D)
    return (
        wqk1, bf(wv1), bf(wfc1), lnsa_w, lnsa_b, n1w, n1b,
        (wq2.T * inv_temp).astype(jnp.bfloat16), bf(wk2), bf(wv2), bf(wfc2),
        lnca_w, lnca_b, n2w, n2b,
        bf(w1), b1, bf(w2), b2, n3w, n3b,
    )


def transformer_decoder_layer(tgt, memory, query_pos, pos, torch_params):
    B, Lq, D = tgt.shape
    Lm = memory.shape[1]
    prepared = prepare_params(torch_params)
    assert len(prepared) == NUM_WEIGHTS

    def per_batch(length):
        # One batch element per grid step; batch dim squeezed out of the kernel Ref.
        return pl.BlockSpec((None, length, D), lambda b: (b, 0, 0))

    def resident(w):
        # Constant block index across the grid -> weight is DMA'd into VMEM once
        # and not re-fetched on subsequent grid steps.
        zero_idx = (0,) * w.ndim
        return pl.BlockSpec(w.shape, lambda b: zero_idx)

    in_specs = [per_batch(Lq), per_batch(Lm), per_batch(Lq), per_batch(Lm)]
    in_specs += [resident(w) for w in prepared]

    return pl.pallas_call(
        decoder_layer_kernel,
        out_shape=jax.ShapeDtypeStruct((B, Lq, D), tgt.dtype),
        grid=(B,),
        in_specs=in_specs,
        out_specs=pl.BlockSpec((None, Lq, D), lambda b: (b, 0, 0)),
        compiler_params=pltpu.CompilerParams(
            dimension_semantics=("parallel",),        # batch split across TCs on v7x
            vmem_limit_bytes=64 * 1024 * 1024,        # above v6e's 32 MiB default scope
        ),
    )(tgt, memory, query_pos, pos, *prepared)


def reference(tgt, memory, query_pos, pos, torch_params):
    """Pure-JAX reference mirroring forward_post (per-head loop, x @ W.T, exact softmax).
    Matmul operands are cast to bf16 and the temperature is folded into W_q exactly
    like the kernel (mathematically identical to PyTorch's `attn / temperature`), so
    the comparison isolates structural/layout errors."""
    (wq1, wk1, wv1, wfc1, lnsa_w, lnsa_b, n1w, n1b,
     wq2, wk2, wv2, wfc2, lnca_w, lnca_b, n2w, n2b,
     w1, b1, w2, b2, n3w, n3b) = torch_params
    d_model = wq1.shape[1]
    inv_temp = 1.0 / math.sqrt(d_model)

    def _ln(x, w, b):
        x = x.astype(jnp.float32)
        mu = jnp.mean(x, axis=-1, keepdims=True)
        var = jnp.mean(jnp.square(x - mu), axis=-1, keepdims=True)
        return (x - mu) * jax.lax.rsqrt(var + LN_EPS) * w + b

    def mha(q_in, k_in, v_in, wq, wk, wv, wfc, ln_w, ln_b):
        d_k = q_in.shape[-1]
        Q = jnp.dot(_bf16(q_in), _bf16(wq.T * inv_temp), preferred_element_type=jnp.float32)
        K = jnp.dot(_bf16(k_in), _bf16(wk.T), preferred_element_type=jnp.float32)
        V = jnp.dot(_bf16(v_in), _bf16(wv.T), preferred_element_type=jnp.float32)
        outs = []
        for h in range(N_HEAD):
            sl = slice(h * d_k, (h + 1) * d_k)
            a = jnp.dot(_bf16(Q[:, sl]), _bf16(K[:, sl]).T,
                        preferred_element_type=jnp.float32)
            a = jax.nn.softmax(a, axis=-1)
            outs.append(jnp.dot(_bf16(a), _bf16(V[:, sl]),
                                preferred_element_type=jnp.float32))
        o = jnp.concatenate(outs, axis=-1)
        o = jnp.dot(_bf16(o), _bf16(wfc.T), preferred_element_type=jnp.float32)
        return _ln(o + q_in, ln_w, ln_b)

    def per_example(x, mem_x, qp, pp):
        q_in = x + qp
        sa = mha(q_in, q_in, x, wq1, wk1, wv1, wfc1, lnsa_w, lnsa_b)
        t = _ln(x + sa, n1w, n1b)
        q2 = t + qp
        k2 = mem_x + pp
        ca = mha(q2, k2, mem_x, wq2, wk2, wv2, wfc2, lnca_w, lnca_b)
        t = _ln(t + ca, n2w, n2b)
        h = jnp.maximum(jnp.dot(_bf16(t), _bf16(w1.T),
                                preferred_element_type=jnp.float32) + b1, 0.0)
        f = jnp.dot(_bf16(h), _bf16(w2.T), preferred_element_type=jnp.float32) + b2
        return _ln(t + f, n3w, n3b)

    return jax.vmap(per_example)(tgt, memory, query_pos, pos)


if __name__ == "__main__":
    B, Lq, Lm, D, FF = 2, 8, 16, 32, 64

    key = jax.random.PRNGKey(0)
    k_t, k_m, k_qp, k_p, k_par = jax.random.split(key, 5)
    tgt = jax.random.normal(k_t, (B, Lq, D), jnp.float32)
    memory = jax.random.normal(k_m, (B, Lm, D), jnp.float32)
    query_pos = jax.random.normal(k_qp, (B, Lq, D), jnp.float32)
    pos = jax.random.normal(k_p, (B, Lm, D), jnp.float32)
    params = init_params(k_par, D, FF)

    out = jax.block_until_ready(transformer_decoder_layer(tgt, memory, query_pos, pos, params))
    ref = jax.block_until_ready(reference(tgt, memory, query_pos, pos, params))

    assert out.shape == (B, Lq, D)
    max_err = float(jnp.max(jnp.abs(out - ref)))
    assert jnp.allclose(out, ref, rtol=1e-2, atol=1e-2), f"mismatch vs reference (max abs err {max_err})"

    print("KERNEL_OK")
</pallas_src>

<mosaic_0001>
module attributes {stable_mosaic.version = 11 : i64} {
  func.func @decoder_layer_kernel(%arg0: i32, %arg1: memref<1x8x32xf32, #tpu.memory_space<vmem>>, %arg2: memref<1x16x32xf32, #tpu.memory_space<vmem>>, %arg3: memref<1x8x32xf32, #tpu.memory_space<vmem>>, %arg4: memref<1x16x32xf32, #tpu.memory_space<vmem>>, %arg5: memref<32x512xbf16, #tpu.memory_space<vmem>>, %arg6: memref<32x256xbf16, #tpu.memory_space<vmem>>, %arg7: memref<256x32xbf16, #tpu.memory_space<vmem>>, %arg8: memref<1x32xf32, #tpu.memory_space<vmem>>, %arg9: memref<1x32xf32, #tpu.memory_space<vmem>>, %arg10: memref<1x32xf32, #tpu.memory_space<vmem>>, %arg11: memref<1x32xf32, #tpu.memory_space<vmem>>, %arg12: memref<32x256xbf16, #tpu.memory_space<vmem>>, %arg13: memref<32x256xbf16, #tpu.memory_space<vmem>>, %arg14: memref<32x256xbf16, #tpu.memory_space<vmem>>, %arg15: memref<256x32xbf16, #tpu.memory_space<vmem>>, %arg16: memref<1x32xf32, #tpu.memory_space<vmem>>, %arg17: memref<1x32xf32, #tpu.memory_space<vmem>>, %arg18: memref<1x32xf32, #tpu.memory_space<vmem>>, %arg19: memref<1x32xf32, #tpu.memory_space<vmem>>, %arg20: memref<32x64xbf16, #tpu.memory_space<vmem>>, %arg21: memref<1x64xf32, #tpu.memory_space<vmem>>, %arg22: memref<64x32xbf16, #tpu.memory_space<vmem>>, %arg23: memref<1x32xf32, #tpu.memory_space<vmem>>, %arg24: memref<1x32xf32, #tpu.memory_space<vmem>>, %arg25: memref<1x32xf32, #tpu.memory_space<vmem>>, %arg26: memref<1x8x32xf32, #tpu.memory_space<vmem>>) attributes {dimension_semantics = [#tpu.dimension_semantics<parallel>], iteration_bounds = array<i64: 2>, scalar_prefetch = 0 : i64, scratch_operands = 0 : i64, tpu.core_type = #tpu.core_type<tc>, window_params = [{transform_indices = @transform_0, window_bounds = array<i64: 1, 8, 32>}, {transform_indices = @transform_1, window_bounds = array<i64: 1, 16, 32>}, {transform_indices = @transform_2, window_bounds = array<i64: 1, 8, 32>}, {transform_indices = @transform_3, window_bounds = array<i64: 1, 16, 32>}, {pipeline_mode = #tpu.pipeline_mode<synchronous>, transform_indices = @transform_4, window_bounds = array<i64: 32, 512>}, {pipeline_mode = #tpu.pipeline_mode<synchronous>, transform_indices = @transform_5, window_bounds = array<i64: 32, 256>}, {pipeline_mode = #tpu.pipeline_mode<synchronous>, transform_indices = @transform_6, window_bounds = array<i64: 256, 32>}, {pipeline_mode = #tpu.pipeline_mode<synchronous>, transform_indices = @transform_7, window_bounds = array<i64: 1, 32>}, {pipeline_mode = #tpu.pipeline_mode<synchronous>, transform_indices = @transform_8, window_bounds = array<i64: 1, 32>}, {pipeline_mode = #tpu.pipeline_mode<synchronous>, transform_indices = @transform_9, window_bounds = array<i64: 1, 32>}, {pipeline_mode = #tpu.pipeline_mode<synchronous>, transform_indices = @transform_10, window_bounds = array<i64: 1, 32>}, {pipeline_mode = #tpu.pipeline_mode<synchronous>, transform_indices = @transform_11, window_bounds = array<i64: 32, 256>}, {pipeline_mode = #tpu.pipeline_mode<synchronous>, transform_indices = @transform_12, window_bounds = array<i64: 32, 256>}, {pipeline_mode = #tpu.pipeline_mode<synchronous>, transform_indices = @transform_13, window_bounds = array<i64: 32, 256>}, {pipeline_mode = #tpu.pipeline_mode<synchronous>, transform_indices = @transform_14, window_bounds = array<i64: 256, 32>}, {pipeline_mode = #tpu.pipeline_mode<synchronous>, transform_indices = @transform_15, window_bounds = array<i64: 1, 32>}, {pipeline_mode = #tpu.pipeline_mode<synchronous>, transform_indices = @transform_16, window_bounds = array<i64: 1, 32>}, {pipeline_mode = #tpu.pipeline_mode<synchronous>, transform_indices = @transform_17, window_bounds = array<i64: 1, 32>}, {pipeline_mode = #tpu.pipeline_mode<synchronous>, transform_indices = @transform_18, window_bounds = array<i64: 1, 32>}, {pipeline_mode = #tpu.pipeline_mode<synchronous>, transform_indices = @transform_19, window_bounds = array<i64: 32, 64>}, {pipeline_mode = #tpu.pipeline_mode<synchronous>, transform_indices = @transform_20, window_bounds = array<i64: 1, 64>}, {pipeline_mode = #tpu.pipeline_mode<synchronous>, transform_indices = @transform_21, window_bounds = array<i64: 64, 32>}, {pipeline_mode = #tpu.pipeline_mode<synchronous>, transform_indices = @transform_22, window_bounds = array<i64: 1, 32>}, {pipeline_mode = #tpu.pipeline_mode<synchronous>, transform_indices = @transform_23, window_bounds = array<i64: 1, 32>}, {pipeline_mode = #tpu.pipeline_mode<synchronous>, transform_indices = @transform_24, window_bounds = array<i64: 1, 32>}, {transform_indices = @transform_25, window_bounds = array<i64: 1, 8, 32>}]} {
    %c0 = arith.constant 0 : index
    %c0_0 = arith.constant 0 : index
    %0 = vector.load %arg5[%c0, %c0_0] : memref<32x512xbf16, #tpu.memory_space<vmem>>, vector<32x512xbf16>
    %c0_1 = arith.constant 0 : index
    %c0_2 = arith.constant 0 : index
    %1 = vector.load %arg6[%c0_1, %c0_2] : memref<32x256xbf16, #tpu.memory_space<vmem>>, vector<32x256xbf16>
    %c0_3 = arith.constant 0 : index
    %c0_4 = arith.constant 0 : index
    %2 = vector.load %arg7[%c0_3, %c0_4] : memref<256x32xbf16, #tpu.memory_space<vmem>>, vector<256x32xbf16>
    %c0_5 = arith.constant 0 : index
    %c0_6 = arith.constant 0 : index
    %3 = vector.load %arg8[%c0_5, %c0_6] : memref<1x32xf32, #tpu.memory_space<vmem>>, vector<1x32xf32>
    %c0_7 = arith.constant 0 : index
    %c0_8 = arith.constant 0 : index
    %4 = vector.load %arg9[%c0_7, %c0_8] : memref<1x32xf32, #tpu.memory_space<vmem>>, vector<1x32xf32>
    %c0_9 = arith.constant 0 : index
    %c0_10 = arith.constant 0 : index
    %5 = vector.load %arg10[%c0_9, %c0_10] : memref<1x32xf32, #tpu.memory_space<vmem>>, vector<1x32xf32>
    %c0_11 = arith.constant 0 : index
    %c0_12 = arith.constant 0 : index
    %6 = vector.load %arg11[%c0_11, %c0_12] : memref<1x32xf32, #tpu.memory_space<vmem>>, vector<1x32xf32>
    %c0_13 = arith.constant 0 : index
    %c0_14 = arith.constant 0 : index
    %7 = vector.load %arg12[%c0_13, %c0_14] : memref<32x256xbf16, #tpu.memory_space<vmem>>, vector<32x256xbf16>
    %c0_15 = arith.constant 0 : index
    %c0_16 = arith.constant 0 : index
    %8 = vector.load %arg13[%c0_15, %c0_16] : memref<32x256xbf16, #tpu.memory_space<vmem>>, vector<32x256xbf16>
    %c0_17 = arith.constant 0 : index
    %c0_18 = arith.constant 0 : index
    %9 = vector.load %arg14[%c0_17, %c0_18] : memref<32x256xbf16, #tpu.memory_space<vmem>>, vector<32x256xbf16>
    %c0_19 = arith.constant 0 : index
    %c0_20 = arith.constant 0 : index
    %10 = vector.load %arg15[%c0_19, %c0_20] : memref<256x32xbf16, #tpu.memory_space<vmem>>, vector<256x32xbf16>
    %c0_21 = arith.constant 0 : index
    %c0_22 = arith.constant 0 : index
    %11 = vector.load %arg16[%c0_21, %c0_22] : memref<1x32xf32, #tpu.memory_space<vmem>>, vector<1x32xf32>
    %c0_23 = arith.constant 0 : index
    %c0_24 = arith.constant 0 : index
    %12 = vector.load %arg17[%c0_23, %c0_24] : memref<1x32xf32, #tpu.memory_space<vmem>>, vector<1x32xf32>
    %c0_25 = arith.constant 0 : index
    %c0_26 = arith.constant 0 : index
    %13 = vector.load %arg18[%c0_25, %c0_26] : memref<1x32xf32, #tpu.memory_space<vmem>>, vector<1x32xf32>
    %c0_27 = arith.constant 0 : index
    %c0_28 = arith.constant 0 : index
    %14 = vector.load %arg19[%c0_27, %c0_28] : memref<1x32xf32, #tpu.memory_space<vmem>>, vector<1x32xf32>
    %c0_29 = arith.constant 0 : index
    %c0_30 = arith.constant 0 : index
    %15 = vector.load %arg20[%c0_29, %c0_30] : memref<32x64xbf16, #tpu.memory_space<vmem>>, vector<32x64xbf16>
    %c0_31 = arith.constant 0 : index
    %c0_32 = arith.constant 0 : index
    %16 = vector.load %arg21[%c0_31, %c0_32] : memref<1x64xf32, #tpu.memory_space<vmem>>, vector<1x64xf32>
    %c0_33 = arith.constant 0 : index
    %c0_34 = arith.constant 0 : index
    %17 = vector.load %arg22[%c0_33, %c0_34] : memref<64x32xbf16, #tpu.memory_space<vmem>>, vector<64x32xbf16>
    %c0_35 = arith.constant 0 : index
    %c0_36 = arith.constant 0 : index
    %18 = vector.load %arg23[%c0_35, %c0_36] : memref<1x32xf32, #tpu.memory_space<vmem>>, vector<1x32xf32>
    %c0_37 = arith.constant 0 : index
    %c0_38 = arith.constant 0 : index
    %19 = vector.load %arg24[%c0_37, %c0_38] : memref<1x32xf32, #tpu.memory_space<vmem>>, vector<1x32xf32>
    %c0_39 = arith.constant 0 : index
    %c0_40 = arith.constant 0 : index
    %20 = vector.load %arg25[%c0_39, %c0_40] : memref<1x32xf32, #tpu.memory_space<vmem>>, vector<1x32xf32>
    %c0_41 = arith.constant 0 : index
    %c0_42 = arith.constant 0 : index
    %c0_43 = arith.constant 0 : index
    %21 = vector.load %arg1[%c0_41, %c0_42, %c0_43] : memref<1x8x32xf32, #tpu.memory_space<vmem>>, vector<1x8x32xf32>
    %22 = vector.shape_cast %21 : vector<1x8x32xf32> to vector<8x32xf32>
    %c0_44 = arith.constant 0 : index
    %c0_45 = arith.constant 0 : index
    %c0_46 = arith.constant 0 : index
    %23 = vector.load %arg2[%c0_44, %c0_45, %c0_46] : memref<1x16x32xf32, #tpu.memory_space<vmem>>, vector<1x16x32xf32>
    %24 = vector.shape_cast %23 : vector<1x16x32xf32> to vector<16x32xf32>
    %c0_47 = arith.constant 0 : index
    %c0_48 = arith.constant 0 : index
    %c0_49 = arith.constant 0 : index
    %25 = vector.load %arg3[%c0_47, %c0_48, %c0_49] : memref<1x8x32xf32, #tpu.memory_space<vmem>>, vector<1x8x32xf32>
    %26 = vector.shape_cast %25 : vector<1x8x32xf32> to vector<8x32xf32>
    %c0_50 = arith.constant 0 : index
    %c0_51 = arith.constant 0 : index
    %c0_52 = arith.constant 0 : index
    %27 = vector.load %arg4[%c0_50, %c0_51, %c0_52] : memref<1x16x32xf32, #tpu.memory_space<vmem>>, vector<1x16x32xf32>
    %28 = vector.shape_cast %27 : vector<1x16x32xf32> to vector<16x32xf32>
    %29 = arith.addf %22, %26 : vector<8x32xf32>
    %30 = arith.truncf %29 : vector<8x32xf32> to vector<8x32xbf16>
    %cst = arith.constant dense<0.000000e+00> : vector<8x512xf32>
    %31 = tpu.matmul %30, %0, %cst {dimension_numbers = #tpu.dot_dimension_numbers<[1], [0], [0], [1], [0, 0, 1, 1], [], []>} : vector<8x32xbf16>, vector<32x512xbf16>, vector<8x512xf32> -> vector<8x512xf32>
    %32 = arith.truncf %31 : vector<8x512xf32> to vector<8x512xbf16>
    %33 = arith.truncf %22 : vector<8x32xf32> to vector<8x32xbf16>
    %cst_53 = arith.constant dense<0.000000e+00> : vector<8x256xf32>
    %34 = tpu.matmul %33, %1, %cst_53 {dimension_numbers = #tpu.dot_dimension_numbers<[1], [0], [0], [1], [0, 0, 1, 1], [], []>} : vector<8x32xbf16>, vector<32x256xbf16>, vector<8x256xf32> -> vector<8x256xf32>
    %35 = arith.truncf %34 : vector<8x256xf32> to vector<8x256xbf16>
    %36 = vector.extract_strided_slice %32 {offsets = [0, 0], sizes = [8, 256], strides = [1, 1]} : vector<8x512xbf16> to vector<8x256xbf16>
    %37 = vector.extract_strided_slice %32 {offsets = [0, 256], sizes = [8, 256], strides = [1, 1]} : vector<8x512xbf16> to vector<8x256xbf16>
    %cst_54 = arith.constant 0.000000e+00 : f32
    %38 = vector.broadcast %cst_54 : f32 to vector<8x32xf32>
    %39 = vector.extract_strided_slice %36 {offsets = [0, 0], sizes = [8, 32], strides = [1, 1]} : vector<8x256xbf16> to vector<8x32xbf16>
    %40 = vector.extract_strided_slice %37 {offsets = [0, 0], sizes = [8, 32], strides = [1, 1]} : vector<8x256xbf16> to vector<8x32xbf16>
    "tpu.trace_start"() <{level = 10 : i32, message = "qd,kd->qk"}> : () -> ()
    %cst_55 = arith.constant dense<0.000000e+00> : vector<8x8xf32>
    %41 = tpu.matmul %39, %40, %cst_55 {dimension_numbers = #tpu.dot_dimension_numbers<[1], [1], [0], [0], [0, 0, 1, 0], [], []>} : vector<8x32xbf16>, vector<8x32xbf16>, vector<8x8xf32> -> vector<8x8xf32>
    "tpu.trace_stop"() : () -> ()
    %cst_56 = arith.constant dense<0xFF800000> : vector<8xf32>
    %42 = vector.multi_reduction <maximumf>, %41, %cst_56 [1] : vector<8x8xf32> to vector<8xf32>
    %43 = vector.shape_cast %42 : vector<8xf32> to vector<8x1xf32>
    %44 = vector.broadcast %43 : vector<8x1xf32> to vector<8x8xf32>
    %45 = arith.subf %41, %44 : vector<8x8xf32>
    %46 = math.exp %45 : vector<8x8xf32>
    %cst_57 = arith.constant dense<0.000000e+00> : vector<8xf32>
    %47 = vector.multi_reduction <add>, %46, %cst_57 [1] : vector<8x8xf32> to vector<8xf32>
    %48 = vector.shape_cast %47 : vector<8xf32> to vector<8x1xf32>
    %49 = tpu.reciprocal %48 {approx = true} : vector<8x1xf32> -> vector<8x1xf32>
    %50 = vector.broadcast %49 : vector<8x1xf32> to vector<8x8xf32>
    %51 = arith.mulf %46, %50 : vector<8x8xf32>
    %52 = arith.truncf %51 : vector<8x8xf32> to vector<8x8xbf16>
    %53 = vector.extract_strided_slice %35 {offsets = [0, 0], sizes = [8, 32], strides = [1, 1]} : vector<8x256xbf16> to vector<8x32xbf16>
    %cst_58 = arith.constant dense<0.000000e+00> : vector<8x32xf32>
    %54 = tpu.matmul %52, %53, %cst_58 {dimension_numbers = #tpu.dot_dimension_numbers<[1], [0], [0], [1], [0, 0, 1, 1], [], []>} : vector<8x8xbf16>, vector<8x32xbf16>, vector<8x32xf32> -> vector<8x32xf32>
    %55 = arith.truncf %54 : vector<8x32xf32> to vector<8x32xbf16>
    %56 = vector.extract_strided_slice %2 {offsets = [0, 0], sizes = [32, 32], strides = [1, 1]} : vector<256x32xbf16> to vector<32x32xbf16>
    %cst_59 = arith.constant dense<0.000000e+00> : vector<8x32xf32>
    %57 = tpu.matmul %55, %56, %cst_59 {dimension_numbers = #tpu.dot_dimension_numbers<[1], [0], [0], [1], [0, 0, 1, 1], [], []>} : vector<8x32xbf16>, vector<32x32xbf16>, vector<8x32xf32> -> vector<8x32xf32>
    %58 = arith.addf %38, %57 : vector<8x32xf32>
    %59 = vector.extract_strided_slice %36 {offsets = [0, 32], sizes = [8, 32], strides = [1, 1]} : vector<8x256xbf16> to vector<8x32xbf16>
    %60 = vector.extract_strided_slice %37 {offsets = [0, 32], sizes = [8, 32], strides = [1, 1]} : vector<8x256xbf16> to vector<8x32xbf16>
    "tpu.trace_start"() <{level = 10 : i32, message = "qd,kd->qk"}> : () -> ()
    %cst_60 = arith.constant dense<0.000000e+00> : vector<8x8xf32>
    %61 = tpu.matmul %59, %60, %cst_60 {dimension_numbers = #tpu.dot_dimension_numbers<[1], [1], [0], [0], [0, 0, 1, 0], [], []>} : vector<8x32xbf16>, vector<8x32xbf16>, vector<8x8xf32> -> vector<8x8xf32>
    "tpu.trace_stop"() : () -> ()
    %cst_61 = arith.constant dense<0xFF800000> : vector<8xf32>
    %62 = vector.multi_reduction <maximumf>, %61, %cst_61 [1] : vector<8x8xf32> to vector<8xf32>
    %63 = vector.shape_cast %62 : vector<8xf32> to vector<8x1xf32>
    %64 = vector.broadcast %63 : vector<8x1xf32> to vector<8x8xf32>
    %65 = arith.subf %61, %64 : vector<8x8xf32>
    %66 = math.exp %65 : vector<8x8xf32>
    %cst_62 = arith.constant dense<0.000000e+00> : vector<8xf32>
    %67 = vector.multi_reduction <add>, %66, %cst_62 [1] : vector<8x8xf32> to vector<8xf32>
    %68 = vector.shape_cast %67 : vector<8xf32> to vector<8x1xf32>
    %69 = tpu.reciprocal %68 {approx = true} : vector<8x1xf32> -> vector<8x1xf32>
    %70 = vector.broadcast %69 : vector<8x1xf32> to vector<8x8xf32>
    %71 = arith.mulf %66, %70 : vector<8x8xf32>
    %72 = arith.truncf %71 : vector<8x8xf32> to vector<8x8xbf16>
    %73 = vector.extract_strided_slice %35 {offsets = [0, 32], sizes = [8, 32], strides = [1, 1]} : vector<8x256xbf16> to vector<8x32xbf16>
    %cst_63 = arith.constant dense<0.000000e+00> : vector<8x32xf32>
    %74 = tpu.matmul %72, %73, %cst_63 {dimension_numbers = #tpu.dot_dimension_numbers<[1], [0], [0], [1], [0, 0, 1, 1], [], []>} : vector<8x8xbf16>, vector<8x32xbf16>, vector<8x32xf32> -> vector<8x32xf32>
    %75 = arith.truncf %74 : vector<8x32xf32> to vector<8x32xbf16>
    %76 = vector.extract_strided_slice %2 {offsets = [32, 0], sizes = [32, 32], strides = [1, 1]} : vector<256x32xbf16> to vector<32x32xbf16>
    %cst_64 = arith.constant dense<0.000000e+00> : vector<8x32xf32>
    %77 = tpu.matmul %75, %76, %cst_64 {dimension_numbers = #tpu.dot_dimension_numbers<[1], [0], [0], [1], [0, 0, 1, 1], [], []>} : vector<8x32xbf16>, vector<32x32xbf16>, vector<8x32xf32> -> vector<8x32xf32>
    %78 = arith.addf %58, %77 : vector<8x32xf32>
    %79 = vector.extract_strided_slice %36 {offsets = [0, 64], sizes = [8, 32], strides = [1, 1]} : vector<8x256xbf16> to vector<8x32xbf16>
    %80 = vector.extract_strided_slice %37 {offsets = [0, 64], sizes = [8, 32], strides = [1, 1]} : vector<8x256xbf16> to vector<8x32xbf16>
    "tpu.trace_start"() <{level = 10 : i32, message = "qd,kd->qk"}> : () -> ()
    %cst_65 = arith.constant dense<0.000000e+00> : vector<8x8xf32>
    %81 = tpu.matmul %79, %80, %cst_65 {dimension_numbers = #tpu.dot_dimension_numbers<[1], [1], [0], [0], [0, 0, 1, 0], [], []>} : vector<8x32xbf16>, vector<8x32xbf16>, vector<8x8xf32> -> vector<8x8xf32>
    "tpu.trace_stop"() : () -> ()
    %cst_66 = arith.constant dense<0xFF800000> : vector<8xf32>
    %82 = vector.multi_reduction <maximumf>, %81, %cst_66 [1] : vector<8x8xf32> to vector<8xf32>
    %83 = vector.shape_cast %82 : vector<8xf32> to vector<8x1xf32>
    %84 = vector.broadcast %83 : vector<8x1xf32> to vector<8x8xf32>
    %85 = arith.subf %81, %84 : vector<8x8xf32>
    %86 = math.exp %85 : vector<8x8xf32>
    %cst_67 = arith.constant dense<0.000000e+00> : vector<8xf32>
    %87 = vector.multi_reduction <add>, %86, %cst_67 [1] : vector<8x8xf32> to vector<8xf32>
    %88 = vector.shape_cast %87 : vector<8xf32> to vector<8x1xf32>
    %89 = tpu.reciprocal %88 {approx = true} : vector<8x1xf32> -> vector<8x1xf32>
    %90 = vector.broadcast %89 : vector<8x1xf32> to vector<8x8xf32>
    %91 = arith.mulf %86, %90 : vector<8x8xf32>
    %92 = arith.truncf %91 : vector<8x8xf32> to vector<8x8xbf16>
    %93 = vector.extract_strided_slice %35 {offsets = [0, 64], sizes = [8, 32], strides = [1, 1]} : vector<8x256xbf16> to vector<8x32xbf16>
    %cst_68 = arith.constant dense<0.000000e+00> : vector<8x32xf32>
    %94 = tpu.matmul %92, %93, %cst_68 {dimension_numbers = #tpu.dot_dimension_numbers<[1], [0], [0], [1], [0, 0, 1, 1], [], []>} : vector<8x8xbf16>, vector<8x32xbf16>, vector<8x32xf32> -> vector<8x32xf32>
    %95 = arith.truncf %94 : vector<8x32xf32> to vector<8x32xbf16>
    %96 = vector.extract_strided_slice %2 {offsets = [64, 0], sizes = [32, 32], strides = [1, 1]} : vector<256x32xbf16> to vector<32x32xbf16>
    %cst_69 = arith.constant dense<0.000000e+00> : vector<8x32xf32>
    %97 = tpu.matmul %95, %96, %cst_69 {dimension_numbers = #tpu.dot_dimension_numbers<[1], [0], [0], [1], [0, 0, 1, 1], [], []>} : vector<8x32xbf16>, vector<32x32xbf16>, vector<8x32xf32> -> vector<8x32xf32>
    %98 = arith.addf %78, %97 : vector<8x32xf32>
    %99 = vector.extract_strided_slice %36 {offsets = [0, 96], sizes = [8, 32], strides = [1, 1]} : vector<8x256xbf16> to vector<8x32xbf16>
    %100 = vector.extract_strided_slice %37 {offsets = [0, 96], sizes = [8, 32], strides = [1, 1]} : vector<8x256xbf16> to vector<8x32xbf16>
    "tpu.trace_start"() <{level = 10 : i32, message = "qd,kd->qk"}> : () -> ()
    %cst_70 = arith.constant dense<0.000000e+00> : vector<8x8xf32>
    %101 = tpu.matmul %99, %100, %cst_70 {dimension_numbers = #tpu.dot_dimension_numbers<[1], [1], [0], [0], [0, 0, 1, 0], [], []>} : vector<8x32xbf16>, vector<8x32xbf16>, vector<8x8xf32> -> vector<8x8xf32>
    "tpu.trace_stop"() : () -> ()
    %cst_71 = arith.constant dense<0xFF800000> : vector<8xf32>
    %102 = vector.multi_reduction <maximumf>, %101, %cst_71 [1] : vector<8x8xf32> to vector<8xf32>
    %103 = vector.shape_cast %102 : vector<8xf32> to vector<8x1xf32>
    %104 = vector.broadcast %103 : vector<8x1xf32> to vector<8x8xf32>
    %105 = arith.subf %101, %104 : vector<8x8xf32>
    %106 = math.exp %105 : vector<8x8xf32>
    %cst_72 = arith.constant dense<0.000000e+00> : vector<8xf32>
    %107 = vector.multi_reduction <add>, %106, %cst_72 [1] : vector<8x8xf32> to vector<8xf32>
    %108 = vector.shape_cast %107 : vector<8xf32> to vector<8x1xf32>
    %109 = tpu.reciprocal %108 {approx = true} : vector<8x1xf32> -> vector<8x1xf32>
    %110 = vector.broadcast %109 : vector<8x1xf32> to vector<8x8xf32>
    %111 = arith.mulf %106, %110 : vector<8x8xf32>
    %112 = arith.truncf %111 : vector<8x8xf32> to vector<8x8xbf16>
    %113 = vector.extract_strided_slice %35 {offsets = [0, 96], sizes = [8, 32], strides = [1, 1]} : vector<8x256xbf16> to vector<8x32xbf16>
    %cst_73 = arith.constant dense<0.000000e+00> : vector<8x32xf32>
    %114 = tpu.matmul %112, %113, %cst_73 {dimension_numbers = #tpu.dot_dimension_numbers<[1], [0], [0], [1], [0, 0, 1, 1], [], []>} : vector<8x8xbf16>, vector<8x32xbf16>, vector<8x32xf32> -> vector<8x32xf32>
    %115 = arith.truncf %114 : vector<8x32xf32> to vector<8x32xbf16>
    %116 = vector.extract_strided_slice %2 {offsets = [96, 0], sizes = [32, 32], strides = [1, 1]} : vector<256x32xbf16> to vector<32x32xbf16>
    %cst_74 = arith.constant dense<0.000000e+00> : vector<8x32xf32>
    %117 = tpu.matmul %115, %116, %cst_74 {dimension_numbers = #tpu.dot_dimension_numbers<[1], [0], [0], [1], [0, 0, 1, 1], [], []>} : vector<8x32xbf16>, vector<32x32xbf16>, vector<8x32xf32> -> vector<8x32xf32>
    %118 = arith.addf %98, %117 : vector<8x32xf32>
    %119 = vector.extract_strided_slice %36 {offsets = [0, 128], sizes = [8, 32], strides = [1, 1]} : vector<8x256xbf16> to vector<8x32xbf16>
    %120 = vector.extract_strided_slice %37 {offsets = [0, 128], sizes = [8, 32], strides = [1, 1]} : vector<8x256xbf16> to vector<8x32xbf16>
    "tpu.trace_start"() <{level = 10 : i32, message = "qd,kd->qk"}> : () -> ()
    %cst_75 = arith.constant dense<0.000000e+00> : vector<8x8xf32>
    %121 = tpu.matmul %119, %120, %cst_75 {dimension_numbers = #tpu.dot_dimension_numbers<[1], [1], [0], [0], [0, 0, 1, 0], [], []>} : vector<8x32xbf16>, vector<8x32xbf16>, vector<8x8xf32> -> vector<8x8xf32>
    "tpu.trace_stop"() : () -> ()
    %cst_76 = arith.constant dense<0xFF800000> : vector<8xf32>
    %122 = vector.multi_reduction <maximumf>, %121, %cst_76 [1] : vector<8x8xf32> to vector<8xf32>
    %123 = vector.shape_cast %122 : vector<8xf32> to vector<8x1xf32>
    %124 = vector.broadcast %123 : vector<8x1xf32> to vector<8x8xf32>
    %125 = arith.subf %121, %124 : vector<8x8xf32>
    %126 = math.exp %125 : vector<8x8xf32>
    %cst_77 = arith.constant dense<0.000000e+00> : vector<8xf32>
    %127 = vector.multi_reduction <add>, %126, %cst_77 [1] : vector<8x8xf32> to vector<8xf32>
    %128 = vector.shape_cast %127 : vector<8xf32> to vector<8x1xf32>
    %129 = tpu.reciprocal %128 {approx = true} : vector<8x1xf32> -> vector<8x1xf32>
    %130 = vector.broadcast %129 : vector<8x1xf32> to vector<8x8xf32>
    %131 = arith.mulf %126, %130 : vector<8x8xf32>
    %132 = arith.truncf %131 : vector<8x8xf32> to vector<8x8xbf16>
    %133 = vector.extract_strided_slice %35 {offsets = [0, 128], sizes = [8, 32], strides = [1, 1]} : vector<8x256xbf16> to vector<8x32xbf16>
    %cst_78 = arith.constant dense<0.000000e+00> : vector<8x32xf32>
    %134 = tpu.matmul %132, %133, %cst_78 {dimension_numbers = #tpu.dot_dimension_numbers<[1], [0], [0], [1], [0, 0, 1, 1], [], []>} : vector<8x8xbf16>, vector<8x32xbf16>, vector<8x32xf32> -> vector<8x32xf32>
    %135 = arith.truncf %134 : vector<8x32xf32> to vector<8x32xbf16>
    %136 = vector.extract_strided_slice %2 {offsets = [128, 0], sizes = [32, 32], strides = [1, 1]} : vector<256x32xbf16> to vector<32x32xbf16>
    %cst_79 = arith.constant dense<0.000000e+00> : vector<8x32xf32>
    %137 = tpu.matmul %135, %136, %cst_79 {dimension_numbers = #tpu.dot_dimension_numbers<[1], [0], [0], [1], [0, 0, 1, 1], [], []>} : vector<8x32xbf16>, vector<32x32xbf16>, vector<8x32xf32> -> vector<8x32xf32>
    %138 = arith.addf %118, %137 : vector<8x32xf32>
    %139 = vector.extract_strided_slice %36 {offsets = [0, 160], sizes = [8, 32], strides = [1, 1]} : vector<8x256xbf16> to vector<8x32xbf16>
    %140 = vector.extract_strided_slice %37 {offsets = [0, 160], sizes = [8, 32], strides = [1, 1]} : vector<8x256xbf16> to vector<8x32xbf16>
    "tpu.trace_start"() <{level = 10 : i32, message = "qd,kd->qk"}> : () -> ()
    %cst_80 = arith.constant dense<0.000000e+00> : vector<8x8xf32>
    %141 = tpu.matmul %139, %140, %cst_80 {dimension_numbers = #tpu.dot_dimension_numbers<[1], [1], [0], [0], [0, 0, 1, 0], [], []>} : vector<8x32xbf16>, vector<8x32xbf16>, vector<8x8xf32> -> vector<8x8xf32>
    "tpu.trace_stop"() : () -> ()
    %cst_81 = arith.constant dense<0xFF800000> : vector<8xf32>
    %142 = vector.multi_reduction <maximumf>, %141, %cst_81 [1] : vector<8x8xf32> to vector<8xf32>
    %143 = vector.shape_cast %142 : vector<8xf32> to vector<8x1xf32>
    %144 = vector.broadcast %143 : vector<8x1xf32> to vector<8x8xf32>
    %145 = arith.subf %141, %144 : vector<8x8xf32>
    %146 = math.exp %145 : vector<8x8xf32>
    %cst_82 = arith.constant dense<0.000000e+00> : vector<8xf32>
    %147 = vector.multi_reduction <add>, %146, %cst_82 [1] : vector<8x8xf32> to vector<8xf32>
    %148 = vector.shape_cast %147 : vector<8xf32> to vector<8x1xf32>
    %149 = tpu.reciprocal %148 {approx = true} : vector<8x1xf32> -> vector<8x1xf32>
    %150 = vector.broadcast %149 : vector<8x1xf32> to vector<8x8xf32>
    %151 = arith.mulf %146, %150 : vector<8x8xf32>
    %152 = arith.truncf %151 : vector<8x8xf32> to vector<8x8xbf16>
    %153 = vector.extract_strided_slice %35 {offsets = [0, 160], sizes = [8, 32], strides = [1, 1]} : vector<8x256xbf16> to vector<8x32xbf16>
    %cst_83 = arith.constant dense<0.000000e+00> : vector<8x32xf32>
    %154 = tpu.matmul %152, %153, %cst_83 {dimension_numbers = #tpu.dot_dimension_numbers<[1], [0], [0], [1], [0, 0, 1, 1], [], []>} : vector<8x8xbf16>, vector<8x32xbf16>, vector<8x32xf32> -> vector<8x32xf32>
    %155 = arith.truncf %154 : vector<8x32xf32> to vector<8x32xbf16>
    %156 = vector.extract_strided_slice %2 {offsets = [160, 0], sizes = [32, 32], strides = [1, 1]} : vector<256x32xbf16> to vector<32x32xbf16>
    %cst_84 = arith.constant dense<0.000000e+00> : vector<8x32xf32>
    %157 = tpu.matmul %155, %156, %cst_84 {dimension_numbers = #tpu.dot_dimension_numbers<[1], [0], [0], [1], [0, 0, 1, 1], [], []>} : vector<8x32xbf16>, vector<32x32xbf16>, vector<8x32xf32> -> vector<8x32xf32>
    %158 = arith.addf %138, %157 : vector<8x32xf32>
    %159 = vector.extract_strided_slice %36 {offsets = [0, 192], sizes = [8, 32], strides = [1, 1]} : vector<8x256xbf16> to vector<8x32xbf16>
    %160 = vector.extract_strided_slice %37 {offsets = [0, 192], sizes = [8, 32], strides = [1, 1]} : vector<8x256xbf16> to vector<8x32xbf16>
    "tpu.trace_start"() <{level = 10 : i32, message = "qd,kd->qk"}> : () -> ()
    %cst_85 = arith.constant dense<0.000000e+00> : vector<8x8xf32>
    %161 = tpu.matmul %159, %160, %cst_85 {dimension_numbers = #tpu.dot_dimension_numbers<[1], [1], [0], [0], [0, 0, 1, 0], [], []>} : vector<8x32xbf16>, vector<8x32xbf16>, vector<8x8xf32> -> vector<8x8xf32>
    "tpu.trace_stop"() : () -> ()
    %cst_86 = arith.constant dense<0xFF800000> : vector<8xf32>
    %162 = vector.multi_reduction <maximumf>, %161, %cst_86 [1] : vector<8x8xf32> to vector<8xf32>
    %163 = vector.shape_cast %162 : vector<8xf32> to vector<8x1xf32>
    %164 = vector.broadcast %163 : vector<8x1xf32> to vector<8x8xf32>
    %165 = arith.subf %161, %164 : vector<8x8xf32>
    %166 = math.exp %165 : vector<8x8xf32>
    %cst_87 = arith.constant dense<0.000000e+00> : vector<8xf32>
    %167 = vector.multi_reduction <add>, %166, %cst_87 [1] : vector<8x8xf32> to vector<8xf32>
    %168 = vector.shape_cast %167 : vector<8xf32> to vector<8x1xf32>
    %169 = tpu.reciprocal %168 {approx = true} : vector<8x1xf32> -> vector<8x1xf32>
    %170 = vector.broadcast %169 : vector<8x1xf32> to vector<8x8xf32>
    %171 = arith.mulf %166, %170 : vector<8x8xf32>
    %172 = arith.truncf %171 : vector<8x8xf32> to vector<8x8xbf16>
    %173 = vector.extract_strided_slice %35 {offsets = [0, 192], sizes = [8, 32], strides = [1, 1]} : vector<8x256xbf16> to vector<8x32xbf16>
    %cst_88 = arith.constant dense<0.000000e+00> : vector<8x32xf32>
    %174 = tpu.matmul %172, %173, %cst_88 {dimension_numbers = #tpu.dot_dimension_numbers<[1], [0], [0], [1], [0, 0, 1, 1], [], []>} : vector<8x8xbf16>, vector<8x32xbf16>, vector<8x32xf32> -> vector<8x32xf32>
    %175 = arith.truncf %174 : vector<8x32xf32> to vector<8x32xbf16>
    %176 = vector.extract_strided_slice %2 {offsets = [192, 0], sizes = [32, 32], strides = [1, 1]} : vector<256x32xbf16> to vector<32x32xbf16>
    %cst_89 = arith.constant dense<0.000000e+00> : vector<8x32xf32>
    %177 = tpu.matmul %175, %176, %cst_89 {dimension_numbers = #tpu.dot_dimension_numbers<[1], [0], [0], [1], [0, 0, 1, 1], [], []>} : vector<8x32xbf16>, vector<32x32xbf16>, vector<8x32xf32> -> vector<8x32xf32>
    %178 = arith.addf %158, %177 : vector<8x32xf32>
    %179 = vector.extract_strided_slice %36 {offsets = [0, 224], sizes = [8, 32], strides = [1, 1]} : vector<8x256xbf16> to vector<8x32xbf16>
    %180 = vector.extract_strided_slice %37 {offsets = [0, 224], sizes = [8, 32], strides = [1, 1]} : vector<8x256xbf16> to vector<8x32xbf16>
    "tpu.trace_start"() <{level = 10 : i32, message = "qd,kd->qk"}> : () -> ()
    %cst_90 = arith.constant dense<0.000000e+00> : vector<8x8xf32>
    %181 = tpu.matmul %179, %180, %cst_90 {dimension_numbers = #tpu.dot_dimension_numbers<[1], [1], [0], [0], [0, 0, 1, 0], [], []>} : vector<8x32xbf16>, vector<8x32xbf16>, vector<8x8xf32> -> vector<8x8xf32>
    "tpu.trace_stop"() : () -> ()
    %cst_91 = arith.constant dense<0xFF800000> : vector<8xf32>
    %182 = vector.multi_reduction <maximumf>, %181, %cst_91 [1] : vector<8x8xf32> to vector<8xf32>
    %183 = vector.shape_cast %182 : vector<8xf32> to vector<8x1xf32>
    %184 = vector.broadcast %183 : vector<8x1xf32> to vector<8x8xf32>
    %185 = arith.subf %181, %184 : vector<8x8xf32>
    %186 = math.exp %185 : vector<8x8xf32>
    %cst_92 = arith.constant dense<0.000000e+00> : vector<8xf32>
    %187 = vector.multi_reduction <add>, %186, %cst_92 [1] : vector<8x8xf32> to vector<8xf32>
    %188 = vector.shape_cast %187 : vector<8xf32> to vector<8x1xf32>
    %189 = tpu.reciprocal %188 {approx = true} : vector<8x1xf32> -> vector<8x1xf32>
    %190 = vector.broadcast %189 : vector<8x1xf32> to vector<8x8xf32>
    %191 = arith.mulf %186, %190 : vector<8x8xf32>
    %192 = arith.truncf %191 : vector<8x8xf32> to vector<8x8xbf16>
    %193 = vector.extract_strided_slice %35 {offsets = [0, 224], sizes = [8, 32], strides = [1, 1]} : vector<8x256xbf16> to vector<8x32xbf16>
    %cst_93 = arith.constant dense<0.000000e+00> : vector<8x32xf32>
    %194 = tpu.matmul %192, %193, %cst_93 {dimension_numbers = #tpu.dot_dimension_numbers<[1], [0], [0], [1], [0, 0, 1, 1], [], []>} : vector<8x8xbf16>, vector<8x32xbf16>, vector<8x32xf32> -> vector<8x32xf32>
    %195 = arith.truncf %194 : vector<8x32xf32> to vector<8x32xbf16>
    %196 = vector.extract_strided_slice %2 {offsets = [224, 0], sizes = [32, 32], strides = [1, 1]} : vector<256x32xbf16> to vector<32x32xbf16>
    %cst_94 = arith.constant dense<0.000000e+00> : vector<8x32xf32>
    %197 = tpu.matmul %195, %196, %cst_94 {dimension_numbers = #tpu.dot_dimension_numbers<[1], [0], [0], [1], [0, 0, 1, 1], [], []>} : vector<8x32xbf16>, vector<32x32xbf16>, vector<8x32xf32> -> vector<8x32xf32>
    %198 = arith.addf %178, %197 : vector<8x32xf32>
    %199 = arith.addf %198, %29 : vector<8x32xf32>
    %cst_95 = arith.constant dense<0.000000e+00> : vector<8xf32>
    %200 = vector.multi_reduction <add>, %199, %cst_95 [1] : vector<8x32xf32> to vector<8xf32>
    %201 = vector.shape_cast %200 : vector<8xf32> to vector<8x1xf32>
    %cst_96 = arith.constant 3.200000e+01 : f32
    %202 = vector.broadcast %cst_96 : f32 to vector<8x1xf32>
    %203 = arith.divf %201, %202 : vector<8x1xf32>
    %204 = arith.mulf %199, %199 : vector<8x32xf32>
    %cst_97 = arith.constant dense<0.000000e+00> : vector<8xf32>
    %205 = vector.multi_reduction <add>, %204, %cst_97 [1] : vector<8x32xf32> to vector<8xf32>
    %206 = vector.shape_cast %205 : vector<8xf32> to vector<8x1xf32>
    %cst_98 = arith.constant 3.200000e+01 : f32
    %207 = vector.broadcast %cst_98 : f32 to vector<8x1xf32>
    %208 = arith.divf %206, %207 : vector<8x1xf32>
    %209 = arith.mulf %203, %203 : vector<8x1xf32>
    %210 = arith.subf %208, %209 : vector<8x1xf32>
    %211 = vector.broadcast %203 : vector<8x1xf32> to vector<8x32xf32>
    %212 = arith.subf %199, %211 : vector<8x32xf32>
    %cst_99 = arith.constant 9.99999974E-6 : f32
    %213 = vector.broadcast %cst_99 : f32 to vector<8x1xf32>
    %214 = arith.addf %210, %213 : vector<8x1xf32>
    %215 = math.rsqrt %214 : vector<8x1xf32>
    %216 = vector.broadcast %215 : vector<8x1xf32> to vector<8x32xf32>
    %217 = arith.mulf %212, %216 : vector<8x32xf32>
    %218 = vector.broadcast %3 : vector<1x32xf32> to vector<8x32xf32>
    %219 = arith.mulf %217, %218 : vector<8x32xf32>
    %220 = vector.broadcast %4 : vector<1x32xf32> to vector<8x32xf32>
    %221 = arith.addf %219, %220 : vector<8x32xf32>
    %222 = arith.addf %22, %221 : vector<8x32xf32>
    %cst_100 = arith.constant dense<0.000000e+00> : vector<8xf32>
    %223 = vector.multi_reduction <add>, %222, %cst_100 [1] : vector<8x32xf32> to vector<8xf32>
    %224 = vector.shape_cast %223 : vector<8xf32> to vector<8x1xf32>
    %cst_101 = arith.constant 3.200000e+01 : f32
    %225 = vector.broadcast %cst_101 : f32 to vector<8x1xf32>
    %226 = arith.divf %224, %225 : vector<8x1xf32>
    %227 = arith.mulf %222, %222 : vector<8x32xf32>
    %cst_102 = arith.constant dense<0.000000e+00> : vector<8xf32>
    %228 = vector.multi_reduction <add>, %227, %cst_102 [1] : vector<8x32xf32> to vector<8xf32>
    %229 = vector.shape_cast %228 : vector<8xf32> to vector<8x1xf32>
    %cst_103 = arith.constant 3.200000e+01 : f32
    %230 = vector.broadcast %cst_103 : f32 to vector<8x1xf32>
    %231 = arith.divf %229, %230 : vector<8x1xf32>
    %232 = arith.mulf %226, %226 : vector<8x1xf32>
    %233 = arith.subf %231, %232 : vector<8x1xf32>
    %234 = vector.broadcast %226 : vector<8x1xf32> to vector<8x32xf32>
    %235 = arith.subf %222, %234 : vector<8x32xf32>
    %cst_104 = arith.constant 9.99999974E-6 : f32
    %236 = vector.broadcast %cst_104 : f32 to vector<8x1xf32>
    %237 = arith.addf %233, %236 : vector<8x1xf32>
    %238 = math.rsqrt %237 : vector<8x1xf32>
    %239 = vector.broadcast %238 : vector<8x1xf32> to vector<8x32xf32>
    %240 = arith.mulf %235, %239 : vector<8x32xf32>
    %241 = vector.broadcast %5 : vector<1x32xf32> to vector<8x32xf32>
    %242 = arith.mulf %240, %241 : vector<8x32xf32>
    %243 = vector.broadcast %6 : vector<1x32xf32> to vector<8x32xf32>
    %244 = arith.addf %242, %243 : vector<8x32xf32>
    %245 = arith.addf %244, %26 : vector<8x32xf32>
    %246 = arith.addf %24, %28 : vector<16x32xf32>
    %247 = arith.truncf %245 : vector<8x32xf32> to vector<8x32xbf16>
    %cst_105 = arith.constant dense<0.000000e+00> : vector<8x256xf32>
    %248 = tpu.matmul %247, %7, %cst_105 {dimension_numbers = #tpu.dot_dimension_numbers<[1], [0], [0], [1], [0, 0, 1, 1], [], []>} : vector<8x32xbf16>, vector<32x256xbf16>, vector<8x256xf32> -> vector<8x256xf32>
    %249 = arith.truncf %248 : vector<8x256xf32> to vector<8x256xbf16>
    %250 = arith.truncf %246 : vector<16x32xf32> to vector<16x32xbf16>
    %cst_106 = arith.constant dense<0.000000e+00> : vector<16x256xf32>
    %251 = tpu.matmul %250, %8, %cst_106 {dimension_numbers = #tpu.dot_dimension_numbers<[1], [0], [0], [1], [0, 0, 1, 1], [], []>} : vector<16x32xbf16>, vector<32x256xbf16>, vector<16x256xf32> -> vector<16x256xf32>
    %252 = arith.truncf %251 : vector<16x256xf32> to vector<16x256xbf16>
    %253 = arith.truncf %24 : vector<16x32xf32> to vector<16x32xbf16>
    %cst_107 = arith.constant dense<0.000000e+00> : vector<16x256xf32>
    %254 = tpu.matmul %253, %9, %cst_107 {dimension_numbers = #tpu.dot_dimension_numbers<[1], [0], [0], [1], [0, 0, 1, 1], [], []>} : vector<16x32xbf16>, vector<32x256xbf16>, vector<16x256xf32> -> vector<16x256xf32>
    %255 = arith.truncf %254 : vector<16x256xf32> to vector<16x256xbf16>
    %cst_108 = arith.constant 0.000000e+00 : f32
    %256 = vector.broadcast %cst_108 : f32 to vector<8x32xf32>
    %257 = vector.extract_strided_slice %249 {offsets = [0, 0], sizes = [8, 32], strides = [1, 1]} : vector<8x256xbf16> to vector<8x32xbf16>
    %258 = vector.extract_strided_slice %252 {offsets = [0, 0], sizes = [16, 32], strides = [1, 1]} : vector<16x256xbf16> to vector<16x32xbf16>
    "tpu.trace_start"() <{level = 10 : i32, message = "qd,kd->qk"}> : () -> ()
    %cst_109 = arith.constant dense<0.000000e+00> : vector<8x16xf32>
    %259 = tpu.matmul %257, %258, %cst_109 {dimension_numbers = #tpu.dot_dimension_numbers<[1], [1], [0], [0], [0, 0, 1, 0], [], []>} : vector<8x32xbf16>, vector<16x32xbf16>, vector<8x16xf32> -> vector<8x16xf32>
    "tpu.trace_stop"() : () -> ()
    %cst_110 = arith.constant dense<0xFF800000> : vector<8xf32>
    %260 = vector.multi_reduction <maximumf>, %259, %cst_110 [1] : vector<8x16xf32> to vector<8xf32>
    %261 = vector.shape_cast %260 : vector<8xf32> to vector<8x1xf32>
    %262 = vector.broadcast %261 : vector<8x1xf32> to vector<8x16xf32>
    %263 = arith.subf %259, %262 : vector<8x16xf32>
    %264 = math.exp %263 : vector<8x16xf32>
    %cst_111 = arith.constant dense<0.000000e+00> : vector<8xf32>
    %265 = vector.multi_reduction <add>, %264, %cst_111 [1] : vector<8x16xf32> to vector<8xf32>
    %266 = vector.shape_cast %265 : vector<8xf32> to vector<8x1xf32>
    %267 = tpu.reciprocal %266 {approx = true} : vector<8x1xf32> -> vector<8x1xf32>
    %268 = vector.broadcast %267 : vector<8x1xf32> to vector<8x16xf32>
    %269 = arith.mulf %264, %268 : vector<8x16xf32>
    %270 = arith.truncf %269 : vector<8x16xf32> to vector<8x16xbf16>
    %271 = vector.extract_strided_slice %255 {offsets = [0, 0], sizes = [16, 32], strides = [1, 1]} : vector<16x256xbf16> to vector<16x32xbf16>
    %cst_112 = arith.constant dense<0.000000e+00> : vector<8x32xf32>
    %272 = tpu.matmul %270, %271, %cst_112 {dimension_numbers = #tpu.dot_dimension_numbers<[1], [0], [0], [1], [0, 0, 1, 1], [], []>} : vector<8x16xbf16>, vector<16x32xbf16>, vector<8x32xf32> -> vector<8x32xf32>
    %273 = arith.truncf %272 : vector<8x32xf32> to vector<8x32xbf16>
    %274 = vector.extract_strided_slice %10 {offsets = [0, 0], sizes = [32, 32], strides = [1, 1]} : vector<256x32xbf16> to vector<32x32xbf16>
    %cst_113 = arith.constant dense<0.000000e+00> : vector<8x32xf32>
    %275 = tpu.matmul %273, %274, %cst_113 {dimension_numbers = #tpu.dot_dimension_numbers<[1], [0], [0], [1], [0, 0, 1, 1], [], []>} : vector<8x32xbf16>, vector<32x32xbf16>, vector<8x32xf32> -> vector<8x32xf32>
    %276 = arith.addf %256, %275 : vector<8x32xf32>
    %277 = vector.extract_strided_slice %249 {offsets = [0, 32], sizes = [8, 32], strides = [1, 1]} : vector<8x256xbf16> to vector<8x32xbf16>
    %278 = vector.extract_strided_slice %252 {offsets = [0, 32], sizes = [16, 32], strides = [1, 1]} : vector<16x256xbf16> to vector<16x32xbf16>
    "tpu.trace_start"() <{level = 10 : i32, message = "qd,kd->qk"}> : () -> ()
    %cst_114 = arith.constant dense<0.000000e+00> : vector<8x16xf32>
    %279 = tpu.matmul %277, %278, %cst_114 {dimension_numbers = #tpu.dot_dimension_numbers<[1], [1], [0], [0], [0, 0, 1, 0], [], []>} : vector<8x32xbf16>, vector<16x32xbf16>, vector<8x16xf32> -> vector<8x16xf32>
    "tpu.trace_stop"() : () -> ()
    %cst_115 = arith.constant dense<0xFF800000> : vector<8xf32>
    %280 = vector.multi_reduction <maximumf>, %279, %cst_115 [1] : vector<8x16xf32> to vector<8xf32>
    %281 = vector.shape_cast %280 : vector<8xf32> to vector<8x1xf32>
    %282 = vector.broadcast %281 : vector<8x1xf32> to vector<8x16xf32>
    %283 = arith.subf %279, %282 : vector<8x16xf32>
    %284 = math.exp %283 : vector<8x16xf32>
    %cst_116 = arith.constant dense<0.000000e+00> : vector<8xf32>
    %285 = vector.multi_reduction <add>, %284, %cst_116 [1] : vector<8x16xf32> to vector<8xf32>
    %286 = vector.shape_cast %285 : vector<8xf32> to vector<8x1xf32>
    %287 = tpu.reciprocal %286 {approx = true} : vector<8x1xf32> -> vector<8x1xf32>
    %288 = vector.broadcast %287 : vector<8x1xf32> to vector<8x16xf32>
    %289 = arith.mulf %284, %288 : vector<8x16xf32>
    %290 = arith.truncf %289 : vector<8x16xf32> to vector<8x16xbf16>
    %291 = vector.extract_strided_slice %255 {offsets = [0, 32], sizes = [16, 32], strides = [1, 1]} : vector<16x256xbf16> to vector<16x32xbf16>
    %cst_117 = arith.constant dense<0.000000e+00> : vector<8x32xf32>
    %292 = tpu.matmul %290, %291, %cst_117 {dimension_numbers = #tpu.dot_dimension_numbers<[1], [0], [0], [1], [0, 0, 1, 1], [], []>} : vector<8x16xbf16>, vector<16x32xbf16>, vector<8x32xf32> -> vector<8x32xf32>
    %293 = arith.truncf %292 : vector<8x32xf32> to vector<8x32xbf16>
    %294 = vector.extract_strided_slice %10 {offsets = [32, 0], sizes = [32, 32], strides = [1, 1]} : vector<256x32xbf16> to vector<32x32xbf16>
    %cst_118 = arith.constant dense<0.000000e+00> : vector<8x32xf32>
    %295 = tpu.matmul %293, %294, %cst_118 {dimension_numbers = #tpu.dot_dimension_numbers<[1], [0], [0], [1], [0, 0, 1, 1], [], []>} : vector<8x32xbf16>, vector<32x32xbf16>, vector<8x32xf32> -> vector<8x32xf32>
    %296 = arith.addf %276, %295 : vector<8x32xf32>
    %297 = vector.extract_strided_slice %249 {offsets = [0, 64], sizes = [8, 32], strides = [1, 1]} : vector<8x256xbf16> to vector<8x32xbf16>
    %298 = vector.extract_strided_slice %252 {offsets = [0, 64], sizes = [16, 32], strides = [1, 1]} : vector<16x256xbf16> to vector<16x32xbf16>
    "tpu.trace_start"() <{level = 10 : i32, message = "qd,kd->qk"}> : () -> ()
    %cst_119 = arith.constant dense<0.000000e+00> : vector<8x16xf32>
    %299 = tpu.matmul %297, %298, %cst_119 {dimension_numbers = #tpu.dot_dimension_numbers<[1], [1], [0], [0], [0, 0, 1, 0], [], []>} : vector<8x32xbf16>, vector<16x32xbf16>, vector<8x16xf32> -> vector<8x16xf32>
    "tpu.trace_stop"() : () -> ()
    %cst_120 = arith.constant dense<0xFF800000> : vector<8xf32>
    %300 = vector.multi_reduction <maximumf>, %299, %cst_120 [1] : vector<8x16xf32> to vector<8xf32>
    %301 = vector.shape_cast %300 : vector<8xf32> to vector<8x1xf32>
    %302 = vector.broadcast %301 : vector<8x1xf32> to vector<8x16xf32>
    %303 = arith.subf %299, %302 : vector<8x16xf32>
    %304 = math.exp %303 : vector<8x16xf32>
    %cst_121 = arith.constant dense<0.000000e+00> : vector<8xf32>
    %305 = vector.multi_reduction <add>, %304, %cst_121 [1] : vector<8x16xf32> to vector<8xf32>
    %306 = vector.shape_cast %305 : vector<8xf32> to vector<8x1xf32>
    %307 = tpu.reciprocal %306 {approx = true} : vector<8x1xf32> -> vector<8x1xf32>
    %308 = vector.broadcast %307 : vector<8x1xf32> to vector<8x16xf32>
    %309 = arith.mulf %304, %308 : vector<8x16xf32>
    %310 = arith.truncf %309 : vector<8x16xf32> to vector<8x16xbf16>
    %311 = vector.extract_strided_slice %255 {offsets = [0, 64], sizes = [16, 32], strides = [1, 1]} : vector<16x256xbf16> to vector<16x32xbf16>
    %cst_122 = arith.constant dense<0.000000e+00> : vector<8x32xf32>
    %312 = tpu.matmul %310, %311, %cst_122 {dimension_numbers = #tpu.dot_dimension_numbers<[1], [0], [0], [1], [0, 0, 1, 1], [], []>} : vector<8x16xbf16>, vector<16x32xbf16>, vector<8x32xf32> -> vector<8x32xf32>
    %313 = arith.truncf %312 : vector<8x32xf32> to vector<8x32xbf16>
    %314 = vector.extract_strided_slice %10 {offsets = [64, 0], sizes = [32, 32], strides = [1, 1]} : vector<256x32xbf16> to vector<32x32xbf16>
    %cst_123 = arith.constant dense<0.000000e+00> : vector<8x32xf32>
    %315 = tpu.matmul %313, %314, %cst_123 {dimension_numbers = #tpu.dot_dimension_numbers<[1], [0], [0], [1], [0, 0, 1, 1], [], []>} : vector<8x32xbf16>, vector<32x32xbf16>, vector<8x32xf32> -> vector<8x32xf32>
    %316 = arith.addf %296, %315 : vector<8x32xf32>
    %317 = vector.extract_strided_slice %249 {offsets = [0, 96], sizes = [8, 32], strides = [1, 1]} : vector<8x256xbf16> to vector<8x32xbf16>
    %318 = vector.extract_strided_slice %252 {offsets = [0, 96], sizes = [16, 32], strides = [1, 1]} : vector<16x256xbf16> to vector<16x32xbf16>
    "tpu.trace_start"() <{level = 10 : i32, message = "qd,kd->qk"}> : () -> ()
    %cst_124 = arith.constant dense<0.000000e+00> : vector<8x16xf32>
    %319 = tpu.matmul %317, %318, %cst_124 {dimension_numbers = #tpu.dot_dimension_numbers<[1], [1], [0], [0], [0, 0, 1, 0], [], []>} : vector<8x32xbf16>, vector<16x32xbf16>, vector<8x16xf32> -> vector<8x16xf32>
    "tpu.trace_stop"() : () -> ()
    %cst_125 = arith.constant dense<0xFF800000> : vector<8xf32>
    %320 = vector.multi_reduction <maximumf>, %319, %cst_125 [1] : vector<8x16xf32> to vector<8xf32>
    %321 = vector.shape_cast %320 : vector<8xf32> to vector<8x1xf32>
    %322 = vector.broadcast %321 : vector<8x1xf32> to vector<8x16xf32>
    %323 = arith.subf %319, %322 : vector<8x16xf32>
    %324 = math.exp %323 : vector<8x16xf32>
    %cst_126 = arith.constant dense<0.000000e+00> : vector<8xf32>
    %325 = vector.multi_reduction <add>, %324, %cst_126 [1] : vector<8x16xf32> to vector<8xf32>
    %326 = vector.shape_cast %325 : vector<8xf32> to vector<8x1xf32>
    %327 = tpu.reciprocal %326 {approx = true} : vector<8x1xf32> -> vector<8x1xf32>
    %328 = vector.broadcast %327 : vector<8x1xf32> to vector<8x16xf32>
    %329 = arith.mulf %324, %328 : vector<8x16xf32>
    %330 = arith.truncf %329 : vector<8x16xf32> to vector<8x16xbf16>
    %331 = vector.extract_strided_slice %255 {offsets = [0, 96], sizes = [16, 32], strides = [1, 1]} : vector<16x256xbf16> to vector<16x32xbf16>
    %cst_127 = arith.constant dense<0.000000e+00> : vector<8x32xf32>
    %332 = tpu.matmul %330, %331, %cst_127 {dimension_numbers = #tpu.dot_dimension_numbers<[1], [0], [0], [1], [0, 0, 1, 1], [], []>} : vector<8x16xbf16>, vector<16x32xbf16>, vector<8x32xf32> -> vector<8x32xf32>
    %333 = arith.truncf %332 : vector<8x32xf32> to vector<8x32xbf16>
    %334 = vector.extract_strided_slice %10 {offsets = [96, 0], sizes = [32, 32], strides = [1, 1]} : vector<256x32xbf16> to vector<32x32xbf16>
    %cst_128 = arith.constant dense<0.000000e+00> : vector<8x32xf32>
    %335 = tpu.matmul %333, %334, %cst_128 {dimension_numbers = #tpu.dot_dimension_numbers<[1], [0], [0], [1], [0, 0, 1, 1], [], []>} : vector<8x32xbf16>, vector<32x32xbf16>, vector<8x32xf32> -> vector<8x32xf32>
    %336 = arith.addf %316, %335 : vector<8x32xf32>
    %337 = vector.extract_strided_slice %249 {offsets = [0, 128], sizes = [8, 32], strides = [1, 1]} : vector<8x256xbf16> to vector<8x32xbf16>
    %338 = vector.extract_strided_slice %252 {offsets = [0, 128], sizes = [16, 32], strides = [1, 1]} : vector<16x256xbf16> to vector<16x32xbf16>
    "tpu.trace_start"() <{level = 10 : i32, message = "qd,kd->qk"}> : () -> ()
    %cst_129 = arith.constant dense<0.000000e+00> : vector<8x16xf32>
    %339 = tpu.matmul %337, %338, %cst_129 {dimension_numbers = #tpu.dot_dimension_numbers<[1], [1], [0], [0], [0, 0, 1, 0], [], []>} : vector<8x32xbf16>, vector<16x32xbf16>, vector<8x16xf32> -> vector<8x16xf32>
    "tpu.trace_stop"() : () -> ()
    %cst_130 = arith.constant dense<0xFF800000> : vector<8xf32>
    %340 = vector.multi_reduction <maximumf>, %339, %cst_130 [1] : vector<8x16xf32> to vector<8xf32>
    %341 = vector.shape_cast %340 : vector<8xf32> to vector<8x1xf32>
    %342 = vector.broadcast %341 : vector<8x1xf32> to vector<8x16xf32>
    %343 = arith.subf %339, %342 : vector<8x16xf32>
    %344 = math.exp %343 : vector<8x16xf32>
    %cst_131 = arith.constant dense<0.000000e+00> : vector<8xf32>
    %345 = vector.multi_reduction <add>, %344, %cst_131 [1] : vector<8x16xf32> to vector<8xf32>
    %346 = vector.shape_cast %345 : vector<8xf32> to vector<8x1xf32>
    %347 = tpu.reciprocal %346 {approx = true} : vector<8x1xf32> -> vector<8x1xf32>
    %348 = vector.broadcast %347 : vector<8x1xf32> to vector<8x16xf32>
    %349 = arith.mulf %344, %348 : vector<8x16xf32>
    %350 = arith.truncf %349 : vector<8x16xf32> to vector<8x16xbf16>
    %351 = vector.extract_strided_slice %255 {offsets = [0, 128], sizes = [16, 32], strides = [1, 1]} : vector<16x256xbf16> to vector<16x32xbf16>
    %cst_132 = arith.constant dense<0.000000e+00> : vector<8x32xf32>
    %352 = tpu.matmul %350, %351, %cst_132 {dimension_numbers = #tpu.dot_dimension_numbers<[1], [0], [0], [1], [0, 0, 1, 1], [], []>} : vector<8x16xbf16>, vector<16x32xbf16>, vector<8x32xf32> -> vector<8x32xf32>
    %353 = arith.truncf %352 : vector<8x32xf32> to vector<8x32xbf16>
    %354 = vector.extract_strided_slice %10 {offsets = [128, 0], sizes = [32, 32], strides = [1, 1]} : vector<256x32xbf16> to vector<32x32xbf16>
    %cst_133 = arith.constant dense<0.000000e+00> : vector<8x32xf32>
    %355 = tpu.matmul %353, %354, %cst_133 {dimension_numbers = #tpu.dot_dimension_numbers<[1], [0], [0], [1], [0, 0, 1, 1], [], []>} : vector<8x32xbf16>, vector<32x32xbf16>, vector<8x32xf32> -> vector<8x32xf32>
    %356 = arith.addf %336, %355 : vector<8x32xf32>
    %357 = vector.extract_strided_slice %249 {offsets = [0, 160], sizes = [8, 32], strides = [1, 1]} : vector<8x256xbf16> to vector<8x32xbf16>
    %358 = vector.extract_strided_slice %252 {offsets = [0, 160], sizes = [16, 32], strides = [1, 1]} : vector<16x256xbf16> to vector<16x32xbf16>
    "tpu.trace_start"() <{level = 10 : i32, message = "qd,kd->qk"}> : () -> ()
    %cst_134 = arith.constant dense<0.000000e+00> : vector<8x16xf32>
    %359 = tpu.matmul %357, %358, %cst_134 {dimension_numbers = #tpu.dot_dimension_numbers<[1], [1], [0], [0], [0, 0, 1, 0], [], []>} : vector<8x32xbf16>, vector<16x32xbf16>, vector<8x16xf32> -> vector<8x16xf32>
    "tpu.trace_stop"() : () -> ()
    %cst_135 = arith.constant dense<0xFF800000> : vector<8xf32>
    %360 = vector.multi_reduction <maximumf>, %359, %cst_135 [1] : vector<8x16xf32> to vector<8xf32>
    %361 = vector.shape_cast %360 : vector<8xf32> to vector<8x1xf32>
    %362 = vector.broadcast %361 : vector<8x1xf32> to vector<8x16xf32>
    %363 = arith.subf %359, %362 : vector<8x16xf32>
    %364 = math.exp %363 : vector<8x16xf32>
    %cst_136 = arith.constant dense<0.000000e+00> : vector<8xf32>
    %365 = vector.multi_reduction <add>, %364, %cst_136 [1] : vector<8x16xf32> to vector<8xf32>
    %366 = vector.shape_cast %365 : vector<8xf32> to vector<8x1xf32>
    %367 = tpu.reciprocal %366 {approx = true} : vector<8x1xf32> -> vector<8x1xf32>
    %368 = vector.broadcast %367 : vector<8x1xf32> to vector<8x16xf32>
    %369 = arith.mulf %364, %368 : vector<8x16xf32>
    %370 = arith.truncf %369 : vector<8x16xf32> to vector<8x16xbf16>
    %371 = vector.extract_strided_slice %255 {offsets = [0, 160], sizes = [16, 32], strides = [1, 1]} : vector<16x256xbf16> to vector<16x32xbf16>
    %cst_137 = arith.constant dense<0.000000e+00> : vector<8x32xf32>
    %372 = tpu.matmul %370, %371, %cst_137 {dimension_numbers = #tpu.dot_dimension_numbers<[1], [0], [0], [1], [0, 0, 1, 1], [], []>} : vector<8x16xbf16>, vector<16x32xbf16>, vector<8x32xf32> -> vector<8x32xf32>
    %373 = arith.truncf %372 : vector<8x32xf32> to vector<8x32xbf16>
    %374 = vector.extract_strided_slice %10 {offsets = [160, 0], sizes = [32, 32], strides = [1, 1]} : vector<256x32xbf16> to vector<32x32xbf16>
    %cst_138 = arith.constant dense<0.000000e+00> : vector<8x32xf32>
    %375 = tpu.matmul %373, %374, %cst_138 {dimension_numbers = #tpu.dot_dimension_numbers<[1], [0], [0], [1], [0, 0, 1, 1], [], []>} : vector<8x32xbf16>, vector<32x32xbf16>, vector<8x32xf32> -> vector<8x32xf32>
    %376 = arith.addf %356, %375 : vector<8x32xf32>
    %377 = vector.extract_strided_slice %249 {offsets = [0, 192], sizes = [8, 32], strides = [1, 1]} : vector<8x256xbf16> to vector<8x32xbf16>
    %378 = vector.extract_strided_slice %252 {offsets = [0, 192], sizes = [16, 32], strides = [1, 1]} : vector<16x256xbf16> to vector<16x32xbf16>
    "tpu.trace_start"() <{level = 10 : i32, message = "qd,kd->qk"}> : () -> ()
    %cst_139 = arith.constant dense<0.000000e+00> : vector<8x16xf32>
    %379 = tpu.matmul %377, %378, %cst_139 {dimension_numbers = #tpu.dot_dimension_numbers<[1], [1], [0], [0], [0, 0, 1, 0], [], []>} : vector<8x32xbf16>, vector<16x32xbf16>, vector<8x16xf32> -> vector<8x16xf32>
    "tpu.trace_stop"() : () -> ()
    %cst_140 = arith.constant dense<0xFF800000> : vector<8xf32>
    %380 = vector.multi_reduction <maximumf>, %379, %cst_140 [1] : vector<8x16xf32> to vector<8xf32>
    %381 = vector.shape_cast %380 : vector<8xf32> to vector<8x1xf32>
    %382 = vector.broadcast %381 : vector<8x1xf32> to vector<8x16xf32>
    %383 = arith.subf %379, %382 : vector<8x16xf32>
    %384 = math.exp %383 : vector<8x16xf32>
    %cst_141 = arith.constant dense<0.000000e+00> : vector<8xf32>
    %385 = vector.multi_reduction <add>, %384, %cst_141 [1] : vector<8x16xf32> to vector<8xf32>
    %386 = vector.shape_cast %385 : vector<8xf32> to vector<8x1xf32>
    %387 = tpu.reciprocal %386 {approx = true} : vector<8x1xf32> -> vector<8x1xf32>
    %388 = vector.broadcast %387 : vector<8x1xf32> to vector<8x16xf32>
    %389 = arith.mulf %384, %388 : vector<8x16xf32>
    %390 = arith.truncf %389 : vector<8x16xf32> to vector<8x16xbf16>
    %391 = vector.extract_strided_slice %255 {offsets = [0, 192], sizes = [16, 32], strides = [1, 1]} : vector<16x256xbf16> to vector<16x32xbf16>
    %cst_142 = arith.constant dense<0.000000e+00> : vector<8x32xf32>
    %392 = tpu.matmul %390, %391, %cst_142 {dimension_numbers = #tpu.dot_dimension_numbers<[1], [0], [0], [1], [0, 0, 1, 1], [], []>} : vector<8x16xbf16>, vector<16x32xbf16>, vector<8x32xf32> -> vector<8x32xf32>
    %393 = arith.truncf %392 : vector<8x32xf32> to vector<8x32xbf16>
    %394 = vector.extract_strided_slice %10 {offsets = [192, 0], sizes = [32, 32], strides = [1, 1]} : vector<256x32xbf16> to vector<32x32xbf16>
    %cst_143 = arith.constant dense<0.000000e+00> : vector<8x32xf32>
    %395 = tpu.matmul %393, %394, %cst_143 {dimension_numbers = #tpu.dot_dimension_numbers<[1], [0], [0], [1], [0, 0, 1, 1], [], []>} : vector<8x32xbf16>, vector<32x32xbf16>, vector<8x32xf32> -> vector<8x32xf32>
    %396 = arith.addf %376, %395 : vector<8x32xf32>
    %397 = vector.extract_strided_slice %249 {offsets = [0, 224], sizes = [8, 32], strides = [1, 1]} : vector<8x256xbf16> to vector<8x32xbf16>
    %398 = vector.extract_strided_slice %252 {offsets = [0, 224], sizes = [16, 32], strides = [1, 1]} : vector<16x256xbf16> to vector<16x32xbf16>
    "tpu.trace_start"() <{level = 10 : i32, message = "qd,kd->qk"}> : () -> ()
    %cst_144 = arith.constant dense<0.000000e+00> : vector<8x16xf32>
    %399 = tpu.matmul %397, %398, %cst_144 {dimension_numbers = #tpu.dot_dimension_numbers<[1], [1], [0], [0], [0, 0, 1, 0], [], []>} : vector<8x32xbf16>, vector<16x32xbf16>, vector<8x16xf32> -> vector<8x16xf32>
    "tpu.trace_stop"() : () -> ()
    %cst_145 = arith.constant dense<0xFF800000> : vector<8xf32>
    %400 = vector.multi_reduction <maximumf>, %399, %cst_145 [1] : vector<8x16xf32> to vector<8xf32>
    %401 = vector.shape_cast %400 : vector<8xf32> to vector<8x1xf32>
    %402 = vector.broadcast %401 : vector<8x1xf32> to vector<8x16xf32>
    %403 = arith.subf %399, %402 : vector<8x16xf32>
    %404 = math.exp %403 : vector<8x16xf32>
    %cst_146 = arith.constant dense<0.000000e+00> : vector<8xf32>
    %405 = vector.multi_reduction <add>, %404, %cst_146 [1] : vector<8x16xf32> to vector<8xf32>
    %406 = vector.shape_cast %405 : vector<8xf32> to vector<8x1xf32>
    %407 = tpu.reciprocal %406 {approx = true} : vector<8x1xf32> -> vector<8x1xf32>
    %408 = vector.broadcast %407 : vector<8x1xf32> to vector<8x16xf32>
    %409 = arith.mulf %404, %408 : vector<8x16xf32>
    %410 = arith.truncf %409 : vector<8x16xf32> to vector<8x16xbf16>
    %411 = vector.extract_strided_slice %255 {offsets = [0, 224], sizes = [16, 32], strides = [1, 1]} : vector<16x256xbf16> to vector<16x32xbf16>
    %cst_147 = arith.constant dense<0.000000e+00> : vector<8x32xf32>
    %412 = tpu.matmul %410, %411, %cst_147 {dimension_numbers = #tpu.dot_dimension_numbers<[1], [0], [0], [1], [0, 0, 1, 1], [], []>} : vector<8x16xbf16>, vector<16x32xbf16>, vector<8x32xf32> -> vector<8x32xf32>
    %413 = arith.truncf %412 : vector<8x32xf32> to vector<8x32xbf16>
    %414 = vector.extract_strided_slice %10 {offsets = [224, 0], sizes = [32, 32], strides = [1, 1]} : vector<256x32xbf16> to vector<32x32xbf16>
    %cst_148 = arith.constant dense<0.000000e+00> : vector<8x32xf32>
    %415 = tpu.matmul %413, %414, %cst_148 {dimension_numbers = #tpu.dot_dimension_numbers<[1], [0], [0], [1], [0, 0, 1, 1], [], []>} : vector<8x32xbf16>, vector<32x32xbf16>, vector<8x32xf32> -> vector<8x32xf32>
    %416 = arith.addf %396, %415 : vector<8x32xf32>
    %417 = arith.addf %416, %245 : vector<8x32xf32>
    %cst_149 = arith.constant dense<0.000000e+00> : vector<8xf32>
    %418 = vector.multi_reduction <add>, %417, %cst_149 [1] : vector<8x32xf32> to vector<8xf32>
    %419 = vector.shape_cast %418 : vector<8xf32> to vector<8x1xf32>
    %cst_150 = arith.constant 3.200000e+01 : f32
    %420 = vector.broadcast %cst_150 : f32 to vector<8x1xf32>
    %421 = arith.divf %419, %420 : vector<8x1xf32>
    %422 = arith.mulf %417, %417 : vector<8x32xf32>
    %cst_151 = arith.constant dense<0.000000e+00> : vector<8xf32>
    %423 = vector.multi_reduction <add>, %422, %cst_151 [1] : vector<8x32xf32> to vector<8xf32>
    %424 = vector.shape_cast %423 : vector<8xf32> to vector<8x1xf32>
    %cst_152 = arith.constant 3.200000e+01 : f32
    %425 = vector.broadcast %cst_152 : f32 to vector<8x1xf32>
    %426 = arith.divf %424, %425 : vector<8x1xf32>
    %427 = arith.mulf %421, %421 : vector<8x1xf32>
    %428 = arith.subf %426, %427 : vector<8x1xf32>
    %429 = vector.broadcast %421 : vector<8x1xf32> to vector<8x32xf32>
    %430 = arith.subf %417, %429 : vector<8x32xf32>
    %cst_153 = arith.constant 9.99999974E-6 : f32
    %431 = vector.broadcast %cst_153 : f32 to vector<8x1xf32>
    %432 = arith.addf %428, %431 : vector<8x1xf32>
    %433 = math.rsqrt %432 : vector<8x1xf32>
    %434 = vector.broadcast %433 : vector<8x1xf32> to vector<8x32xf32>
    %435 = arith.mulf %430, %434 : vector<8x32xf32>
    %436 = vector.broadcast %11 : vector<1x32xf32> to vector<8x32xf32>
    %437 = arith.mulf %435, %436 : vector<8x32xf32>
    %438 = vector.broadcast %12 : vector<1x32xf32> to vector<8x32xf32>
    %439 = arith.addf %437, %438 : vector<8x32xf32>
    %440 = arith.addf %244, %439 : vector<8x32xf32>
    %cst_154 = arith.constant dense<0.000000e+00> : vector<8xf32>
    %441 = vector.multi_reduction <add>, %440, %cst_154 [1] : vector<8x32xf32> to vector<8xf32>
    %442 = vector.shape_cast %441 : vector<8xf32> to vector<8x1xf32>
    %cst_155 = arith.constant 3.200000e+01 : f32
    %443 = vector.broadcast %cst_155 : f32 to vector<8x1xf32>
    %444 = arith.divf %442, %443 : vector<8x1xf32>
    %445 = arith.mulf %440, %440 : vector<8x32xf32>
    %cst_156 = arith.constant dense<0.000000e+00> : vector<8xf32>
    %446 = vector.multi_reduction <add>, %445, %cst_156 [1] : vector<8x32xf32> to vector<8xf32>
    %447 = vector.shape_cast %446 : vector<8xf32> to vector<8x1xf32>
    %cst_157 = arith.constant 3.200000e+01 : f32
    %448 = vector.broadcast %cst_157 : f32 to vector<8x1xf32>
    %449 = arith.divf %447, %448 : vector<8x1xf32>
    %450 = arith.mulf %444, %444 : vector<8x1xf32>
    %451 = arith.subf %449, %450 : vector<8x1xf32>
    %452 = vector.broadcast %444 : vector<8x1xf32> to vector<8x32xf32>
    %453 = arith.subf %440, %452 : vector<8x32xf32>
    %cst_158 = arith.constant 9.99999974E-6 : f32
    %454 = vector.broadcast %cst_158 : f32 to vector<8x1xf32>
    %455 = arith.addf %451, %454 : vector<8x1xf32>
    %456 = math.rsqrt %455 : vector<8x1xf32>
    %457 = vector.broadcast %456 : vector<8x1xf32> to vector<8x32xf32>
    %458 = arith.mulf %453, %457 : vector<8x32xf32>
    %459 = vector.broadcast %13 : vector<1x32xf32> to vector<8x32xf32>
    %460 = arith.mulf %458, %459 : vector<8x32xf32>
    %461 = vector.broadcast %14 : vector<1x32xf32> to vector<8x32xf32>
    %462 = arith.addf %460, %461 : vector<8x32xf32>
    %463 = arith.truncf %462 : vector<8x32xf32> to vector<8x32xbf16>
    %cst_159 = arith.constant dense<0.000000e+00> : vector<8x64xf32>
    %464 = tpu.matmul %463, %15, %cst_159 {dimension_numbers = #tpu.dot_dimension_numbers<[1], [0], [0], [1], [0, 0, 1, 1], [], []>} : vector<8x32xbf16>, vector<32x64xbf16>, vector<8x64xf32> -> vector<8x64xf32>
    %465 = vector.broadcast %16 : vector<1x64xf32> to vector<8x64xf32>
    %466 = arith.addf %464, %465 : vector<8x64xf32>
    %cst_160 = arith.constant 0.000000e+00 : f32
    %467 = vector.broadcast %cst_160 : f32 to vector<8x64xf32>
    %468 = arith.maximumf %466, %467 : vector<8x64xf32>
    %469 = arith.truncf %468 : vector<8x64xf32> to vector<8x64xbf16>
    %cst_161 = arith.constant dense<0.000000e+00> : vector<8x32xf32>
    %470 = tpu.matmul %469, %17, %cst_161 {dimension_numbers = #tpu.dot_dimension_numbers<[1], [0], [0], [1], [0, 0, 1, 1], [], []>} : vector<8x64xbf16>, vector<64x32xbf16>, vector<8x32xf32> -> vector<8x32xf32>
    %471 = vector.broadcast %18 : vector<1x32xf32> to vector<8x32xf32>
    %472 = arith.addf %470, %471 : vector<8x32xf32>
    %473 = arith.addf %462, %472 : vector<8x32xf32>
    %cst_162 = arith.constant dense<0.000000e+00> : vector<8xf32>
    %474 = vector.multi_reduction <add>, %473, %cst_162 [1] : vector<8x32xf32> to vector<8xf32>
    %475 = vector.shape_cast %474 : vector<8xf32> to vector<8x1xf32>
    %cst_163 = arith.constant 3.200000e+01 : f32
    %476 = vector.broadcast %cst_163 : f32 to vector<8x1xf32>
    %477 = arith.divf %475, %476 : vector<8x1xf32>
    %478 = arith.mulf %473, %473 : vector<8x32xf32>
    %cst_164 = arith.constant dense<0.000000e+00> : vector<8xf32>
    %479 = vector.multi_reduction <add>, %478, %cst_164 [1] : vector<8x32xf32> to vector<8xf32>
    %480 = vector.shape_cast %479 : vector<8xf32> to vector<8x1xf32>
    %cst_165 = arith.constant 3.200000e+01 : f32
    %481 = vector.broadcast %cst_165 : f32 to vector<8x1xf32>
    %482 = arith.divf %480, %481 : vector<8x1xf32>
    %483 = arith.mulf %477, %477 : vector<8x1xf32>
    %484 = arith.subf %482, %483 : vector<8x1xf32>
    %485 = vector.broadcast %477 : vector<8x1xf32> to vector<8x32xf32>
    %486 = arith.subf %473, %485 : vector<8x32xf32>
    %cst_166 = arith.constant 9.99999974E-6 : f32
    %487 = vector.broadcast %cst_166 : f32 to vector<8x1xf32>
    %488 = arith.addf %484, %487 : vector<8x1xf32>
    %489 = math.rsqrt %488 : vector<8x1xf32>
    %490 = vector.broadcast %489 : vector<8x1xf32> to vector<8x32xf32>
    %491 = arith.mulf %486, %490 : vector<8x32xf32>
    %492 = vector.broadcast %19 : vector<1x32xf32> to vector<8x32xf32>
    %493 = arith.mulf %491, %492 : vector<8x32xf32>
    %494 = vector.broadcast %20 : vector<1x32xf32> to vector<8x32xf32>
    %495 = arith.addf %493, %494 : vector<8x32xf32>
    %c0_167 = arith.constant 0 : index
    %c0_168 = arith.constant 0 : index
    %c0_169 = arith.constant 0 : index
    %496 = vector.load %arg26[%c0_167, %c0_168, %c0_169] : memref<1x8x32xf32, #tpu.memory_space<vmem>>, vector<1x8x32xf32>
    %497 = vector.shape_cast %496 : vector<1x8x32xf32> to vector<8x32xf32>
    %498 = vector.shape_cast %495 : vector<8x32xf32> to vector<1x8x32xf32>
    tpu.vector_store %arg26[%c0_167, %c0_168, %c0_169], %498 {strides = array<i32>} : memref<1x8x32xf32, #tpu.memory_space<vmem>>, vector<1x8x32xf32>,
    return
  }
  func.func @transform_0(%arg0: i32) -> (i32, i32, i32) {
    %c0_i32 = arith.constant 0 : i32
    %c0_i32_0 = arith.constant 0 : i32
    %c0_i32_1 = arith.constant 0 : i32
    return %arg0, %c0_i32, %c0_i32_0 : i32, i32, i32
  }
  func.func @transform_1(%arg0: i32) -> (i32, i32, i32) {
    %c0_i32 = arith.constant 0 : i32
    %c0_i32_0 = arith.constant 0 : i32
    %c0_i32_1 = arith.constant 0 : i32
    return %arg0, %c0_i32, %c0_i32_0 : i32, i32, i32
  }
  func.func @transform_2(%arg0: i32) -> (i32, i32, i32) {
    %c0_i32 = arith.constant 0 : i32
    %c0_i32_0 = arith.constant 0 : i32
    %c0_i32_1 = arith.constant 0 : i32
    return %arg0, %c0_i32, %c0_i32_0 : i32, i32, i32
  }
  func.func @transform_3(%arg0: i32) -> (i32, i32, i32) {
    %c0_i32 = arith.constant 0 : i32
    %c0_i32_0 = arith.constant 0 : i32
    %c0_i32_1 = arith.constant 0 : i32
    return %arg0, %c0_i32, %c0_i32_0 : i32, i32, i32
  }
  func.func @transform_4(%arg0: i32) -> (i32, i32) {
    %c0_i32 = arith.constant 0 : i32
    %c0_i32_0 = arith.constant 0 : i32
    %c0_i32_1 = arith.constant 0 : i32
    return %c0_i32, %c0_i32_0 : i32, i32
  }
  func.func @transform_5(%arg0: i32) -> (i32, i32) {
    %c0_i32 = arith.constant 0 : i32
    %c0_i32_0 = arith.constant 0 : i32
    %c0_i32_1 = arith.constant 0 : i32
    return %c0_i32, %c0_i32_0 : i32, i32
  }
  func.func @transform_6(%arg0: i32) -> (i32, i32) {
    %c0_i32 = arith.constant 0 : i32
    %c0_i32_0 = arith.constant 0 : i32
    %c0_i32_1 = arith.constant 0 : i32
    return %c0_i32, %c0_i32_0 : i32, i32
  }
  func.func @transform_7(%arg0: i32) -> (i32, i32) {
    %c0_i32 = arith.constant 0 : i32
    %c0_i32_0 = arith.constant 0 : i32
    %c0_i32_1 = arith.constant 0 : i32
    return %c0_i32, %c0_i32_0 : i32, i32
  }
  func.func @transform_8(%arg0: i32) -> (i32, i32) {
    %c0_i32 = arith.constant 0 : i32
    %c0_i32_0 = arith.constant 0 : i32
    %c0_i32_1 = arith.constant 0 : i32
    return %c0_i32, %c0_i32_0 : i32, i32
  }
  func.func @transform_9(%arg0: i32) -> (i32, i32) {
    %c0_i32 = arith.constant 0 : i32
    %c0_i32_0 = arith.constant 0 : i32
    %c0_i32_1 = arith.constant 0 : i32
    return %c0_i32, %c0_i32_0 : i32, i32
  }
  func.func @transform_10(%arg0: i32) -> (i32, i32) {
    %c0_i32 = arith.constant 0 : i32
    %c0_i32_0 = arith.constant 0 : i32
    %c0_i32_1 = arith.constant 0 : i32
    return %c0_i32, %c0_i32_0 : i32, i32
  }
  func.func @transform_11(%arg0: i32) -> (i32, i32) {
    %c0_i32 = arith.constant 0 : i32
    %c0_i32_0 = arith.constant 0 : i32
    %c0_i32_1 = arith.constant 0 : i32
    return %c0_i32, %c0_i32_0 : i32, i32
  }
  func.func @transform_12(%arg0: i32) -> (i32, i32) {
    %c0_i32 = arith.constant 0 : i32
    %c0_i32_0 = arith.constant 0 : i32
    %c0_i32_1 = arith.constant 0 : i32
    return %c0_i32, %c0_i32_0 : i32, i32
  }
  func.func @transform_13(%arg0: i32) -> (i32, i32) {
    %c0_i32 = arith.constant 0 : i32
    %c0_i32_0 = arith.constant 0 : i32
    %c0_i32_1 = arith.constant 0 : i32
    return %c0_i32, %c0_i32_0 : i32, i32
  }
  func.func @transform_14(%arg0: i32) -> (i32, i32) {
    %c0_i32 = arith.constant 0 : i32
    %c0_i32_0 = arith.constant 0 : i32
    %c0_i32_1 = arith.constant 0 : i32
    return %c0_i32, %c0_i32_0 : i32, i32
  }
  func.func @transform_15(%arg0: i32) -> (i32, i32) {
    %c0_i32 = arith.constant 0 : i32
    %c0_i32_0 = arith.constant 0 : i32
    %c0_i32_1 = arith.constant 0 : i32
    return %c0_i32, %c0_i32_0 : i32, i32
  }
  func.func @transform_16(%arg0: i32) -> (i32, i32) {
    %c0_i32 = arith.constant 0 : i32
    %c0_i32_0 = arith.constant 0 : i32
    %c0_i32_1 = arith.constant 0 : i32
    return %c0_i32, %c0_i32_0 : i32, i32
  }
  func.func @transform_17(%arg0: i32) -> (i32, i32) {
    %c0_i32 = arith.constant 0 : i32
    %c0_i32_0 = arith.constant 0 : i32
    %c0_i32_1 = arith.constant 0 : i32
    return %c0_i32, %c0_i32_0 : i32, i32
  }
  func.func @transform_18(%arg0: i32) -> (i32, i32) {
    %c0_i32 = arith.constant 0 : i32
    %c0_i32_0 = arith.constant 0 : i32
    %c0_i32_1 = arith.constant 0 : i32
    return %c0_i32, %c0_i32_0 : i32, i32
  }
  func.func @transform_19(%arg0: i32) -> (i32, i32) {
    %c0_i32 = arith.constant 0 : i32
    %c0_i32_0 = arith.constant 0 : i32
    %c0_i32_1 = arith.constant 0 : i32
    return %c0_i32, %c0_i32_0 : i32, i32
  }
  func.func @transform_20(%arg0: i32) -> (i32, i32) {
    %c0_i32 = arith.constant 0 : i32
    %c0_i32_0 = arith.constant 0 : i32
    %c0_i32_1 = arith.constant 0 : i32
    return %c0_i32, %c0_i32_0 : i32, i32
  }
  func.func @transform_21(%arg0: i32) -> (i32, i32) {
    %c0_i32 = arith.constant 0 : i32
    %c0_i32_0 = arith.constant 0 : i32
    %c0_i32_1 = arith.constant 0 : i32
    return %c0_i32, %c0_i32_0 : i32, i32
  }
  func.func @transform_22(%arg0: i32) -> (i32, i32) {
    %c0_i32 = arith.constant 0 : i32
    %c0_i32_0 = arith.constant 0 : i32
    %c0_i32_1 = arith.constant 0 : i32
    return %c0_i32, %c0_i32_0 : i32, i32
  }
  func.func @transform_23(%arg0: i32) -> (i32, i32) {
    %c0_i32 = arith.constant 0 : i32
    %c0_i32_0 = arith.constant 0 : i32
    %c0_i32_1 = arith.constant 0 : i32
    return %c0_i32, %c0_i32_0 : i32, i32
  }
  func.func @transform_24(%arg0: i32) -> (i32, i32) {
    %c0_i32 = arith.constant 0 : i32
    %c0_i32_0 = arith.constant 0 : i32
    %c0_i32_1 = arith.constant 0 : i32
    return %c0_i32, %c0_i32_0 : i32, i32
  }
  func.func @transform_25(%arg0: i32) -> (i32, i32, i32) {
    %c0_i32 = arith.constant 0 : i32
    %c0_i32_0 = arith.constant 0 : i32
    %c0_i32_1 = arith.constant 0 : i32
    return %arg0, %c0_i32, %c0_i32_0 : i32, i32, i32
  }
}

</mosaic_0001>

<llo_original>
// kernel: tpu_custom_call.1
$region0: #{tpu_custom_call.1}
  #allocation0 [shape = 'u32[]', space=smem, size = 0x4, offset = 0x4, fixed_abs, tag = 'smem constant byte address 0x4 - core index']
  #allocation1 [shape = 'u32[144,128]{1,0:T(1,128)}', space=vmem, size = 0x12000, scoped, tag = 'internal scratch']
  %s0 = inlined_call_operand.vmem [shape: f32[2,8,32], index: 0, kind: input, shape index: {}]
  %s1 = inlined_call_operand.vmem [shape: f32[2,16,32], index: 1, kind: input, shape index: {}]
  %s2 = inlined_call_operand.vmem [shape: f32[2,8,32], index: 2, kind: input, shape index: {}]
  %s3 = inlined_call_operand.vmem [shape: f32[2,16,32], index: 3, kind: input, shape index: {}]
  %s4 = inlined_call_operand.vmem [shape: bf16[32,512], index: 4, kind: input, shape index: {}]
  %s5 = inlined_call_operand.vmem [shape: bf16[32,256], index: 5, kind: input, shape index: {}]
  %s6 = inlined_call_operand.vmem [shape: bf16[256,32], index: 6, kind: input, shape index: {}]
  %s7 = inlined_call_operand.vmem [shape: f32[1,32], index: 7, kind: input, shape index: {}]
  %s8 = inlined_call_operand.vmem [shape: f32[1,32], index: 8, kind: input, shape index: {}]
  %s9 = inlined_call_operand.vmem [shape: f32[1,32], index: 9, kind: input, shape index: {}]
  %s10 = inlined_call_operand.vmem [shape: f32[1,32], index: 10, kind: input, shape index: {}]
  %s11 = inlined_call_operand.vmem [shape: bf16[32,256], index: 11, kind: input, shape index: {}]
  %s12 = inlined_call_operand.vmem [shape: bf16[32,256], index: 12, kind: input, shape index: {}]
  %s13 = inlined_call_operand.vmem [shape: bf16[32,256], index: 13, kind: input, shape index: {}]
  %s14 = inlined_call_operand.vmem [shape: bf16[256,32], index: 14, kind: input, shape index: {}]
  %s15 = inlined_call_operand.vmem [shape: f32[1,32], index: 15, kind: input, shape index: {}]
  %s16 = inlined_call_operand.vmem [shape: f32[1,32], index: 16, kind: input, shape index: {}]
  %s17 = inlined_call_operand.vmem [shape: f32[1,32], index: 17, kind: input, shape index: {}]
  %s18 = inlined_call_operand.vmem [shape: f32[1,32], index: 18, kind: input, shape index: {}]
  %s19 = inlined_call_operand.vmem [shape: bf16[32,64], index: 19, kind: input, shape index: {}]
  %s20 = inlined_call_operand.vmem [shape: f32[1,64], index: 20, kind: input, shape index: {}]
  %s21 = inlined_call_operand.vmem [shape: bf16[64,32], index: 21, kind: input, shape index: {}]
  %s22 = inlined_call_operand.vmem [shape: f32[1,32], index: 22, kind: input, shape index: {}]
  %s23 = inlined_call_operand.vmem [shape: f32[1,32], index: 23, kind: input, shape index: {}]
  %s24 = inlined_call_operand.vmem [shape: f32[1,32], index: 24, kind: input, shape index: {}]
  %s25 = inlined_call_operand.hbm [shape: f32[2,8,32], index: 25, kind: output, shape index: {}]
  %s26 = sld [smem:[#allocation0]]
  $region133: #{tpu_custom_call.1} parent=0
    _
  %s28 = ssub.s32 1, %s26
  %s29 = scalar_select 0, %s28, %s26
  $region1: #{tpu_custom_call.1} parent=0
    #allocation2 [shape = 'u8[8192]{0}', space=vmem, size = 0x2000, scoped, tag = 'output window, operand 0']
    #allocation3 [shape = 's32[2]{0}', space=sflag, size = 0x8, scoped, tag = 'scoped memory for tpu_custom_call.1']
    %30 = vsyncpa [#allocation3], 0
    %s31 = scalar_lea.sflag [#allocation3], 1
    %32 = vsyncpa %s31, 0
    loop: start=0, step=1, limit=4
    $region2: #{tpu_custom_call.1} parent=1 // loop_pre_header
      _
    $region3: #{tpu_custom_call.1} parent=1 // loop_header
      %s34 = sphi 0, %s38
      %p35 = scmp.ge.s32.totalorder %s34, 4
      %s44 = sphi 0, %s46
      %s47 = sphi 0, %s44
      %s48 = sphi 0, %s47
      %s64 = sphi 0, %s48
      %s70 = sphi 0, %s72
      %s73 = sphi 0, %s70
      %s74 = sphi 0, %s73
      %s90 = sphi 0, %s74
      %s96 = sphi 0, %s98
      %s99 = sphi 0, %s96
      %s100 = sphi 0, %s99
      %s116 = sphi 0, %s100
      %s122 = sphi 0, %s124
      %s125 = sphi 0, %s122
      %s126 = sphi 0, %s125
      %s142 = sphi 0, %s126
      %s146 = sphi 0, %s146
      %s148 = sphi 0, %s146
      %s149 = sphi 0, %s148
      %s163 = sphi 0, %s149
      %s167 = sphi 0, %s167
      %s169 = sphi 0, %s167
      %s170 = sphi 0, %s169
      %s184 = sphi 0, %s170
      %s188 = sphi 0, %s188
      %s190 = sphi 0, %s188
      %s191 = sphi 0, %s190
      %s205 = sphi 0, %s191
      %s209 = sphi 0, %s209
      %s211 = sphi 0, %s209
      %s212 = sphi 0, %s211
      %s226 = sphi 0, %s212
      %s230 = sphi 0, %s230
      %s232 = sphi 0, %s230
      %s233 = sphi 0, %s232
      %s247 = sphi 0, %s233
      %s251 = sphi 0, %s251
      %s253 = sphi 0, %s251
      %s254 = sphi 0, %s253
      %s268 = sphi 0, %s254
      %s272 = sphi 0, %s272
      %s274 = sphi 0, %s272
      %s275 = sphi 0, %s274
      %s289 = sphi 0, %s275
      %s293 = sphi 0, %s293
      %s295 = sphi 0, %s293
      %s296 = sphi 0, %s295
      %s310 = sphi 0, %s296
      %s314 = sphi 0, %s314
      %s316 = sphi 0, %s314
      %s317 = sphi 0, %s316
      %s331 = sphi 0, %s317
      %s335 = sphi 0, %s335
      %s337 = sphi 0, %s335
      %s338 = sphi 0, %s337
      %s352 = sphi 0, %s338
      %s356 = sphi 0, %s356
      %s358 = sphi 0, %s356
      %s359 = sphi 0, %s358
      %s373 = sphi 0, %s359
      %s377 = sphi 0, %s377
      %s379 = sphi 0, %s377
      %s380 = sphi 0, %s379
      %s394 = sphi 0, %s380
      %s398 = sphi 0, %s398
      %s400 = sphi 0, %s398
      %s401 = sphi 0, %s400
      %s415 = sphi 0, %s401
      %s419 = sphi 0, %s419
      %s421 = sphi 0, %s419
      %s422 = sphi 0, %s421
      %s436 = sphi 0, %s422
      %s440 = sphi 0, %s440
      %s442 = sphi 0, %s440
      %s443 = sphi 0, %s442
      %s457 = sphi 0, %s443
      %s461 = sphi 0, %s461
      %s463 = sphi 0, %s461
      %s464 = sphi 0, %s463
      %s478 = sphi 0, %s464
      %s482 = sphi 0, %s482
      %s484 = sphi 0, %s482
      %s485 = sphi 0, %s484
      %s499 = sphi 0, %s485
      %s503 = sphi 0, %s503
      %s505 = sphi 0, %s503
      %s506 = sphi 0, %s505
      %s520 = sphi 0, %s506
      %s524 = sphi 0, %s524
      %s526 = sphi 0, %s524
      %s527 = sphi 0, %s526
      %s541 = sphi 0, %s527
      %s545 = sphi 0, %s545
      %s547 = sphi 0, %s545
      %s548 = sphi 0, %s547
      %s562 = sphi 0, %s548
      %s566 = sphi 0, %s566
      %s568 = sphi 0, %s566
      %s569 = sphi 0, %s568
      %s583 = sphi 0, %s569
      %s589 = sphi 0, %s591
      %s592 = sphi 0, %s589
      %s593 = sphi 0, %s592
      %s609 = sphi 0, %s593
    $region4: #{tpu_custom_call.1} parent=1 // loop_header_branch
      %37 = sbr.rel (%p35) target = $region8
    $region5: #{tpu_custom_call.1} parent=1 // loop_body
      %s39 = ssub.s32 %s34, 1
      %s40 = ssub.s32 %s34, 2
      %s41 = sadd.s32 %s34, 1
      %s42 = ssub.s32 %s34, %s41
      %p43 = scmp.eq.s32.totalorder %s42, 0
      %s45 = sadd.s32 %s44, 1
      %s46 = scalar_select %p43, %s44, %s45
      %p49 = pneg %p43
      %p50 = scmp.eq.s32.totalorder %s34, 1
      %p51 = por %p49, %p50
      %p52 = scmp.ne.s32.totalorder %s44, %s47
      %p53 = scmp.eq.s32.totalorder %s34, 0
      %p54 = por %p52, %p53
      %p55 = scmp.ne.s32.totalorder %s44, %s47
      %p56 = scmp.eq.s32.totalorder %s39, 1
      %p57 = por %p55, %p56
      %p58 = scmp.ne.s32.totalorder %s47, %s48
      %p59 = scmp.eq.s32.totalorder %s39, 0
      %p60 = por %p58, %p59
      %p61 = scmp.ne.s32.totalorder %s47, %s48
      %p62 = scmp.eq.s32.totalorder %s40, 1
      %p63 = por %p61, %p62
      %p65 = scmp.ne.s32.totalorder %s48, %s64
      %p66 = scmp.eq.s32.totalorder %s40, 0
      %p67 = por %p65, %p66
      %s68 = ssub.s32 %s34, %s41
      %p69 = scmp.eq.s32.totalorder %s68, 0
      %s71 = sadd.s32 %s70, 1
      %s72 = scalar_select %p69, %s70, %s71
      %p75 = pneg %p69
      %p76 = scmp.eq.s32.totalorder %s34, 1
      %p77 = por %p75, %p76
      %p78 = scmp.ne.s32.totalorder %s70, %s73
      %p79 = scmp.eq.s32.totalorder %s34, 0
      %p80 = por %p78, %p79
      %p81 = scmp.ne.s32.totalorder %s70, %s73
      %p82 = scmp.eq.s32.totalorder %s39, 1
      %p83 = por %p81, %p82
      %p84 = scmp.ne.s32.totalorder %s73, %s74
      %p85 = scmp.eq.s32.totalorder %s39, 0
      %p86 = por %p84, %p85
      %p87 = scmp.ne.s32.totalorder %s73, %s74
      %p88 = scmp.eq.s32.totalorder %s40, 1
      %p89 = por %p87, %p88
      %p91 = scmp.ne.s32.totalorder %s74, %s90
      %p92 = scmp.eq.s32.totalorder %s40, 0
      %p93 = por %p91, %p92
      %s94 = ssub.s32 %s34, %s41
      %p95 = scmp.eq.s32.totalorder %s94, 0
      %s97 = sadd.s32 %s96, 1
      %s98 = scalar_select %p95, %s96, %s97
      %p101 = pneg %p95
      %p102 = scmp.eq.s32.totalorder %s34, 1
      %p103 = por %p101, %p102
      %p104 = scmp.ne.s32.totalorder %s96, %s99
      %p105 = scmp.eq.s32.totalorder %s34, 0
      %p106 = por %p104, %p105
      %p107 = scmp.ne.s32.totalorder %s96, %s99
      %p108 = scmp.eq.s32.totalorder %s39, 1
      %p109 = por %p107, %p108
      %p110 = scmp.ne.s32.totalorder %s99, %s100
      %p111 = scmp.eq.s32.totalorder %s39, 0
      %p112 = por %p110, %p111
      %p113 = scmp.ne.s32.totalorder %s99, %s100
      %p114 = scmp.eq.s32.totalorder %s40, 1
      %p115 = por %p113, %p114
      %p117 = scmp.ne.s32.totalorder %s100, %s116
      %p118 = scmp.eq.s32.totalorder %s40, 0
      %p119 = por %p117, %p118
      %s120 = ssub.s32 %s34, %s41
      %p121 = scmp.eq.s32.totalorder %s120, 0
      %s123 = sadd.s32 %s122, 1
      %s124 = scalar_select %p121, %s122, %s123
      %p127 = pneg %p121
      %p128 = scmp.eq.s32.totalorder %s34, 1
      %p129 = por %p127, %p128
      %p130 = scmp.ne.s32.totalorder %s122, %s125
      %p131 = scmp.eq.s32.totalorder %s34, 0
      %p132 = por %p130, %p131
      %p133 = scmp.ne.s32.totalorder %s122, %s125
      %p134 = scmp.eq.s32.totalorder %s39, 1
      %p135 = por %p133, %p134
      %p136 = scmp.ne.s32.totalorder %s125, %s126
      %p137 = scmp.eq.s32.totalorder %s39, 0
      %p138 = por %p136, %p137
      %p139 = scmp.ne.s32.totalorder %s125, %s126
      %p140 = scmp.eq.s32.totalorder %s40, 1
      %p141 = por %p139, %p140
      %p143 = scmp.ne.s32.totalorder %s126, %s142
      %p144 = scmp.eq.s32.totalorder %s40, 0
      %p145 = por %p143, %p144
      %s147 = sadd.s32 %s146, 1
      %p150 = scmp.eq.s32.totalorder %s34, 1
      %p151 = scmp.ne.s32.totalorder %s146, %s148
      %p152 = scmp.eq.s32.totalorder %s34, 0
      %p153 = por %p151, %p152
      %p154 = scmp.ne.s32.totalorder %s146, %s148
      %p155 = scmp.eq.s32.totalorder %s39, 1
      %p156 = por %p154, %p155
      %p157 = scmp.ne.s32.totalorder %s148, %s149
      %p158 = scmp.eq.s32.totalorder %s39, 0
      %p159 = por %p157, %p158
      %p160 = scmp.ne.s32.totalorder %s148, %s149
      %p161 = scmp.eq.s32.totalorder %s40, 1
      %p162 = por %p160, %p161
      %p164 = scmp.ne.s32.totalorder %s149, %s163
      %p165 = scmp.eq.s32.totalorder %s40, 0
      %p166 = por %p164, %p165
      %s168 = sadd.s32 %s167, 1
      %p171 = scmp.eq.s32.totalorder %s34, 1
      %p172 = scmp.ne.s32.totalorder %s167, %s169
      %p173 = scmp.eq.s32.totalorder %s34, 0
      %p174 = por %p172, %p173
      %p175 = scmp.ne.s32.totalorder %s167, %s169
      %p176 = scmp.eq.s32.totalorder %s39, 1
      %p177 = por %p175, %p176
      %p178 = scmp.ne.s32.totalorder %s169, %s170
      %p179 = scmp.eq.s32.totalorder %s39, 0
      %p180 = por %p178, %p179
      %p181 = scmp.ne.s32.totalorder %s169, %s170
      %p182 = scmp.eq.s32.totalorder %s40, 1
      %p183 = por %p181, %p182
      %p185 = scmp.ne.s32.totalorder %s170, %s184
      %p186 = scmp.eq.s32.totalorder %s40, 0
      %p187 = por %p185, %p186
      %s189 = sadd.s32 %s188, 1
      %p192 = scmp.eq.s32.totalorder %s34, 1
      %p193 = scmp.ne.s32.totalorder %s188, %s190
      %p194 = scmp.eq.s32.totalorder %s34, 0
      %p195 = por %p193, %p194
      %p196 = scmp.ne.s32.totalorder %s188, %s190
      %p197 = scmp.eq.s32.totalorder %s39, 1
      %p198 = por %p196, %p197
      %p199 = scmp.ne.s32.totalorder %s190, %s191
      %p200 = scmp.eq.s32.totalorder %s39, 0
      %p201 = por %p199, %p200
      %p202 = scmp.ne.s32.totalorder %s190, %s191
      %p203 = scmp.eq.s32.totalorder %s40, 1
      %p204 = por %p202, %p203
      %p206 = scmp.ne.s32.totalorder %s191, %s205
      %p207 = scmp.eq.s32.totalorder %s40, 0
      %p208 = por %p206, %p207
      %s210 = sadd.s32 %s209, 1
      %p213 = scmp.eq.s32.totalorder %s34, 1
      %p214 = scmp.ne.s32.totalorder %s209, %s211
      %p215 = scmp.eq.s32.totalorder %s34, 0
      %p216 = por %p214, %p215
      %p217 = scmp.ne.s32.totalorder %s209, %s211
      %p218 = scmp.eq.s32.totalorder %s39, 1
      %p219 = por %p217, %p218
      %p220 = scmp.ne.s32.totalorder %s211, %s212
      %p221 = scmp.eq.s32.totalorder %s39, 0
      %p222 = por %p220, %p221
      %p223 = scmp.ne.s32.totalorder %s211, %s212
      %p224 = scmp.eq.s32.totalorder %s40, 1
      %p225 = por %p223, %p224
      %p227 = scmp.ne.s32.totalorder %s212, %s226
      %p228 = scmp.eq.s32.totalorder %s40, 0
      %p229 = por %p227, %p228
      %s231 = sadd.s32 %s230, 1
      %p234 = scmp.eq.s32.totalorder %s34, 1
      %p235 = scmp.ne.s32.totalorder %s230, %s232
      %p236 = scmp.eq.s32.totalorder %s34, 0
      %p237 = por %p235, %p236
      %p238 = scmp.ne.s32.totalorder %s230, %s232
      %p239 = scmp.eq.s32.totalorder %s39, 1
      %p240 = por %p238, %p239
      %p241 = scmp.ne.s32.totalorder %s232, %s233
      %p242 = scmp.eq.s32.totalorder %s39, 0
      %p243 = por %p241, %p242
      %p244 = scmp.ne.s32.totalorder %s232, %s233
      %p245 = scmp.eq.s32.totalorder %s40, 1
      %p246 = por %p244, %p245
      %p248 = scmp.ne.s32.totalorder %s233, %s247
      %p249 = scmp.eq.s32.totalorder %s40, 0
      %p250 = por %p248, %p249
      %s252 = sadd.s32 %s251, 1
      %p255 = scmp.eq.s32.totalorder %s34, 1
      %p256 = scmp.ne.s32.totalorder %s251, %s253
      %p257 = scmp.eq.s32.totalorder %s34, 0
      %p258 = por %p256, %p257
      %p259 = scmp.ne.s32.totalorder %s251, %s253
      %p260 = scmp.eq.s32.totalorder %s39, 1
      %p261 = por %p259, %p260
      %p262 = scmp.ne.s32.totalorder %s253, %s254
      %p263 = scmp.eq.s32.totalorder %s39, 0
      %p264 = por %p262, %p263
      %p265 = scmp.ne.s32.totalorder %s253, %s254
      %p266 = scmp.eq.s32.totalorder %s40, 1
      %p267 = por %p265, %p266
      %p269 = scmp.ne.s32.totalorder %s254, %s268
      %p270 = scmp.eq.s32.totalorder %s40, 0
      %p271 = por %p269, %p270
      %s273 = sadd.s32 %s272, 1
      %p276 = scmp.eq.s32.totalorder %s34, 1
      %p277 = scmp.ne.s32.totalorder %s272, %s274
      %p278 = scmp.eq.s32.totalorder %s34, 0
      %p279 = por %p277, %p278
      %p280 = scmp.ne.s32.totalorder %s272, %s274
      %p281 = scmp.eq.s32.totalorder %s39, 1
      %p282 = por %p280, %p281
      %p283 = scmp.ne.s32.totalorder %s274, %s275
      %p284 = scmp.eq.s32.totalorder %s39, 0
      %p285 = por %p283, %p284
      %p286 = scmp.ne.s32.totalorder %s274, %s275
      %p287 = scmp.eq.s32.totalorder %s40, 1
      %p288 = por %p286, %p287
      %p290 = scmp.ne.s32.totalorder %s275, %s289
      %p291 = scmp.eq.s32.totalorder %s40, 0
      %p292 = por %p290, %p291
      %s294 = sadd.s32 %s293, 1
      %p297 = scmp.eq.s32.totalorder %s34, 1
      %p298 = scmp.ne.s32.totalorder %s293, %s295
      %p299 = scmp.eq.s32.totalorder %s34, 0
      %p300 = por %p298, %p299
      %p301 = scmp.ne.s32.totalorder %s293, %s295
      %p302 = scmp.eq.s32.totalorder %s39, 1
      %p303 = por %p301, %p302
      %p304 = scmp.ne.s32.totalorder %s295, %s296
      %p305 = scmp.eq.s32.totalorder %s39, 0
      %p306 = por %p304, %p305
      %p307 = scmp.ne.s32.totalorder %s295, %s296
      %p308 = scmp.eq.s32.totalorder %s40, 1
      %p309 = por %p307, %p308
      %p311 = scmp.ne.s32.totalorder %s296, %s310
      %p312 = scmp.eq.s32.totalorder %s40, 0
      %p313 = por %p311, %p312
      %s315 = sadd.s32 %s314, 1
      %p318 = scmp.eq.s32.totalorder %s34, 1
      %p319 = scmp.ne.s32.totalorder %s314, %s316
      %p320 = scmp.eq.s32.totalorder %s34, 0
      %p321 = por %p319, %p320
      %p322 = scmp.ne.s32.totalorder %s314, %s316
      %p323 = scmp.eq.s32.totalorder %s39, 1
      %p324 = por %p322, %p323
      %p325 = scmp.ne.s32.totalorder %s316, %s317
      %p326 = scmp.eq.s32.totalorder %s39, 0
      %p327 = por %p325, %p326
      %p328 = scmp.ne.s32.totalorder %s316, %s317
      %p329 = scmp.eq.s32.totalorder %s40, 1
      %p330 = por %p328, %p329
      %p332 = scmp.ne.s32.totalorder %s317, %s331
      %p333 = scmp.eq.s32.totalorder %s40, 0
      %p334 = por %p332, %p333
      %s336 = sadd.s32 %s335, 1
      %p339 = scmp.eq.s32.totalorder %s34, 1
      %p340 = scmp.ne.s32.totalorder %s335, %s337
      %p341 = scmp.eq.s32.totalorder %s34, 0
      %p342 = por %p340, %p341
      %p343 = scmp.ne.s32.totalorder %s335, %s337
      %p344 = scmp.eq.s32.totalorder %s39, 1
      %p345 = por %p343, %p344
      %p346 = scmp.ne.s32.totalorder %s337, %s338
      %p347 = scmp.eq.s32.totalorder %s39, 0
      %p348 = por %p346, %p347
      %p349 = scmp.ne.s32.totalorder %s337, %s338
      %p350 = scmp.eq.s32.totalorder %s40, 1
      %p351 = por %p349, %p350
      %p353 = scmp.ne.s32.totalorder %s338, %s352
      %p354 = scmp.eq.s32.totalorder %s40, 0
      %p355 = por %p353, %p354
      %s357 = sadd.s32 %s356, 1
      %p360 = scmp.eq.s32.totalorder %s34, 1
      %p361 = scmp.ne.s32.totalorder %s356, %s358
      %p362 = scmp.eq.s32.totalorder %s34, 0
      %p363 = por %p361, %p362
      %p364 = scmp.ne.s32.totalorder %s356, %s358
      %p365 = scmp.eq.s32.totalorder %s39, 1
      %p366 = por %p364, %p365
      %p367 = scmp.ne.s32.totalorder %s358, %s359
      %p368 = scmp.eq.s32.totalorder %s39, 0
      %p369 = por %p367, %p368
      %p370 = scmp.ne.s32.totalorder %s358, %s359
      %p371 = scmp.eq.s32.totalorder %s40, 1
      %p372 = por %p370, %p371
      %p374 = scmp.ne.s32.totalorder %s359, %s373
      %p375 = scmp.eq.s32.totalorder %s40, 0
      %p376 = por %p374, %p375
      %s378 = sadd.s32 %s377, 1
      %p381 = scmp.eq.s32.totalorder %s34, 1
      %p382 = scmp.ne.s32.totalorder %s377, %s379
      %p383 = scmp.eq.s32.totalorder %s34, 0
      %p384 = por %p382, %p383
      %p385 = scmp.ne.s32.totalorder %s377, %s379
      %p386 = scmp.eq.s32.totalorder %s39, 1
      %p387 = por %p385, %p386
      %p388 = scmp.ne.s32.totalorder %s379, %s380
      %p389 = scmp.eq.s32.totalorder %s39, 0
      %p390 = por %p388, %p389
      %p391 = scmp.ne.s32.totalorder %s379, %s380
      %p392 = scmp.eq.s32.totalorder %s40, 1
      %p393 = por %p391, %p392
      %p395 = scmp.ne.s32.totalorder %s380, %s394
      %p396 = scmp.eq.s32.totalorder %s40, 0
      %p397 = por %p395, %p396
      %s399 = sadd.s32 %s398, 1
      %p402 = scmp.eq.s32.totalorder %s34, 1
      %p403 = scmp.ne.s32.totalorder %s398, %s400
      %p404 = scmp.eq.s32.totalorder %s34, 0
      %p405 = por %p403, %p404
      %p406 = scmp.ne.s32.totalorder %s398, %s400
      %p407 = scmp.eq.s32.totalorder %s39, 1
      %p408 = por %p406, %p407
      %p409 = scmp.ne.s32.totalorder %s400, %s401
      %p410 = scmp.eq.s32.totalorder %s39, 0
      %p411 = por %p409, %p410
      %p412 = scmp.ne.s32.totalorder %s400, %s401
      %p413 = scmp.eq.s32.totalorder %s40, 1
      %p414 = por %p412, %p413
      %p416 = scmp.ne.s32.totalorder %s401, %s415
      %p417 = scmp.eq.s32.totalorder %s40, 0
      %p418 = por %p416, %p417
      %s420 = sadd.s32 %s419, 1
      %p423 = scmp.eq.s32.totalorder %s34, 1
      %p424 = scmp.ne.s32.totalorder %s419, %s421
      %p425 = scmp.eq.s32.totalorder %s34, 0
      %p426 = por %p424, %p425
      %p427 = scmp.ne.s32.totalorder %s419, %s421
      %p428 = scmp.eq.s32.totalorder %s39, 1
      %p429 = por %p427, %p428
      %p430 = scmp.ne.s32.totalorder %s421, %s422
      %p431 = scmp.eq.s32.totalorder %s39, 0
      %p432 = por %p430, %p431
      %p433 = scmp.ne.s32.totalorder %s421, %s422
      %p434 = scmp.eq.s32.totalorder %s40, 1
      %p435 = por %p433, %p434
      %p437 = scmp.ne.s32.totalorder %s422, %s436
      %p438 = scmp.eq.s32.totalorder %s40, 0
      %p439 = por %p437, %p438
      %s441 = sadd.s32 %s440, 1
      %p444 = scmp.eq.s32.totalorder %s34, 1
      %p445 = scmp.ne.s32.totalorder %s440, %s442
      %p446 = scmp.eq.s32.totalorder %s34, 0
      %p447 = por %p445, %p446
      %p448 = scmp.ne.s32.totalorder %s440, %s442
      %p449 = scmp.eq.s32.totalorder %s39, 1
      %p450 = por %p448, %p449
      %p451 = scmp.ne.s32.totalorder %s442, %s443
      %p452 = scmp.eq.s32.totalorder %s39, 0
      %p453 = por %p451, %p452
      %p454 = scmp.ne.s32.totalorder %s442, %s443
      %p455 = scmp.eq.s32.totalorder %s40, 1
      %p456 = por %p454, %p455
      %p458 = scmp.ne.s32.totalorder %s443, %s457
      %p459 = scmp.eq.s32.totalorder %s40, 0
      %p460 = por %p458, %p459
      %s462 = sadd.s32 %s461, 1
      %p465 = scmp.eq.s32.totalorder %s34, 1
      %p466 = scmp.ne.s32.totalorder %s461, %s463
      %p467 = scmp.eq.s32.totalorder %s34, 0
      %p468 = por %p466, %p467
      %p469 = scmp.ne.s32.totalorder %s461, %s463
      %p470 = scmp.eq.s32.totalorder %s39, 1
      %p471 = por %p469, %p470
      %p472 = scmp.ne.s32.totalorder %s463, %s464
      %p473 = scmp.eq.s32.totalorder %s39, 0
      %p474 = por %p472, %p473
      %p475 = scmp.ne.s32.totalorder %s463, %s464
      %p476 = scmp.eq.s32.totalorder %s40, 1
      %p477 = por %p475, %p476
      %p479 = scmp.ne.s32.totalorder %s464, %s478
      %p480 = scmp.eq.s32.totalorder %s40, 0
      %p481 = por %p479, %p480
      %s483 = sadd.s32 %s482, 1
      %p486 = scmp.eq.s32.totalorder %s34, 1
      %p487 = scmp.ne.s32.totalorder %s482, %s484
      %p488 = scmp.eq.s32.totalorder %s34, 0
      %p489 = por %p487, %p488
      %p490 = scmp.ne.s32.totalorder %s482, %s484
      %p491 = scmp.eq.s32.totalorder %s39, 1
      %p492 = por %p490, %p491
      %p493 = scmp.ne.s32.totalorder %s484, %s485
      %p494 = scmp.eq.s32.totalorder %s39, 0
      %p495 = por %p493, %p494
      %p496 = scmp.ne.s32.totalorder %s484, %s485
      %p497 = scmp.eq.s32.totalorder %s40, 1
      %p498 = por %p496, %p497
      %p500 = scmp.ne.s32.totalorder %s485, %s499
      %p501 = scmp.eq.s32.totalorder %s40, 0
      %p502 = por %p500, %p501
      %s504 = sadd.s32 %s503, 1
      %p507 = scmp.eq.s32.totalorder %s34, 1
      %p508 = scmp.ne.s32.totalorder %s503, %s505
      %p509 = scmp.eq.s32.totalorder %s34, 0
      %p510 = por %p508, %p509
      %p511 = scmp.ne.s32.totalorder %s503, %s505
      %p512 = scmp.eq.s32.totalorder %s39, 1
      %p513 = por %p511, %p512
      %p514 = scmp.ne.s32.totalorder %s505, %s506
      %p515 = scmp.eq.s32.totalorder %s39, 0
      %p516 = por %p514, %p515
      %p517 = scmp.ne.s32.totalorder %s505, %s506
      %p518 = scmp.eq.s32.totalorder %s40, 1
      %p519 = por %p517, %p518
      %p521 = scmp.ne.s32.totalorder %s506, %s520
      %p522 = scmp.eq.s32.totalorder %s40, 0
      %p523 = por %p521, %p522
      %s525 = sadd.s32 %s524, 1
      %p528 = scmp.eq.s32.totalorder %s34, 1
      %p529 = scmp.ne.s32.totalorder %s524, %s526
      %p530 = scmp.eq.s32.totalorder %s34, 0
      %p531 = por %p529, %p530
      %p532 = scmp.ne.s32.totalorder %s524, %s526
      %p533 = scmp.eq.s32.totalorder %s39, 1
      %p534 = por %p532, %p533
      %p535 = scmp.ne.s32.totalorder %s526, %s527
      %p536 = scmp.eq.s32.totalorder %s39, 0
      %p537 = por %p535, %p536
      %p538 = scmp.ne.s32.totalorder %s526, %s527
      %p539 = scmp.eq.s32.totalorder %s40, 1
      %p540 = por %p538, %p539
      %p542 = scmp.ne.s32.totalorder %s527, %s541
      %p543 = scmp.eq.s32.totalorder %s40, 0
      %p544 = por %p542, %p543
      %s546 = sadd.s32 %s545, 1
      %p549 = scmp.eq.s32.totalorder %s34, 1
      %p550 = scmp.ne.s32.totalorder %s545, %s547
      %p551 = scmp.eq.s32.totalorder %s34, 0
      %p552 = por %p550, %p551
      %p553 = scmp.ne.s32.totalorder %s545, %s547
      %p554 = scmp.eq.s32.totalorder %s39, 1
      %p555 = por %p553, %p554
      %p556 = scmp.ne.s32.totalorder %s547, %s548
      %p557 = scmp.eq.s32.totalorder %s39, 0
      %p558 = por %p556, %p557
      %p559 = scmp.ne.s32.totalorder %s547, %s548
      %p560 = scmp.eq.s32.totalorder %s40, 1
      %p561 = por %p559, %p560
      %p563 = scmp.ne.s32.totalorder %s548, %s562
      %p564 = scmp.eq.s32.totalorder %s40, 0
      %p565 = por %p563, %p564
      %s567 = sadd.s32 %s566, 1
      %p570 = scmp.eq.s32.totalorder %s34, 1
      %p571 = scmp.ne.s32.totalorder %s566, %s568
      %p572 = scmp.eq.s32.totalorder %s34, 0
      %p573 = por %p571, %p572
      %p574 = scmp.ne.s32.totalorder %s566, %s568
      %p575 = scmp.eq.s32.totalorder %s39, 1
      %p576 = por %p574, %p575
      %p577 = scmp.ne.s32.totalorder %s568, %s569
      %p578 = scmp.eq.s32.totalorder %s39, 0
      %p579 = por %p577, %p578
      %p580 = scmp.ne.s32.totalorder %s568, %s569
      %p581 = scmp.eq.s32.totalorder %s40, 1
      %p582 = por %p580, %p581
      %p584 = scmp.ne.s32.totalorder %s569, %s583
      %p585 = scmp.eq.s32.totalorder %s40, 0
      %p586 = por %p584, %p585
      %s587 = ssub.s32 %s34, %s41
      %p588 = scmp.eq.s32.totalorder %s587, 0
      %s590 = sadd.s32 %s589, 1
      %s591 = scalar_select %p588, %s589, %s590
      %p594 = pneg %p588
      %p595 = scmp.eq.s32.totalorder %s34, 1
      %p596 = por %p594, %p595
      %p597 = scmp.ne.s32.totalorder %s589, %s592
      %p598 = scmp.eq.s32.totalorder %s34, 0
      %p599 = por %p597, %p598
      %p600 = scmp.ne.s32.totalorder %s589, %s592
      %p601 = scmp.eq.s32.totalorder %s39, 1
      %p602 = por %p600, %p601
      %p603 = scmp.ne.s32.totalorder %s592, %s593
      %p604 = scmp.eq.s32.totalorder %s39, 0
      %p605 = por %p603, %p604
      %p606 = scmp.ne.s32.totalorder %s592, %s593
      %p607 = scmp.eq.s32.totalorder %s40, 1
      %p608 = por %p606, %p607
      %p610 = scmp.ne.s32.totalorder %s593, %s609
      %p611 = scmp.eq.s32.totalorder %s40, 0
      %p612 = por %p610, %p611
      %p613 = scmp.le.s32.totalorder 1, %s34
      %p614 = scmp.lt.s32.totalorder %s34, 3
      %p615 = pnand %p613, %p614
      %p616 = pneg %p615
      // Predicated region
      $region9: #{tpu_custom_call.1} parent=5 // pred_check
        _
      $region10: #{tpu_custom_call.1} parent=5 // pred_check_branch
        %618 = sbr.rel (%p615) target = $region12
      $region11: #{tpu_custom_call.1} parent=5 // pred_region
        %s619 = ssub.s32 %s34, 1
        // Predicated region
        $region13: #{tpu_custom_call.1} parent=11 // pred_check
          %p620 = pneg %p159
        $region14: #{tpu_custom_call.1} parent=11 // pred_check_branch
          %622 = sbr.rel (%p620) target = $region16
        $region15: #{tpu_custom_call.1} parent=11 // pred_region
          _
        $region16: #{tpu_custom_call.1} parent=11 // pred_fallthru
          _
        // Predicated region
        $region17: #{tpu_custom_call.1} parent=11 // pred_check
          %p623 = pneg %p180
        $region18: #{tpu_custom_call.1} parent=11 // pred_check_branch
          %625 = sbr.rel (%p623) target = $region20
        $region19: #{tpu_custom_call.1} parent=11 // pred_region
          _
        $region20: #{tpu_custom_call.1} parent=11 // pred_fallthru
          _
        // Predicated region
        $region21: #{tpu_custom_call.1} parent=11 // pred_check
          %p626 = pneg %p201
        $region22: #{tpu_custom_call.1} parent=11 // pred_check_branch
          %628 = sbr.rel (%p626) target = $region24
        $region23: #{tpu_custom_call.1} parent=11 // pred_region
          _
        $region24: #{tpu_custom_call.1} parent=11 // pred_fallthru
          _
        // Predicated region
        $region25: #{tpu_custom_call.1} parent=11 // pred_check
          %p629 = pneg %p222
        $region26: #{tpu_custom_call.1} parent=11 // pred_check_branch
          %631 = sbr.rel (%p629) target = $region28
        $region27: #{tpu_custom_call.1} parent=11 // pred_region
          _
        $region28: #{tpu_custom_call.1} parent=11 // pred_fallthru
          _
        // Predicated region
        $region29: #{tpu_custom_call.1} parent=11 // pred_check
          %p632 = pneg %p243
        $region30: #{tpu_custom_call.1} parent=11 // pred_check_branch
          %634 = sbr.rel (%p632) target = $region32
        $region31: #{tpu_custom_call.1} parent=11 // pred_region
          _
        $region32: #{tpu_custom_call.1} parent=11 // pred_fallthru
          _
        // Predicated region
        $region33: #{tpu_custom_call.1} parent=11 // pred_check
          %p635 = pneg %p264
        $region34: #{tpu_custom_call.1} parent=11 // pred_check_branch
          %637 = sbr.rel (%p635) target = $region36
        $region35: #{tpu_custom_call.1} parent=11 // pred_region
          _
        $region36: #{tpu_custom_call.1} parent=11 // pred_fallthru
          _
        // Predicated region
        $region37: #{tpu_custom_call.1} parent=11 // pred_check
          %p638 = pneg %p285
        $region38: #{tpu_custom_call.1} parent=11 // pred_check_branch
          %640 = sbr.rel (%p638) target = $region40
        $region39: #{tpu_custom_call.1} parent=11 // pred_region
          _
        $region40: #{tpu_custom_call.1} parent=11 // pred_fallthru
          _
        // Predicated region
        $region41: #{tpu_custom_call.1} parent=11 // pred_check
          %p641 = pneg %p306
        $region42: #{tpu_custom_call.1} parent=11 // pred_check_branch
          %643 = sbr.rel (%p641) target = $region44
        $region43: #{tpu_custom_call.1} parent=11 // pred_region
          _
        $region44: #{tpu_custom_call.1} parent=11 // pred_fallthru
          _
        // Predicated region
        $region45: #{tpu_custom_call.1} parent=11 // pred_check
          %p644 = pneg %p327
        $region46: #{tpu_custom_call.1} parent=11 // pred_check_branch
          %646 = sbr.rel (%p644) target = $region48
        $region47: #{tpu_custom_call.1} parent=11 // pred_region
          _
        $region48: #{tpu_custom_call.1} parent=11 // pred_fallthru
          _
        // Predicated region
        $region49: #{tpu_custom_call.1} parent=11 // pred_check
          %p647 = pneg %p348
        $region50: #{tpu_custom_call.1} parent=11 // pred_check_branch
          %649 = sbr.rel (%p647) target = $region52
        $region51: #{tpu_custom_call.1} parent=11 // pred_region
          _
        $region52: #{tpu_custom_call.1} parent=11 // pred_fallthru
          _
        // Predicated region
        $region53: #{tpu_custom_call.1} parent=11 // pred_check
          %p650 = pneg %p369
        $region54: #{tpu_custom_call.1} parent=11 // pred_check_branch
          %652 = sbr.rel (%p650) target = $region56
        $region55: #{tpu_custom_call.1} parent=11 // pred_region
          _
        $region56: #{tpu_custom_call.1} parent=11 // pred_fallthru
          _
        // Predicated region
        $region57: #{tpu_custom_call.1} parent=11 // pred_check
          %p653 = pneg %p390
        $region58: #{tpu_custom_call.1} parent=11 // pred_check_branch
          %655 = sbr.rel (%p653) target = $region60
        $region59: #{tpu_custom_call.1} parent=11 // pred_region
          _
        $region60: #{tpu_custom_call.1} parent=11 // pred_fallthru
          _
        // Predicated region
        $region61: #{tpu_custom_call.1} parent=11 // pred_check
          %p656 = pneg %p411
        $region62: #{tpu_custom_call.1} parent=11 // pred_check_branch
          %658 = sbr.rel (%p656) target = $region64
        $region63: #{tpu_custom_call.1} parent=11 // pred_region
          _
        $region64: #{tpu_custom_call.1} parent=11 // pred_fallthru
          _
        // Predicated region
        $region65: #{tpu_custom_call.1} parent=11 // pred_check
          %p659 = pneg %p432
        $region66: #{tpu_custom_call.1} parent=11 // pred_check_branch
          %661 = sbr.rel (%p659) target = $region68
        $region67: #{tpu_custom_call.1} parent=11 // pred_region
          _
        $region68: #{tpu_custom_call.1} parent=11 // pred_fallthru
          _
        // Predicated region
        $region69: #{tpu_custom_call.1} parent=11 // pred_check
          %p662 = pneg %p453
        $region70: #{tpu_custom_call.1} parent=11 // pred_check_branch
          %664 = sbr.rel (%p662) target = $region72
        $region71: #{tpu_custom_call.1} parent=11 // pred_region
          _
        $region72: #{tpu_custom_call.1} parent=11 // pred_fallthru
          _
        // Predicated region
        $region73: #{tpu_custom_call.1} parent=11 // pred_check
          %p665 = pneg %p474
        $region74: #{tpu_custom_call.1} parent=11 // pred_check_branch
          %667 = sbr.rel (%p665) target = $region76
        $region75: #{tpu_custom_call.1} parent=11 // pred_region
          _
        $region76: #{tpu_custom_call.1} parent=11 // pred_fallthru
          _
        // Predicated region
        $region77: #{tpu_custom_call.1} parent=11 // pred_check
          %p668 = pneg %p495
        $region78: #{tpu_custom_call.1} parent=11 // pred_check_branch
          %670 = sbr.rel (%p668) target = $region80
        $region79: #{tpu_custom_call.1} parent=11 // pred_region
          _
        $region80: #{tpu_custom_call.1} parent=11 // pred_fallthru
          _
        // Predicated region
        $region81: #{tpu_custom_call.1} parent=11 // pred_check
          %p671 = pneg %p516
        $region82: #{tpu_custom_call.1} parent=11 // pred_check_branch
          %673 = sbr.rel (%p671) target = $region84
        $region83: #{tpu_custom_call.1} parent=11 // pred_region
          _
        $region84: #{tpu_custom_call.1} parent=11 // pred_fallthru
          _
        // Predicated region
        $region85: #{tpu_custom_call.1} parent=11 // pred_check
          %p674 = pneg %p537
        $region86: #{tpu_custom_call.1} parent=11 // pred_check_branch
          %676 = sbr.rel (%p674) target = $region88
        $region87: #{tpu_custom_call.1} parent=11 // pred_region
          _
        $region88: #{tpu_custom_call.1} parent=11 // pred_fallthru
          _
        // Predicated region
        $region89: #{tpu_custom_call.1} parent=11 // pred_check
          %p677 = pneg %p558
        $region90: #{tpu_custom_call.1} parent=11 // pred_check_branch
          %679 = sbr.rel (%p677) target = $region92
        $region91: #{tpu_custom_call.1} parent=11 // pred_region
          _
        $region92: #{tpu_custom_call.1} parent=11 // pred_fallthru
          _
        // Predicated region
        $region93: #{tpu_custom_call.1} parent=11 // pred_check
          %p680 = pneg %p579
        $region94: #{tpu_custom_call.1} parent=11 // pred_check_branch
          %682 = sbr.rel (%p680) target = $region96
        $region95: #{tpu_custom_call.1} parent=11 // pred_region
          _
        $region96: #{tpu_custom_call.1} parent=11 // pred_fallthru
          _
      $region12: #{tpu_custom_call.1} parent=5 // pred_fallthru
        _
      %p683 = scmp.lt.s32.totalorder %s34, 2
      // Predicated region
      $region97: #{tpu_custom_call.1} parent=5 // pred_check
        %p684 = pneg %p683
      $region98: #{tpu_custom_call.1} parent=5 // pred_check_branch
        %686 = sbr.rel (%p684) target = $region100
      $region99: #{tpu_custom_call.1} parent=5 // pred_region
        // Predicated region
        $region101: #{tpu_custom_call.1} parent=99 // pred_check
          %p687 = pneg %p54
        $region102: #{tpu_custom_call.1} parent=99 // pred_check_branch
          %689 = sbr.rel (%p687) target = $region104
        $region103: #{tpu_custom_call.1} parent=99 // pred_region
          %p690 = scmp.lt.s32.totalorder %s34, 1
          %s691 = scalar_select %p690, %s34, 1
          %s692 = smul.addr %s691, 8
          %s693 = scalar_lea.vmem %s0, %s692
        $region104: #{tpu_custom_call.1} parent=99 // pred_fallthru
          _
        // Predicated region
        $region105: #{tpu_custom_call.1} parent=99 // pred_check
          %p694 = pneg %p80
        $region106: #{tpu_custom_call.1} parent=99 // pred_check_branch
          %696 = sbr.rel (%p694) target = $region108
        $region107: #{tpu_custom_call.1} parent=99 // pred_region
          %p697 = scmp.lt.s32.totalorder %s34, 1
          %s698 = scalar_select %p697, %s34, 1
          %s699 = smul.addr %s698, 2
          %s700 = smul.addr %s699, 8
          %s701 = scalar_lea.vmem %s1, %s700
        $region108: #{tpu_custom_call.1} parent=99 // pred_fallthru
          _
        // Predicated region
        $region109: #{tpu_custom_call.1} parent=99 // pred_check
          %p702 = pneg %p106
        $region110: #{tpu_custom_call.1} parent=99 // pred_check_branch
          %704 = sbr.rel (%p702) target = $region112
        $region111: #{tpu_custom_call.1} parent=99 // pred_region
          %p705 = scmp.lt.s32.totalorder %s34, 1
          %s706 = scalar_select %p705, %s34, 1
          %s707 = smul.addr %s706, 8
          %s708 = scalar_lea.vmem %s2, %s707
        $region112: #{tpu_custom_call.1} parent=99 // pred_fallthru
          _
        // Predicated region
        $region113: #{tpu_custom_call.1} parent=99 // pred_check
          %p709 = pneg %p132
        $region114: #{tpu_custom_call.1} parent=99 // pred_check_branch
          %711 = sbr.rel (%p709) target = $region116
        $region115: #{tpu_custom_call.1} parent=99 // pred_region
          %p712 = scmp.lt.s32.totalorder %s34, 1
          %s713 = scalar_select %p712, %s34, 1
          %s714 = smul.addr %s713, 2
          %s715 = smul.addr %s714, 8
          %s716 = scalar_lea.vmem %s3, %s715
        $region116: #{tpu_custom_call.1} parent=99 // pred_fallthru
          _
      $region100: #{tpu_custom_call.1} parent=5 // pred_fallthru
        _
      %p717 = scmp.le.s32.totalorder 1, %s34
      %p718 = scmp.lt.s32.totalorder %s34, 3
      %p719 = pnand %p717, %p718
      %p720 = pneg %p719
      // Predicated region
      $region117: #{tpu_custom_call.1} parent=5 // pred_check
        _
      $region118: #{tpu_custom_call.1} parent=5 // pred_check_branch
        %722 = sbr.rel (%p719) target = $region120
      $region119: #{tpu_custom_call.1} parent=5 // pred_region
        %s723 = ssub.s32 %s34, 1
        %p724 = scmp.lt.s32.totalorder %s39, 1
        %s725 = scalar_select %p724, %s39, 1
        %s726 = smul.addr %s725, 8
        %s727 = scalar_lea.vmem %s0, %s726
        %p728 = pneg %p60
        %p729 = pneg %p57
        %p730 = scmp.lt.s32.totalorder %s39, 1
        %s731 = scalar_select %p730, %s39, 1
        %s732 = smul.addr %s731, 2
        %s733 = smul.addr %s732, 8
        %s734 = scalar_lea.vmem %s1, %s733
        %p735 = pneg %p86
        %p736 = pneg %p83
        %p737 = scmp.lt.s32.totalorder %s39, 1
        %s738 = scalar_select %p737, %s39, 1
        %s739 = smul.addr %s738, 8
        %s740 = scalar_lea.vmem %s2, %s739
        %p741 = pneg %p112
        %p742 = pneg %p109
        %p743 = scmp.lt.s32.totalorder %s39, 1
        %s744 = scalar_select %p743, %s39, 1
        %s745 = smul.addr %s744, 2
        %s746 = smul.addr %s745, 8
        %s747 = scalar_lea.vmem %s3, %s746
        %p748 = pneg %p138
        %p749 = pneg %p135
        %p750 = pneg %p159
        %p751 = pneg %p156
        %p752 = pneg %p180
        %p753 = pneg %p177
        %p754 = pneg %p201
        %p755 = pneg %p198
        %p756 = pneg %p222
        %p757 = pneg %p219
        %p758 = pneg %p243
        %p759 = pneg %p240
        %p760 = pneg %p264
        %p761 = pneg %p261
        %p762 = pneg %p285
        %p763 = pneg %p282
        %p764 = pneg %p306
        %p765 = pneg %p303
        %p766 = pneg %p327
        %p767 = pneg %p324
        %p768 = pneg %p348
        %p769 = pneg %p345
        %p770 = pneg %p369
        %p771 = pneg %p366
        %p772 = pneg %p390
        %p773 = pneg %p387
        %p774 = pneg %p411
        %p775 = pneg %p408
        %p776 = pneg %p432
        %p777 = pneg %p429
        %p778 = pneg %p453
        %p779 = pneg %p450
        %p780 = pneg %p474
        %p781 = pneg %p471
        %p782 = pneg %p495
        %p783 = pneg %p492
        %p784 = pneg %p516
        %p785 = pneg %p513
        %p786 = pneg %p537
        %p787 = pneg %p534
        %p788 = pneg %p558
        %p789 = pneg %p555
        %p790 = pneg %p579
        %p791 = pneg %p576
        %p792 = pneg %p605
        %p793 = pneg %p602
        %s794 = sand.u32 %s592, 1
        %s795 = scalar_lea.sflag [#allocation3], %s794
        %s796 = sand.u32 %s592, 1
        %s797 = smul.addr %s796, 8
        %s798 = scalar_lea.vmem [#allocation2], %s797
        %p799 = scmp.lt.s32.totalorder %s39, 1
        %s800 = scalar_select %p799, %s39, 1
        %s801 = smul.addr %s800, 8
        %s802 = scalar_lea.vmem %s0, %s801
        %p803 = scmp.lt.s32.totalorder %s39, 1
        %s804 = scalar_select %p803, %s39, 1
        %s805 = smul.addr %s804, 2
        %s806 = smul.addr %s805, 8
        %s807 = scalar_lea.vmem %s1, %s806
        %p808 = scmp.lt.s32.totalorder %s39, 1
        %s809 = scalar_select %p808, %s39, 1
        %s810 = smul.addr %s809, 8
        %s811 = scalar_lea.vmem %s2, %s810
        %p812 = scmp.lt.s32.totalorder %s39, 1
        %s813 = scalar_select %p812, %s39, 1
        %s814 = smul.addr %s813, 2
        %s815 = smul.addr %s814, 8
        %s816 = scalar_lea.vmem %s3, %s815
        %v818 = vld [vmem:[%s4] sm:$0xff]
        %v819 = vld [vmem:[%s4 + $0x8] sm:$0xff]
        %v820 = vld [vmem:[%s4 + $0x10] sm:$0xff]
        %v821 = vld [vmem:[%s4 + $0x18] sm:$0xff]
        %v822 = vld [vmem:[%s4 + $0x20] sm:$0xff]
        %v823 = vld [vmem:[%s4 + $0x28] sm:$0xff]
        %v824 = vld [vmem:[%s4 + $0x30] sm:$0xff]
        %v825 = vld [vmem:[%s4 + $0x38] sm:$0xff]
        %v826 = vld [vmem:[%s5] sm:$0xff]
        %v827 = vld [vmem:[%s5 + $0x8] sm:$0xff]
        %v828 = vld [vmem:[%s5 + $0x10] sm:$0xff]
        %v829 = vld [vmem:[%s5 + $0x18] sm:$0xff]
        %v830 = vld [vmem:[%s6] sm:$0xf]
        %v831 = vld [vmem:[%s6 + $0x4] sm:$0xf]
        %v832 = vld [vmem:[%s6 + $0x8] sm:$0xf]
        %v833 = vld [vmem:[%s6 + $0xc] sm:$0xf]
        %v834 = vld [vmem:[%s6 + $0x10] sm:$0xf]
        %v835 = vld [vmem:[%s6 + $0x14] sm:$0xf]
        %v836 = vld [vmem:[%s6 + $0x18] sm:$0xf]
        %v837 = vld [vmem:[%s6 + $0x1c] sm:$0xf]
        %v838 = vld [vmem:[%s6 + $0x20] sm:$0xf]
        %v839 = vld [vmem:[%s6 + $0x24] sm:$0xf]
        %v840 = vld [vmem:[%s6 + $0x28] sm:$0xf]
        %v841 = vld [vmem:[%s6 + $0x2c] sm:$0xf]
        %v842 = vld [vmem:[%s6 + $0x30] sm:$0xf]
        %v843 = vld [vmem:[%s6 + $0x34] sm:$0xf]
        %v844 = vld [vmem:[%s6 + $0x38] sm:$0xf]
        %v845 = vld [vmem:[%s6 + $0x3c] sm:$0xf]
        %v846 = vld [vmem:[%s6 + $0x40] sm:$0xf]
        %v847 = vld [vmem:[%s6 + $0x44] sm:$0xf]
        %v848 = vld [vmem:[%s6 + $0x48] sm:$0xf]
        %v849 = vld [vmem:[%s6 + $0x4c] sm:$0xf]
        %v850 = vld [vmem:[%s6 + $0x50] sm:$0xf]
        %v851 = vld [vmem:[%s6 + $0x54] sm:$0xf]
        %v852 = vld [vmem:[%s6 + $0x58] sm:$0xf]
        %v853 = vld [vmem:[%s6 + $0x5c] sm:$0xf]
        %v854 = vld [vmem:[%s6 + $0x60] sm:$0xf]
        %v855 = vld [vmem:[%s6 + $0x64] sm:$0xf]
        %v856 = vld [vmem:[%s6 + $0x68] sm:$0xf]
        %v857 = vld [vmem:[%s6 + $0x6c] sm:$0xf]
        %v858 = vld [vmem:[%s6 + $0x70] sm:$0xf]
        %v859 = vld [vmem:[%s6 + $0x74] sm:$0xf]
        %v860 = vld [vmem:[%s6 + $0x78] sm:$0xf]
        %v861 = vld [vmem:[%s6 + $0x7c] sm:$0xf]
        %v862 = vld [vmem:[%s7] sm:$0x1]
        %v863 = vld [vmem:[%s8] sm:$0x1]
        %v864 = vld [vmem:[%s9] sm:$0x1]
        %v865 = vld [vmem:[%s10] sm:$0x1]
        %v866 = vld [vmem:[%s11] sm:$0xff]
        %v867 = vld [vmem:[%s11 + $0x8] sm:$0xff]
        %v868 = vld [vmem:[%s11 + $0x10] sm:$0xff]
        %v869 = vld [vmem:[%s11 + $0x18] sm:$0xff]
        %v870 = vld [vmem:[%s12] sm:$0xff]
        %v871 = vld [vmem:[%s12 + $0x8] sm:$0xff]
        %v872 = vld [vmem:[%s12 + $0x10] sm:$0xff]
        %v873 = vld [vmem:[%s12 + $0x18] sm:$0xff]
        %v874 = vld [vmem:[%s13] sm:$0xff]
        %v875 = vld [vmem:[%s13 + $0x8] sm:$0xff]
        %v876 = vld [vmem:[%s13 + $0x10] sm:$0xff]
        %v877 = vld [vmem:[%s13 + $0x18] sm:$0xff]
        %v878 = vld [vmem:[%s14] sm:$0xf]
        %v879 = vld [vmem:[%s14 + $0x4] sm:$0xf]
        %v880 = vld [vmem:[%s14 + $0x8] sm:$0xf]
        %v881 = vld [vmem:[%s14 + $0xc] sm:$0xf]
        %v882 = vld [vmem:[%s14 + $0x10] sm:$0xf]
        %v883 = vld [vmem:[%s14 + $0x14] sm:$0xf]
        %v884 = vld [vmem:[%s14 + $0x18] sm:$0xf]
        %v885 = vld [vmem:[%s14 + $0x1c] sm:$0xf]
        %v886 = vld [vmem:[%s14 + $0x20] sm:$0xf]
        %v887 = vld [vmem:[%s14 + $0x24] sm:$0xf]
        %v888 = vld [vmem:[%s14 + $0x28] sm:$0xf]
        %v889 = vld [vmem:[%s14 + $0x2c] sm:$0xf]
        %v890 = vld [vmem:[%s14 + $0x30] sm:$0xf]
        %v891 = vld [vmem:[%s14 + $0x34] sm:$0xf]
        %v892 = vld [vmem:[%s14 + $0x38] sm:$0xf]
        %v893 = vld [vmem:[%s14 + $0x3c] sm:$0xf]
        %v894 = vld [vmem:[%s14 + $0x40] sm:$0xf]
        %v895 = vld [vmem:[%s14 + $0x44] sm:$0xf]
        %v896 = vld [vmem:[%s14 + $0x48] sm:$0xf]
        %v897 = vld [vmem:[%s14 + $0x4c] sm:$0xf]
        %v898 = vld [vmem:[%s14 + $0x50] sm:$0xf]
        %v899 = vld [vmem:[%s14 + $0x54] sm:$0xf]
        %v900 = vld [vmem:[%s14 + $0x58] sm:$0xf]
        %v901 = vld [vmem:[%s14 + $0x5c] sm:$0xf]
        %v902 = vld [vmem:[%s14 + $0x60] sm:$0xf]
        %v903 = vld [vmem:[%s14 + $0x64] sm:$0xf]
        %v904 = vld [vmem:[%s14 + $0x68] sm:$0xf]
        %v905 = vld [vmem:[%s14 + $0x6c] sm:$0xf]
        %v906 = vld [vmem:[%s14 + $0x70] sm:$0xf]
        %v907 = vld [vmem:[%s14 + $0x74] sm:$0xf]
        %v908 = vld [vmem:[%s14 + $0x78] sm:$0xf]
        %v909 = vld [vmem:[%s14 + $0x7c] sm:$0xf]
        %v910 = vld [vmem:[%s15] sm:$0x1]
        %v911 = vld [vmem:[%s16] sm:$0x1]
        %v912 = vld [vmem:[%s17] sm:$0x1]
        %v913 = vld [vmem:[%s18] sm:$0x1]
        %v914 = vld [vmem:[%s19] sm:$0xf]
        %v915 = vld [vmem:[%s19 + $0x4] sm:$0xf]
        %v916 = vld [vmem:[%s19 + $0x8] sm:$0xf]
        %v917 = vld [vmem:[%s19 + $0xc] sm:$0xf]
        %v918 = vld [vmem:[%s20] sm:$0x1]
        %v919 = vld [vmem:[%s21] sm:$0xf]
        %v920 = vld [vmem:[%s21 + $0x4] sm:$0xf]
        %v921 = vld [vmem:[%s21 + $0x8] sm:$0xf]
        %v922 = vld [vmem:[%s21 + $0xc] sm:$0xf]
        %v923 = vld [vmem:[%s21 + $0x10] sm:$0xf]
        %v924 = vld [vmem:[%s21 + $0x14] sm:$0xf]
        %v925 = vld [vmem:[%s21 + $0x18] sm:$0xf]
        %v926 = vld [vmem:[%s21 + $0x1c] sm:$0xf]
        %v927 = vld [vmem:[%s22] sm:$0x1]
        %v928 = vld [vmem:[%s23] sm:$0x1]
        %v929 = vld [vmem:[%s24] sm:$0x1]
        %v930 = vld [vmem:[%s802] sm:$0xff]
        %v931 = vld [vmem:[%s807] sm:$0xff]
        %v932 = vld [vmem:[%s807 + $0x8] sm:$0xff]
        %v933 = vld [vmem:[%s811] sm:$0xff]
        %v934 = vld [vmem:[%s816] sm:$0xff]
        %v935 = vld [vmem:[%s816 + $0x8] sm:$0xff]
        %v936 = vadd.f32 %v930, %v933
        %v937 = vpack.c.bf16 %v936, %v936
        %v946 = vunpack.c.l.b16 %v818
        %v947 = vunpack.c.h.b16 %v818
        %v948 = vunpack.c.l.b16 %v819
        %v949 = vunpack.c.h.b16 %v819
        %v950 = vunpack.c.l.b16 %v820
        %v951 = vunpack.c.h.b16 %v820
        %v952 = vunpack.c.l.b16 %v821
        %v953 = vunpack.c.h.b16 %v821
        %v954 = vunpack.c.l.b16 %v822
        %v955 = vunpack.c.h.b16 %v822
        %v956 = vunpack.c.l.b16 %v823
        %v957 = vunpack.c.h.b16 %v823
        %v958 = vunpack.c.l.b16 %v824
        %v959 = vunpack.c.h.b16 %v824
        %v960 = vunpack.c.l.b16 %v825
        %v961 = vunpack.c.h.b16 %v825
        %v962 = vpack.c.b16 %v950, %v946
        %v963 = vpack.c.b16 %v951, %v947
        %v964 = vpack.c.b16 %v952, %v948
        %v965 = vpack.c.b16 %v953, %v949
        %v966 = vpack.c.b16 %v958, %v954
        %v967 = vpack.c.b16 %v959, %v955
        %v968 = vpack.c.b16 %v960, %v956
        %v969 = vpack.c.b16 %v961, %v957
        %vm978 = vcmask 261120
        %v980 = vsel %vm978, %v937, 0
        %982 = vmatprep.subr.bf16.mxu0 0
        %983 = vmatpush1.bf16.msra.mxu0 0
        %984 = vmatprep.subr.bf16.mxu0 0
        %985 = vmatpush1.bf16.msra.mxu0 0
        %986 = vmatprep.subr.bf16.mxu0 0
        %987 = vmatpush1.bf16.msra.mxu0 0
        %988 = vmatprep.subr.bf16.mxu0 0
        %989 = vmatpush1.bf16.msra.mxu0 0
        %990 = vmatprep.subr.bf16.mxu0 0
        %991 = vmatpush1.bf16.msra.mxu0 0
        %992 = vmatprep.subr.bf16.mxu0 0
        %993 = vmatpush1.bf16.msra.mxu0 0
        %994 = vmatprep.subr.bf16.mxu0 %v967
        %995 = vmatpush1.bf16.msra.mxu0 %v966
        %996 = vmatprep.subr.bf16.mxu0 %v963
        %997 = vmatpush1.bf16.msra.mxu0 %v962
        %998 = vmatprep.subr.bf16.mxu0 0
        %999 = vmatpush2.bf16.msra.mxu0 0
        %1000 = vmatprep.subr.bf16.mxu0 0
        %1001 = vmatpush2.bf16.msra.mxu0 0
        %1002 = vmatprep.subr.bf16.mxu0 0
        %1003 = vmatpush2.bf16.msra.mxu0 0
        %1004 = vmatprep.subr.bf16.mxu0 0
        %1005 = vmatpush2.bf16.msra.mxu0 0
        %1006 = vmatprep.subr.bf16.mxu0 0
        %1007 = vmatpush2.bf16.msra.mxu0 0
        %1008 = vmatprep.subr.bf16.mxu0 0
        %1009 = vmatpush2.bf16.msra.mxu0 0
        %1010 = vmatprep.subr.bf16.mxu0 0
        %1011 = vmatpush2.bf16.msra.mxu0 0
        %1012 = vmatprep.subr.bf16.mxu0 0
        %1013 = vmatpush2.bf16.msra.mxu0 0
        %1014 = vmatprep.mubr.bf16.mxu0 0
        %1015 = vmatmul.mubr.bf16.gmra.mxu0 %v980
        %v1016 = vpop.f32.mrf.mxu0
        %v1017 = vadd.f32 0.0, %v1016
        %v1018 = vpop.f32.mrf.mxu0
        %v1019 = vadd.f32 0.0, %v1018
        %v1020 = vpop.f32.mrf.mxu0
        %v1021 = vpop.f32.mrf.mxu0
        %1022 = vdwg.mxu0
        %1023 = vmatprep.subr.bf16.mxu0 0
        %1024 = vmatpush1.bf16.msra.mxu0 0
        %1025 = vmatprep.subr.bf16.mxu0 0
        %1026 = vmatpush1.bf16.msra.mxu0 0
        %1027 = vmatprep.subr.bf16.mxu0 0
        %1028 = vmatpush1.bf16.msra.mxu0 0
        %1029 = vmatprep.subr.bf16.mxu0 0
        %1030 = vmatpush1.bf16.msra.mxu0 0
        %1031 = vmatprep.subr.bf16.mxu0 0
        %1032 = vmatpush1.bf16.msra.mxu0 0
        %1033 = vmatprep.subr.bf16.mxu0 0
        %1034 = vmatpush1.bf16.msra.mxu0 0
        %1035 = vmatprep.subr.bf16.mxu0 %v969
        %1036 = vmatpush1.bf16.msra.mxu0 %v968
        %1037 = vmatprep.subr.bf16.mxu0 %v965
        %1038 = vmatpush1.bf16.msra.mxu0 %v964
        %1039 = vmatprep.subr.bf16.mxu0 0
        %1040 = vmatpush2.bf16.msra.mxu0 0
        %1041 = vmatprep.subr.bf16.mxu0 0
        %1042 = vmatpush2.bf16.msra.mxu0 0
        %1043 = vmatprep.subr.bf16.mxu0 0
        %1044 = vmatpush2.bf16.msra.mxu0 0
        %1045 = vmatprep.subr.bf16.mxu0 0
        %1046 = vmatpush2.bf16.msra.mxu0 0
        %1047 = vmatprep.subr.bf16.mxu0 0
        %1048 = vmatpush2.bf16.msra.mxu0 0
        %1049 = vmatprep.subr.bf16.mxu0 0
        %1050 = vmatpush2.bf16.msra.mxu0 0
        %1051 = vmatprep.subr.bf16.mxu0 0
        %1052 = vmatpush2.bf16.msra.mxu0 0
        %1053 = vmatprep.subr.bf16.mxu0 0
        %1054 = vmatpush2.bf16.msra.mxu0 0
        %1055 = vmatprep.mubr.bf16.mxu0 0
        %1056 = vmatmul.mubr.bf16.gmra.mxu0 %v980
        %v1057 = vpop.f32.mrf.mxu0
        %v1058 = vadd.f32 0.0, %v1057
        %v1059 = vpop.f32.mrf.mxu0
        %v1060 = vadd.f32 0.0, %v1059
        %v1061 = vpop.f32.mrf.mxu0
        %v1062 = vpop.f32.mrf.mxu0
        %1063 = vdwg.mxu0
        %v1064 = vpack.c.bf16 %v1017, %v1017
        %v1065 = vpack.c.bf16 %v1019, %v1019
        %v1066 = vpack.c.bf16 %v1058, %v1058
        %v1067 = vpack.c.bf16 %v1060, %v1060
        %v1068 = vpack.c.bf16 %v930, %v930
        %v1073 = vunpack.c.l.b16 %v826
        %v1074 = vunpack.c.h.b16 %v826
        %v1075 = vunpack.c.l.b16 %v827
        %v1076 = vunpack.c.h.b16 %v827
        %v1077 = vunpack.c.l.b16 %v828
        %v1078 = vunpack.c.h.b16 %v828
        %v1079 = vunpack.c.l.b16 %v829
        %v1080 = vunpack.c.h.b16 %v829
        %v1081 = vpack.c.b16 %v1075, %v1073
        %v1082 = vpack.c.b16 %v1076, %v1074
        %v1083 = vpack.c.b16 %v1079, %v1077
        %v1084 = vpack.c.b16 %v1080, %v1078
        %v1090 = vsel %vm978, %v1068, 0
        %1092 = vmatprep.subr.bf16.mxu0 0
        %1093 = vmatpush1.bf16.msra.mxu0 0
        %1094 = vmatprep.subr.bf16.mxu0 0
        %1095 = vmatpush1.bf16.msra.mxu0 0
        %1096 = vmatprep.subr.bf16.mxu0 0
        %1097 = vmatpush1.bf16.msra.mxu0 0
        %1098 = vmatprep.subr.bf16.mxu0 0
        %1099 = vmatpush1.bf16.msra.mxu0 0
        %1100 = vmatprep.subr.bf16.mxu0 0
        %1101 = vmatpush1.bf16.msra.mxu0 0
        %1102 = vmatprep.subr.bf16.mxu0 0
        %1103 = vmatpush1.bf16.msra.mxu0 0
        %1104 = vmatprep.subr.bf16.mxu0 %v1084
        %1105 = vmatpush1.bf16.msra.mxu0 %v1083
        %1106 = vmatprep.subr.bf16.mxu0 %v1082
        %1107 = vmatpush1.bf16.msra.mxu0 %v1081
        %1108 = vmatprep.subr.bf16.mxu0 0
        %1109 = vmatpush2.bf16.msra.mxu0 0
        %1110 = vmatprep.subr.bf16.mxu0 0
        %1111 = vmatpush2.bf16.msra.mxu0 0
        %1112 = vmatprep.subr.bf16.mxu0 0
        %1113 = vmatpush2.bf16.msra.mxu0 0
        %1114 = vmatprep.subr.bf16.mxu0 0
        %1115 = vmatpush2.bf16.msra.mxu0 0
        %1116 = vmatprep.subr.bf16.mxu0 0
        %1117 = vmatpush2.bf16.msra.mxu0 0
        %1118 = vmatprep.subr.bf16.mxu0 0
        %1119 = vmatpush2.bf16.msra.mxu0 0
        %1120 = vmatprep.subr.bf16.mxu0 0
        %1121 = vmatpush2.bf16.msra.mxu0 0
        %1122 = vmatprep.subr.bf16.mxu0 0
        %1123 = vmatpush2.bf16.msra.mxu0 0
        %1124 = vmatprep.mubr.bf16.mxu0 0
        %1125 = vmatmul.mubr.bf16.gmra.mxu0 %v1090
        %v1126 = vpop.f32.mrf.mxu0
        %v1127 = vadd.f32 0.0, %v1126
        %v1128 = vpop.f32.mrf.mxu0
        %v1129 = vadd.f32 0.0, %v1128
        %v1130 = vpop.f32.mrf.mxu0
        %v1131 = vpop.f32.mrf.mxu0
        %1132 = vdwg.mxu0
        %v1133 = vpack.c.bf16 %v1127, %v1127
        %v1134 = vpack.c.bf16 %v1129, %v1129
        %v1136 = vsel %vm978, %v1064, 0
        %v1139 = vsel %vm978, %v1066, 0
        %1141 = vmatprep.subr.bf16.mxu0 0
        %1142 = vmatpush1.bf16.xpose.msra.mxu0 0
        %1143 = vmatprep.subr.bf16.mxu0 0
        %1144 = vmatpush1.bf16.xpose.msra.mxu0 0
        %1145 = vmatprep.subr.bf16.mxu0 0
        %1146 = vmatpush1.bf16.xpose.msra.mxu0 0
        %1147 = vmatprep.subr.bf16.mxu0 0
        %1148 = vmatpush1.bf16.xpose.msra.mxu0 0
        %1149 = vmatprep.subr.bf16.mxu0 0
        %1150 = vmatpush1.bf16.xpose.msra.mxu0 0
        %1151 = vmatprep.subr.bf16.mxu0 0
        %1152 = vmatpush1.bf16.xpose.msra.mxu0 0
        %1153 = vmatprep.subr.bf16.mxu0 0
        %1154 = vmatpush1.bf16.xpose.msra.mxu0 0
        %1155 = vmatprep.subr.bf16.mxu0 0
        %1156 = vmatpush1.bf16.xpose.msra.mxu0 %v1139
        %1157 = vmatprep.subr.bf16.mxu0 0
        %1158 = vmatpush2.bf16.xpose.msra.mxu0 0
        %1159 = vmatprep.subr.bf16.mxu0 0
        %1160 = vmatpush2.bf16.xpose.msra.mxu0 0
        %1161 = vmatprep.subr.bf16.mxu0 0
        %1162 = vmatpush2.bf16.xpose.msra.mxu0 0
        %1163 = vmatprep.subr.bf16.mxu0 0
        %1164 = vmatpush2.bf16.xpose.msra.mxu0 0
        %1165 = vmatprep.subr.bf16.mxu0 0
        %1166 = vmatpush2.bf16.xpose.msra.mxu0 0
        %1167 = vmatprep.subr.bf16.mxu0 0
        %1168 = vmatpush2.bf16.xpose.msra.mxu0 0
        %1169 = vmatprep.subr.bf16.mxu0 0
        %1170 = vmatpush2.bf16.xpose.msra.mxu0 0
        %1171 = vmatprep.subr.bf16.mxu0 0
        %1172 = vmatpush2.bf16.xpose.msra.mxu0 0
        %1173 = vmatprep.mubr.bf16.mxu0 0
        %1174 = vmatmul.mubr.bf16.gmra.mxu0 %v1136
        %v1175 = vpop.f32.mrf.mxu0
        %v1176 = vadd.f32 0.0, %v1175
        %v1177 = vpop.f32.mrf.mxu0
        %v1178 = vpop.f32.mrf.mxu0
        %v1179 = vpop.f32.mrf.mxu0
        %1180 = vdwg.mxu0
        %vm1181 = vcmask 64512
        %v1182 = vsel %vm1181, %v1176, -inf
        %1183 = vmax.xlane.f32.xlu0 %v1182
        %v1184 = vpop.xlane.xlu0 %1183
        %v1185 = vsub.f32 %v1176, %v1184
        %v1186 = vmul.f32 %v1185, 1.442695
        %v1187 = vpow.pop %v1186
        %v1188 = vsel %vm1181, %v1187, 0.0
        %1189 = vadd.xlane.f32.xlu0 %v1188
        %v1190 = vpop.xlane.xlu0 %1189
        %v1191 = vrcp.pop %v1190
        %v1192 = vmul.f32 %v1187, %v1191
        %v1193 = vpack.c.bf16 %v1192, %v1192
        %v1195 = vsel %vm1181, %v1193, 0
        %vm1197 = vcmask 1043456
        %v1199 = vsel %vm1197, %v1133, 0
        %1201 = vmatprep.subr.bf16.mxu0 0
        %1202 = vmatpush1.bf16.msra.mxu0 0
        %1203 = vmatprep.subr.bf16.mxu0 0
        %1204 = vmatpush1.bf16.msra.mxu0 0
        %1205 = vmatprep.subr.bf16.mxu0 0
        %1206 = vmatpush1.bf16.msra.mxu0 0
        %1207 = vmatprep.subr.bf16.mxu0 0
        %1208 = vmatpush1.bf16.msra.mxu0 0
        %1209 = vmatprep.subr.bf16.mxu0 0
        %1210 = vmatpush1.bf16.msra.mxu0 0
        %1211 = vmatprep.subr.bf16.mxu0 0
        %1212 = vmatpush1.bf16.msra.mxu0 0
        %1213 = vmatprep.subr.bf16.mxu0 0
        %1214 = vmatpush1.bf16.msra.mxu0 0
        %1215 = vmatprep.subr.bf16.mxu0 0
        %1216 = vmatpush1.bf16.msra.mxu0 %v1199
        %1217 = vmatprep.subr.bf16.mxu0 0
        %1218 = vmatpush2.bf16.msra.mxu0 0
        %1219 = vmatprep.subr.bf16.mxu0 0
        %1220 = vmatpush2.bf16.msra.mxu0 0
        %1221 = vmatprep.subr.bf16.mxu0 0
        %1222 = vmatpush2.bf16.msra.mxu0 0
        %1223 = vmatprep.subr.bf16.mxu0 0
        %1224 = vmatpush2.bf16.msra.mxu0 0
        %1225 = vmatprep.subr.bf16.mxu0 0
        %1226 = vmatpush2.bf16.msra.mxu0 0
        %1227 = vmatprep.subr.bf16.mxu0 0
        %1228 = vmatpush2.bf16.msra.mxu0 0
        %1229 = vmatprep.subr.bf16.mxu0 0
        %1230 = vmatpush2.bf16.msra.mxu0 0
        %1231 = vmatprep.subr.bf16.mxu0 0
        %1232 = vmatpush2.bf16.msra.mxu0 0
        %1233 = vmatprep.mubr.bf16.mxu0 0
        %1234 = vmatmul.mubr.bf16.gmra.mxu0 %v1195
        %v1235 = vpop.f32.mrf.mxu0
        %v1236 = vadd.f32 0.0, %v1235
        %v1237 = vpop.f32.mrf.mxu0
        %v1238 = vpop.f32.mrf.mxu0
        %v1239 = vpop.f32.mrf.mxu0
        %1240 = vdwg.mxu0
        %v1241 = vpack.c.bf16 %v1236, %v1236
        %1243 = vrot.lane.b32.xlu0 %v1064, 96
        %v1244 = vpop.permute.xlu0 %1243
        %1246 = vrot.lane.b32.xlu0 %v1066, 96
        %v1247 = vpop.permute.xlu0 %1246
        %v1249 = vsel %vm978, %v1244, 0
        %v1252 = vsel %vm978, %v1247, 0
        %1254 = vmatprep.subr.bf16.mxu0 0
        %1255 = vmatpush1.bf16.xpose.msra.mxu0 0
        %1256 = vmatprep.subr.bf16.mxu0 0
        %1257 = vmatpush1.bf16.xpose.msra.mxu0 0
        %1258 = vmatprep.subr.bf16.mxu0 0
        %1259 = vmatpush1.bf16.xpose.msra.mxu0 0
        %1260 = vmatprep.subr.bf16.mxu0 0
        %1261 = vmatpush1.bf16.xpose.msra.mxu0 0
        %1262 = vmatprep.subr.bf16.mxu0 0
        %1263 = vmatpush1.bf16.xpose.msra.mxu0 0
        %1264 = vmatprep.subr.bf16.mxu0 0
        %1265 = vmatpush1.bf16.xpose.msra.mxu0 0
        %1266 = vmatprep.subr.bf16.mxu0 0
        %1267 = vmatpush1.bf16.xpose.msra.mxu0 0
        %1268 = vmatprep.subr.bf16.mxu0 0
        %1269 = vmatpush1.bf16.xpose.msra.mxu0 %v1252
        %1270 = vmatprep.subr.bf16.mxu0 0
        %1271 = vmatpush2.bf16.xpose.msra.mxu0 0
        %1272 = vmatprep.subr.bf16.mxu0 0
        %1273 = vmatpush2.bf16.xpose.msra.mxu0 0
        %1274 = vmatprep.subr.bf16.mxu0 0
        %1275 = vmatpush2.bf16.xpose.msra.mxu0 0
        %1276 = vmatprep.subr.bf16.mxu0 0
        %1277 = vmatpush2.bf16.xpose.msra.mxu0 0
        %1278 = vmatprep.subr.bf16.mxu0 0
        %1279 = vmatpush2.bf16.xpose.msra.mxu0 0
        %1280 = vmatprep.subr.bf16.mxu0 0
        %1281 = vmatpush2.bf16.xpose.msra.mxu0 0
        %1282 = vmatprep.subr.bf16.mxu0 0
        %1283 = vmatpush2.bf16.xpose.msra.mxu0 0
        %1284 = vmatprep.subr.bf16.mxu0 0
        %1285 = vmatpush2.bf16.xpose.msra.mxu0 0
        %1286 = vmatprep.mubr.bf16.mxu0 0
        %1287 = vmatmul.mubr.bf16.gmra.mxu0 %v1249
        %v1288 = vpop.f32.mrf.mxu0
        %v1289 = vadd.f32 0.0, %v1288
        %v1290 = vpop.f32.mrf.mxu0
        %v1291 = vpop.f32.mrf.mxu0
        %v1292 = vpop.f32.mrf.mxu0
        %1293 = vdwg.mxu0
        %v1294 = vsel %vm1181, %v1289, -inf
        %1295 = vmax.xlane.f32.xlu0 %v1294
        %v1296 = vpop.xlane.xlu0 %1295
        %v1297 = vsub.f32 %v1289, %v1296
        %v1298 = vmul.f32 %v1297, 1.442695
        %v1299 = vpow.pop %v1298
        %v1300 = vsel %vm1181, %v1299, 0.0
        %1301 = vadd.xlane.f32.xlu0 %v1300
        %v1302 = vpop.xlane.xlu0 %1301
        %v1303 = vrcp.pop %v1302
        %v1304 = vmul.f32 %v1299, %v1303
        %v1305 = vpack.c.bf16 %v1304, %v1304
        %1307 = vrot.lane.b32.xlu0 %v1133, 96
        %v1308 = vpop.permute.xlu0 %1307
        %v1310 = vsel %vm1181, %v1305, 0
        %v1313 = vsel %vm1197, %v1308, 0
        %1315 = vmatprep.subr.bf16.mxu0 0
        %1316 = vmatpush1.bf16.msra.mxu0 0
        %1317 = vmatprep.subr.bf16.mxu0 0
        %1318 = vmatpush1.bf16.msra.mxu0 0
        %1319 = vmatprep.subr.bf16.mxu0 0
        %1320 = vmatpush1.bf16.msra.mxu0 0
        %1321 = vmatprep.subr.bf16.mxu0 0
        %1322 = vmatpush1.bf16.msra.mxu0 0
        %1323 = vmatprep.subr.bf16.mxu0 0
        %1324 = vmatpush1.bf16.msra.mxu0 0
        %1325 = vmatprep.subr.bf16.mxu0 0
        %1326 = vmatpush1.bf16.msra.mxu0 0
        %1327 = vmatprep.subr.bf16.mxu0 0
        %1328 = vmatpush1.bf16.msra.mxu0 0
        %1329 = vmatprep.subr.bf16.mxu0 0
        %1330 = vmatpush1.bf16.msra.mxu0 %v1313
        %1331 = vmatprep.subr.bf16.mxu0 0
        %1332 = vmatpush2.bf16.msra.mxu0 0
        %1333 = vmatprep.subr.bf16.mxu0 0
        %1334 = vmatpush2.bf16.msra.mxu0 0
        %1335 = vmatprep.subr.bf16.mxu0 0
        %1336 = vmatpush2.bf16.msra.mxu0 0
        %1337 = vmatprep.subr.bf16.mxu0 0
        %1338 = vmatpush2.bf16.msra.mxu0 0
        %1339 = vmatprep.subr.bf16.mxu0 0
        %1340 = vmatpush2.bf16.msra.mxu0 0
        %1341 = vmatprep.subr.bf16.mxu0 0
        %1342 = vmatpush2.bf16.msra.mxu0 0
        %1343 = vmatprep.subr.bf16.mxu0 0
        %1344 = vmatpush2.bf16.msra.mxu0 0
        %1345 = vmatprep.subr.bf16.mxu0 0
        %1346 = vmatpush2.bf16.msra.mxu0 0
        %1347 = vmatprep.mubr.bf16.mxu0 0
        %1348 = vmatmul.mubr.bf16.gmra.mxu0 %v1310
        %v1349 = vpop.f32.mrf.mxu0
        %v1350 = vadd.f32 0.0, %v1349
        %v1351 = vpop.f32.mrf.mxu0
        %v1352 = vpop.f32.mrf.mxu0
        %v1353 = vpop.f32.mrf.mxu0
        %1354 = vdwg.mxu0
        %v1355 = vpack.c.bf16 %v1350, %v1350
        %v1360 = vunpack.c.l.b16 %v834
        %v1361 = vunpack.c.l.b16 %v835
        %v1362 = vunpack.c.l.b16 %v836
        %v1363 = vunpack.c.l.b16 %v837
        %v1364 = vpack.c.b16 %v1361, %v1360
        %v1365 = vpack.c.b16 %v1363, %v1362
        %v1369 = vsel %vm978, %v1355, 0
        %1371 = vmatprep.subr.bf16.mxu0 0
        %1372 = vmatpush1.bf16.msra.mxu0 0
        %1373 = vmatprep.subr.bf16.mxu0 0
        %1374 = vmatpush1.bf16.msra.mxu0 0
        %1375 = vmatprep.subr.bf16.mxu0 0
        %1376 = vmatpush1.bf16.msra.mxu0 0
        %1377 = vmatprep.subr.bf16.mxu0 0
        %1378 = vmatpush1.bf16.msra.mxu0 0
        %1379 = vmatprep.subr.bf16.mxu0 0
        %1380 = vmatpush1.bf16.msra.mxu0 0
        %1381 = vmatprep.subr.bf16.mxu0 0
        %1382 = vmatpush1.bf16.msra.mxu0 0
        %1383 = vmatprep.subr.bf16.mxu0 0
        %1384 = vmatpush1.bf16.msra.mxu0 %v1365
        %1385 = vmatprep.subr.bf16.mxu0 0
        %1386 = vmatpush1.bf16.msra.mxu0 %v1364
        %1387 = vmatprep.subr.bf16.mxu0 0
        %1388 = vmatpush2.bf16.msra.mxu0 0
        %1389 = vmatprep.subr.bf16.mxu0 0
        %1390 = vmatpush2.bf16.msra.mxu0 0
        %1391 = vmatprep.subr.bf16.mxu0 0
        %1392 = vmatpush2.bf16.msra.mxu0 0
        %1393 = vmatprep.subr.bf16.mxu0 0
        %1394 = vmatpush2.bf16.msra.mxu0 0
        %1395 = vmatprep.subr.bf16.mxu0 0
        %1396 = vmatpush2.bf16.msra.mxu0 0
        %1397 = vmatprep.subr.bf16.mxu0 0
        %1398 = vmatpush2.bf16.msra.mxu0 0
        %1399 = vmatprep.subr.bf16.mxu0 0
        %1400 = vmatpush2.bf16.msra.mxu0 0
        %1401 = vmatprep.subr.bf16.mxu0 0
        %1402 = vmatpush2.bf16.msra.mxu0 0
        %1403 = vmatprep.mubr.bf16.mxu0 0
        %1404 = vmatmul.mubr.bf16.gmra.mxu0 %v1369
        %v1405 = vpop.f32.mrf.mxu0
        %v1406 = vadd.f32 0.0, %v1405
        %v1407 = vpop.f32.mrf.mxu0
        %v1408 = vpop.f32.mrf.mxu0
        %v1409 = vpop.f32.mrf.mxu0
        %1410 = vdwg.mxu0
        %v1415 = vunpack.c.l.b16 %v830
        %v1416 = vunpack.c.l.b16 %v831
        %v1417 = vunpack.c.l.b16 %v832
        %v1418 = vunpack.c.l.b16 %v833
        %v1419 = vpack.c.b16 %v1416, %v1415
        %v1420 = vpack.c.b16 %v1418, %v1417
        %v1424 = vsel %vm978, %v1241, 0
        %1426 = vmatprep.subr.bf16.mxu0 0
        %1427 = vmatpush1.bf16.msra.mxu0 0
        %1428 = vmatprep.subr.bf16.mxu0 0
        %1429 = vmatpush1.bf16.msra.mxu0 0
        %1430 = vmatprep.subr.bf16.mxu0 0
        %1431 = vmatpush1.bf16.msra.mxu0 0
        %1432 = vmatprep.subr.bf16.mxu0 0
        %1433 = vmatpush1.bf16.msra.mxu0 0
        %1434 = vmatprep.subr.bf16.mxu0 0
        %1435 = vmatpush1.bf16.msra.mxu0 0
        %1436 = vmatprep.subr.bf16.mxu0 0
        %1437 = vmatpush1.bf16.msra.mxu0 0
        %1438 = vmatprep.subr.bf16.mxu0 0
        %1439 = vmatpush1.bf16.msra.mxu0 %v1420
        %1440 = vmatprep.subr.bf16.mxu0 0
        %1441 = vmatpush1.bf16.msra.mxu0 %v1419
        %1442 = vmatprep.subr.bf16.mxu0 0
        %1443 = vmatpush2.bf16.msra.mxu0 0
        %1444 = vmatprep.subr.bf16.mxu0 0
        %1445 = vmatpush2.bf16.msra.mxu0 0
        %1446 = vmatprep.subr.bf16.mxu0 0
        %1447 = vmatpush2.bf16.msra.mxu0 0
        %1448 = vmatprep.subr.bf16.mxu0 0
        %1449 = vmatpush2.bf16.msra.mxu0 0
        %1450 = vmatprep.subr.bf16.mxu0 0
        %1451 = vmatpush2.bf16.msra.mxu0 0
        %1452 = vmatprep.subr.bf16.mxu0 0
        %1453 = vmatpush2.bf16.msra.mxu0 0
        %1454 = vmatprep.subr.bf16.mxu0 0
        %1455 = vmatpush2.bf16.msra.mxu0 0
        %1456 = vmatprep.subr.bf16.mxu0 0
        %1457 = vmatpush2.bf16.msra.mxu0 0
        %1458 = vmatprep.mubr.bf16.mxu0 0
        %1459 = vmatmul.mubr.bf16.gmra.mxu0 %v1424
        %v1460 = vpop.f32.mrf.mxu0
        %v1461 = vadd.f32 %v1406, %v1460
        %v1462 = vpop.f32.mrf.mxu0
        %v1463 = vpop.f32.mrf.mxu0
        %v1464 = vpop.f32.mrf.mxu0
        %1465 = vdwg.mxu0
        %1466 = vrot.lane.b32.xlu0 %v1064, 64
        %v1467 = vpop.permute.xlu0 %1466
        %1468 = vrot.lane.b32.xlu0 %v1066, 64
        %v1469 = vpop.permute.xlu0 %1468
        %v1471 = vsel %vm978, %v1467, 0
        %v1474 = vsel %vm978, %v1469, 0
        %1476 = vmatprep.subr.bf16.mxu0 0
        %1477 = vmatpush1.bf16.xpose.msra.mxu0 0
        %1478 = vmatprep.subr.bf16.mxu0 0
        %1479 = vmatpush1.bf16.xpose.msra.mxu0 0
        %1480 = vmatprep.subr.bf16.mxu0 0
        %1481 = vmatpush1.bf16.xpose.msra.mxu0 0
        %1482 = vmatprep.subr.bf16.mxu0 0
        %1483 = vmatpush1.bf16.xpose.msra.mxu0 0
        %1484 = vmatprep.subr.bf16.mxu0 0
        %1485 = vmatpush1.bf16.xpose.msra.mxu0 0
        %1486 = vmatprep.subr.bf16.mxu0 0
        %1487 = vmatpush1.bf16.xpose.msra.mxu0 0
        %1488 = vmatprep.subr.bf16.mxu0 0
        %1489 = vmatpush1.bf16.xpose.msra.mxu0 0
        %1490 = vmatprep.subr.bf16.mxu0 0
        %1491 = vmatpush1.bf16.xpose.msra.mxu0 %v1474
        %1492 = vmatprep.subr.bf16.mxu0 0
        %1493 = vmatpush2.bf16.xpose.msra.mxu0 0
        %1494 = vmatprep.subr.bf16.mxu0 0
        %1495 = vmatpush2.bf16.xpose.msra.mxu0 0
        %1496 = vmatprep.subr.bf16.mxu0 0
        %1497 = vmatpush2.bf16.xpose.msra.mxu0 0
        %1498 = vmatprep.subr.bf16.mxu0 0
        %1499 = vmatpush2.bf16.xpose.msra.mxu0 0
        %1500 = vmatprep.subr.bf16.mxu0 0
        %1501 = vmatpush2.bf16.xpose.msra.mxu0 0
        %1502 = vmatprep.subr.bf16.mxu0 0
        %1503 = vmatpush2.bf16.xpose.msra.mxu0 0
        %1504 = vmatprep.subr.bf16.mxu0 0
        %1505 = vmatpush2.bf16.xpose.msra.mxu0 0
        %1506 = vmatprep.subr.bf16.mxu0 0
        %1507 = vmatpush2.bf16.xpose.msra.mxu0 0
        %1508 = vmatprep.mubr.bf16.mxu0 0
        %1509 = vmatmul.mubr.bf16.gmra.mxu0 %v1471
        %v1510 = vpop.f32.mrf.mxu0
        %v1511 = vadd.f32 0.0, %v1510
        %v1512 = vpop.f32.mrf.mxu0
        %v1513 = vpop.f32.mrf.mxu0
        %v1514 = vpop.f32.mrf.mxu0
        %1515 = vdwg.mxu0
        %v1516 = vsel %vm1181, %v1511, -inf
        %1517 = vmax.xlane.f32.xlu0 %v1516
        %v1518 = vpop.xlane.xlu0 %1517
        %v1519 = vsub.f32 %v1511, %v1518
        %v1520 = vmul.f32 %v1519, 1.442695
        %v1521 = vpow.pop %v1520
        %v1522 = vsel %vm1181, %v1521, 0.0
        %1523 = vadd.xlane.f32.xlu0 %v1522
        %v1524 = vpop.xlane.xlu0 %1523
        %v1525 = vrcp.pop %v1524
        %v1526 = vmul.f32 %v1521, %v1525
        %v1527 = vpack.c.bf16 %v1526, %v1526
        %1528 = vrot.lane.b32.xlu0 %v1133, 64
        %v1529 = vpop.permute.xlu0 %1528
        %v1531 = vsel %vm1181, %v1527, 0
        %v1534 = vsel %vm1197, %v1529, 0
        %1536 = vmatprep.subr.bf16.mxu0 0
        %1537 = vmatpush1.bf16.msra.mxu0 0
        %1538 = vmatprep.subr.bf16.mxu0 0
        %1539 = vmatpush1.bf16.msra.mxu0 0
        %1540 = vmatprep.subr.bf16.mxu0 0
        %1541 = vmatpush1.bf16.msra.mxu0 0
        %1542 = vmatprep.subr.bf16.mxu0 0
        %1543 = vmatpush1.bf16.msra.mxu0 0
        %1544 = vmatprep.subr.bf16.mxu0 0
        %1545 = vmatpush1.bf16.msra.mxu0 0
        %1546 = vmatprep.subr.bf16.mxu0 0
        %1547 = vmatpush1.bf16.msra.mxu0 0
        %1548 = vmatprep.subr.bf16.mxu0 0
        %1549 = vmatpush1.bf16.msra.mxu0 0
        %1550 = vmatprep.subr.bf16.mxu0 0
        %1551 = vmatpush1.bf16.msra.mxu0 %v1534
        %1552 = vmatprep.subr.bf16.mxu0 0
        %1553 = vmatpush2.bf16.msra.mxu0 0
        %1554 = vmatprep.subr.bf16.mxu0 0
        %1555 = vmatpush2.bf16.msra.mxu0 0
        %1556 = vmatprep.subr.bf16.mxu0 0
        %1557 = vmatpush2.bf16.msra.mxu0 0
        %1558 = vmatprep.subr.bf16.mxu0 0
        %1559 = vmatpush2.bf16.msra.mxu0 0
        %1560 = vmatprep.subr.bf16.mxu0 0
        %1561 = vmatpush2.bf16.msra.mxu0 0
        %1562 = vmatprep.subr.bf16.mxu0 0
        %1563 = vmatpush2.bf16.msra.mxu0 0
        %1564 = vmatprep.subr.bf16.mxu0 0
        %1565 = vmatpush2.bf16.msra.mxu0 0
        %1566 = vmatprep.subr.bf16.mxu0 0
        %1567 = vmatpush2.bf16.msra.mxu0 0
        %1568 = vmatprep.mubr.bf16.mxu0 0
        %1569 = vmatmul.mubr.bf16.gmra.mxu0 %v1531
        %v1570 = vpop.f32.mrf.mxu0
        %v1571 = vadd.f32 0.0, %v1570
        %v1572 = vpop.f32.mrf.mxu0
        %v1573 = vpop.f32.mrf.mxu0
        %v1574 = vpop.f32.mrf.mxu0
        %1575 = vdwg.mxu0
        %v1576 = vpack.c.bf16 %v1571, %v1571
        %v1581 = vunpack.c.l.b16 %v838
        %v1582 = vunpack.c.l.b16 %v839
        %v1583 = vunpack.c.l.b16 %v840
        %v1584 = vunpack.c.l.b16 %v841
        %v1585 = vpack.c.b16 %v1582, %v1581
        %v1586 = vpack.c.b16 %v1584, %v1583
        %v1590 = vsel %vm978, %v1576, 0
        %1592 = vmatprep.subr.bf16.mxu0 0
        %1593 = vmatpush1.bf16.msra.mxu0 0
        %1594 = vmatprep.subr.bf16.mxu0 0
        %1595 = vmatpush1.bf16.msra.mxu0 0
        %1596 = vmatprep.subr.bf16.mxu0 0
        %1597 = vmatpush1.bf16.msra.mxu0 0
        %1598 = vmatprep.subr.bf16.mxu0 0
        %1599 = vmatpush1.bf16.msra.mxu0 0
        %1600 = vmatprep.subr.bf16.mxu0 0
        %1601 = vmatpush1.bf16.msra.mxu0 0
        %1602 = vmatprep.subr.bf16.mxu0 0
        %1603 = vmatpush1.bf16.msra.mxu0 0
        %1604 = vmatprep.subr.bf16.mxu0 0
        %1605 = vmatpush1.bf16.msra.mxu0 %v1586
        %1606 = vmatprep.subr.bf16.mxu0 0
        %1607 = vmatpush1.bf16.msra.mxu0 %v1585
        %1608 = vmatprep.subr.bf16.mxu0 0
        %1609 = vmatpush2.bf16.msra.mxu0 0
        %1610 = vmatprep.subr.bf16.mxu0 0
        %1611 = vmatpush2.bf16.msra.mxu0 0
        %1612 = vmatprep.subr.bf16.mxu0 0
        %1613 = vmatpush2.bf16.msra.mxu0 0
        %1614 = vmatprep.subr.bf16.mxu0 0
        %1615 = vmatpush2.bf16.msra.mxu0 0
        %1616 = vmatprep.subr.bf16.mxu0 0
        %1617 = vmatpush2.bf16.msra.mxu0 0
        %1618 = vmatprep.subr.bf16.mxu0 0
        %1619 = vmatpush2.bf16.msra.mxu0 0
        %1620 = vmatprep.subr.bf16.mxu0 0
        %1621 = vmatpush2.bf16.msra.mxu0 0
        %1622 = vmatprep.subr.bf16.mxu0 0
        %1623 = vmatpush2.bf16.msra.mxu0 0
        %1624 = vmatprep.mubr.bf16.mxu0 0
        %1625 = vmatmul.mubr.bf16.gmra.mxu0 %v1590
        %v1626 = vpop.f32.mrf.mxu0
        %v1627 = vadd.f32 0.0, %v1626
        %v1628 = vpop.f32.mrf.mxu0
        %v1629 = vpop.f32.mrf.mxu0
        %v1630 = vpop.f32.mrf.mxu0
        %1631 = vdwg.mxu0
        %v1632 = vadd.f32 %v1461, %v1627
        %1633 = vrot.lane.b32.xlu0 %v1064, 32
        %v1634 = vpop.permute.xlu0 %1633
        %1635 = vrot.lane.b32.xlu0 %v1066, 32
        %v1636 = vpop.permute.xlu0 %1635
        %v1638 = vsel %vm978, %v1634, 0
        %v1641 = vsel %vm978, %v1636, 0
        %1643 = vmatprep.subr.bf16.mxu0 0
        %1644 = vmatpush1.bf16.xpose.msra.mxu0 0
        %1645 = vmatprep.subr.bf16.mxu0 0
        %1646 = vmatpush1.bf16.xpose.msra.mxu0 0
        %1647 = vmatprep.subr.bf16.mxu0 0
        %1648 = vmatpush1.bf16.xpose.msra.mxu0 0
        %1649 = vmatprep.subr.bf16.mxu0 0
        %1650 = vmatpush1.bf16.xpose.msra.mxu0 0
        %1651 = vmatprep.subr.bf16.mxu0 0
        %1652 = vmatpush1.bf16.xpose.msra.mxu0 0
        %1653 = vmatprep.subr.bf16.mxu0 0
        %1654 = vmatpush1.bf16.xpose.msra.mxu0 0
        %1655 = vmatprep.subr.bf16.mxu0 0
        %1656 = vmatpush1.bf16.xpose.msra.mxu0 0
        %1657 = vmatprep.subr.bf16.mxu0 0
        %1658 = vmatpush1.bf16.xpose.msra.mxu0 %v1641
        %1659 = vmatprep.subr.bf16.mxu0 0
        %1660 = vmatpush2.bf16.xpose.msra.mxu0 0
        %1661 = vmatprep.subr.bf16.mxu0 0
        %1662 = vmatpush2.bf16.xpose.msra.mxu0 0
        %1663 = vmatprep.subr.bf16.mxu0 0
        %1664 = vmatpush2.bf16.xpose.msra.mxu0 0
        %1665 = vmatprep.subr.bf16.mxu0 0
        %1666 = vmatpush2.bf16.xpose.msra.mxu0 0
        %1667 = vmatprep.subr.bf16.mxu0 0
        %1668 = vmatpush2.bf16.xpose.msra.mxu0 0
        %1669 = vmatprep.subr.bf16.mxu0 0
        %1670 = vmatpush2.bf16.xpose.msra.mxu0 0
        %1671 = vmatprep.subr.bf16.mxu0 0
        %1672 = vmatpush2.bf16.xpose.msra.mxu0 0
        %1673 = vmatprep.subr.bf16.mxu0 0
        %1674 = vmatpush2.bf16.xpose.msra.mxu0 0
        %1675 = vmatprep.mubr.bf16.mxu0 0
        %1676 = vmatmul.mubr.bf16.gmra.mxu0 %v1638
        %v1677 = vpop.f32.mrf.mxu0
        %v1678 = vadd.f32 0.0, %v1677
        %v1679 = vpop.f32.mrf.mxu0
        %v1680 = vpop.f32.mrf.mxu0
        %v1681 = vpop.f32.mrf.mxu0
        %1682 = vdwg.mxu0
        %v1683 = vsel %vm1181, %v1678, -inf
        %1684 = vmax.xlane.f32.xlu0 %v1683
        %v1685 = vpop.xlane.xlu0 %1684
        %v1686 = vsub.f32 %v1678, %v1685
        %v1687 = vmul.f32 %v1686, 1.442695
        %v1688 = vpow.pop %v1687
        %v1689 = vsel %vm1181, %v1688, 0.0
        %1690 = vadd.xlane.f32.xlu0 %v1689
        %v1691 = vpop.xlane.xlu0 %1690
        %v1692 = vrcp.pop %v1691
        %v1693 = vmul.f32 %v1688, %v1692
        %v1694 = vpack.c.bf16 %v1693, %v1693
        %1695 = vrot.lane.b32.xlu0 %v1133, 32
        %v1696 = vpop.permute.xlu0 %1695
        %v1698 = vsel %vm1181, %v1694, 0
        %v1701 = vsel %vm1197, %v1696, 0
        %1703 = vmatprep.subr.bf16.mxu0 0
        %1704 = vmatpush1.bf16.msra.mxu0 0
        %1705 = vmatprep.subr.bf16.mxu0 0
        %1706 = vmatpush1.bf16.msra.mxu0 0
        %1707 = vmatprep.subr.bf16.mxu0 0
        %1708 = vmatpush1.bf16.msra.mxu0 0
        %1709 = vmatprep.subr.bf16.mxu0 0
        %1710 = vmatpush1.bf16.msra.mxu0 0
        %1711 = vmatprep.subr.bf16.mxu0 0
        %1712 = vmatpush1.bf16.msra.mxu0 0
        %1713 = vmatprep.subr.bf16.mxu0 0
        %1714 = vmatpush1.bf16.msra.mxu0 0
        %1715 = vmatprep.subr.bf16.mxu0 0
        %1716 = vmatpush1.bf16.msra.mxu0 0
        %1717 = vmatprep.subr.bf16.mxu0 0
        %1718 = vmatpush1.bf16.msra.mxu0 %v1701
        %1719 = vmatprep.subr.bf16.mxu0 0
        %1720 = vmatpush2.bf16.msra.mxu0 0
        %1721 = vmatprep.subr.bf16.mxu0 0
        %1722 = vmatpush2.bf16.msra.mxu0 0
        %1723 = vmatprep.subr.bf16.mxu0 0
        %1724 = vmatpush2.bf16.msra.mxu0 0
        %1725 = vmatprep.subr.bf16.mxu0 0
        %1726 = vmatpush2.bf16.msra.mxu0 0
        %1727 = vmatprep.subr.bf16.mxu0 0
        %1728 = vmatpush2.bf16.msra.mxu0 0
        %1729 = vmatprep.subr.bf16.mxu0 0
        %1730 = vmatpush2.bf16.msra.mxu0 0
        %1731 = vmatprep.subr.bf16.mxu0 0
        %1732 = vmatpush2.bf16.msra.mxu0 0
        %1733 = vmatprep.subr.bf16.mxu0 0
        %1734 = vmatpush2.bf16.msra.mxu0 0
        %1735 = vmatprep.mubr.bf16.mxu0 0
        %1736 = vmatmul.mubr.bf16.gmra.mxu0 %v1698
        %v1737 = vpop.f32.mrf.mxu0
        %v1738 = vadd.f32 0.0, %v1737
        %v1739 = vpop.f32.mrf.mxu0
        %v1740 = vpop.f32.mrf.mxu0
        %v1741 = vpop.f32.mrf.mxu0
        %1742 = vdwg.mxu0
        %v1743 = vpack.c.bf16 %v1738, %v1738
        %v1748 = vunpack.c.l.b16 %v842
        %v1749 = vunpack.c.l.b16 %v843
        %v1750 = vunpack.c.l.b16 %v844
        %v1751 = vunpack.c.l.b16 %v845
        %v1752 = vpack.c.b16 %v1749, %v1748
        %v1753 = vpack.c.b16 %v1751, %v1750
        %v1757 = vsel %vm978, %v1743, 0
        %1759 = vmatprep.subr.bf16.mxu0 0
        %1760 = vmatpush1.bf16.msra.mxu0 0
        %1761 = vmatprep.subr.bf16.mxu0 0
        %1762 = vmatpush1.bf16.msra.mxu0 0
        %1763 = vmatprep.subr.bf16.mxu0 0
        %1764 = vmatpush1.bf16.msra.mxu0 0
        %1765 = vmatprep.subr.bf16.mxu0 0
        %1766 = vmatpush1.bf16.msra.mxu0 0
        %1767 = vmatprep.subr.bf16.mxu0 0
        %1768 = vmatpush1.bf16.msra.mxu0 0
        %1769 = vmatprep.subr.bf16.mxu0 0
        %1770 = vmatpush1.bf16.msra.mxu0 0
        %1771 = vmatprep.subr.bf16.mxu0 0
        %1772 = vmatpush1.bf16.msra.mxu0 %v1753
        %1773 = vmatprep.subr.bf16.mxu0 0
        %1774 = vmatpush1.bf16.msra.mxu0 %v1752
        %1775 = vmatprep.subr.bf16.mxu0 0
        %1776 = vmatpush2.bf16.msra.mxu0 0
        %1777 = vmatprep.subr.bf16.mxu0 0
        %1778 = vmatpush2.bf16.msra.mxu0 0
        %1779 = vmatprep.subr.bf16.mxu0 0
        %1780 = vmatpush2.bf16.msra.mxu0 0
        %1781 = vmatprep.subr.bf16.mxu0 0
        %1782 = vmatpush2.bf16.msra.mxu0 0
        %1783 = vmatprep.subr.bf16.mxu0 0
        %1784 = vmatpush2.bf16.msra.mxu0 0
        %1785 = vmatprep.subr.bf16.mxu0 0
        %1786 = vmatpush2.bf16.msra.mxu0 0
        %1787 = vmatprep.subr.bf16.mxu0 0
        %1788 = vmatpush2.bf16.msra.mxu0 0
        %1789 = vmatprep.subr.bf16.mxu0 0
        %1790 = vmatpush2.bf16.msra.mxu0 0
        %1791 = vmatprep.mubr.bf16.mxu0 0
        %1792 = vmatmul.mubr.bf16.gmra.mxu0 %v1757
        %v1793 = vpop.f32.mrf.mxu0
        %v1794 = vadd.f32 0.0, %v1793
        %v1795 = vpop.f32.mrf.mxu0
        %v1796 = vpop.f32.mrf.mxu0
        %v1797 = vpop.f32.mrf.mxu0
        %1798 = vdwg.mxu0
        %v1799 = vadd.f32 %v1632, %v1794
        %v1801 = vsel %vm978, %v1065, 0
        %v1804 = vsel %vm978, %v1067, 0
        %1806 = vmatprep.subr.bf16.mxu0 0
        %1807 = vmatpush1.bf16.xpose.msra.mxu0 0
        %1808 = vmatprep.subr.bf16.mxu0 0
        %1809 = vmatpush1.bf16.xpose.msra.mxu0 0
        %1810 = vmatprep.subr.bf16.mxu0 0
        %1811 = vmatpush1.bf16.xpose.msra.mxu0 0
        %1812 = vmatprep.subr.bf16.mxu0 0
        %1813 = vmatpush1.bf16.xpose.msra.mxu0 0
        %1814 = vmatprep.subr.bf16.mxu0 0
        %1815 = vmatpush1.bf16.xpose.msra.mxu0 0
        %1816 = vmatprep.subr.bf16.mxu0 0
        %1817 = vmatpush1.bf16.xpose.msra.mxu0 0
        %1818 = vmatprep.subr.bf16.mxu0 0
        %1819 = vmatpush1.bf16.xpose.msra.mxu0 0
        %1820 = vmatprep.subr.bf16.mxu0 0
        %1821 = vmatpush1.bf16.xpose.msra.mxu0 %v1804
        %1822 = vmatprep.subr.bf16.mxu0 0
        %1823 = vmatpush2.bf16.xpose.msra.mxu0 0
        %1824 = vmatprep.subr.bf16.mxu0 0
        %1825 = vmatpush2.bf16.xpose.msra.mxu0 0
        %1826 = vmatprep.subr.bf16.mxu0 0
        %1827 = vmatpush2.bf16.xpose.msra.mxu0 0
        %1828 = vmatprep.subr.bf16.mxu0 0
        %1829 = vmatpush2.bf16.xpose.msra.mxu0 0
        %1830 = vmatprep.subr.bf16.mxu0 0
        %1831 = vmatpush2.bf16.xpose.msra.mxu0 0
        %1832 = vmatprep.subr.bf16.mxu0 0
        %1833 = vmatpush2.bf16.xpose.msra.mxu0 0
        %1834 = vmatprep.subr.bf16.mxu0 0
        %1835 = vmatpush2.bf16.xpose.msra.mxu0 0
        %1836 = vmatprep.subr.bf16.mxu0 0
        %1837 = vmatpush2.bf16.xpose.msra.mxu0 0
        %1838 = vmatprep.mubr.bf16.mxu0 0
        %1839 = vmatmul.mubr.bf16.gmra.mxu0 %v1801
        %v1840 = vpop.f32.mrf.mxu0
        %v1841 = vadd.f32 0.0, %v1840
        %v1842 = vpop.f32.mrf.mxu0
        %v1843 = vpop.f32.mrf.mxu0
        %v1844 = vpop.f32.mrf.mxu0
        %1845 = vdwg.mxu0
        %v1846 = vsel %vm1181, %v1841, -inf
        %1847 = vmax.xlane.f32.xlu0 %v1846
        %v1848 = vpop.xlane.xlu0 %1847
        %v1849 = vsub.f32 %v1841, %v1848
        %v1850 = vmul.f32 %v1849, 1.442695
        %v1851 = vpow.pop %v1850
        %v1852 = vsel %vm1181, %v1851, 0.0
        %1853 = vadd.xlane.f32.xlu0 %v1852
        %v1854 = vpop.xlane.xlu0 %1853
        %v1855 = vrcp.pop %v1854
        %v1856 = vmul.f32 %v1851, %v1855
        %v1857 = vpack.c.bf16 %v1856, %v1856
        %v1859 = vsel %vm1181, %v1857, 0
        %v1862 = vsel %vm1197, %v1134, 0
        %1864 = vmatprep.subr.bf16.mxu0 0
        %1865 = vmatpush1.bf16.msra.mxu0 0
        %1866 = vmatprep.subr.bf16.mxu0 0
        %1867 = vmatpush1.bf16.msra.mxu0 0
        %1868 = vmatprep.subr.bf16.mxu0 0
        %1869 = vmatpush1.bf16.msra.mxu0 0
        %1870 = vmatprep.subr.bf16.mxu0 0
        %1871 = vmatpush1.bf16.msra.mxu0 0
        %1872 = vmatprep.subr.bf16.mxu0 0
        %1873 = vmatpush1.bf16.msra.mxu0 0
        %1874 = vmatprep.subr.bf16.mxu0 0
        %1875 = vmatpush1.bf16.msra.mxu0 0
        %1876 = vmatprep.subr.bf16.mxu0 0
        %1877 = vmatpush1.bf16.msra.mxu0 0
        %1878 = vmatprep.subr.bf16.mxu0 0
        %1879 = vmatpush1.bf16.msra.mxu0 %v1862
        %1880 = vmatprep.subr.bf16.mxu0 0
        %1881 = vmatpush2.bf16.msra.mxu0 0
        %1882 = vmatprep.subr.bf16.mxu0 0
        %1883 = vmatpush2.bf16.msra.mxu0 0
        %1884 = vmatprep.subr.bf16.mxu0 0
        %1885 = vmatpush2.bf16.msra.mxu0 0
        %1886 = vmatprep.subr.bf16.mxu0 0
        %1887 = vmatpush2.bf16.msra.mxu0 0
        %1888 = vmatprep.subr.bf16.mxu0 0
        %1889 = vmatpush2.bf16.msra.mxu0 0
        %1890 = vmatprep.subr.bf16.mxu0 0
        %1891 = vmatpush2.bf16.msra.mxu0 0
        %1892 = vmatprep.subr.bf16.mxu0 0
        %1893 = vmatpush2.bf16.msra.mxu0 0
        %1894 = vmatprep.subr.bf16.mxu0 0
        %1895 = vmatpush2.bf16.msra.mxu0 0
        %1896 = vmatprep.mubr.bf16.mxu0 0
        %1897 = vmatmul.mubr.bf16.gmra.mxu0 %v1859
        %v1898 = vpop.f32.mrf.mxu0
        %v1899 = vadd.f32 0.0, %v1898
        %v1900 = vpop.f32.mrf.mxu0
        %v1901 = vpop.f32.mrf.mxu0
        %v1902 = vpop.f32.mrf.mxu0
        %1903 = vdwg.mxu0
        %v1904 = vpack.c.bf16 %v1899, %v1899
        %v1909 = vunpack.c.l.b16 %v846
        %v1910 = vunpack.c.l.b16 %v847
        %v1911 = vunpack.c.l.b16 %v848
        %v1912 = vunpack.c.l.b16 %v849
        %v1913 = vpack.c.b16 %v1910, %v1909
        %v1914 = vpack.c.b16 %v1912, %v1911
        %v1918 = vsel %vm978, %v1904, 0
        %1920 = vmatprep.subr.bf16.mxu0 0
        %1921 = vmatpush1.bf16.msra.mxu0 0
        %1922 = vmatprep.subr.bf16.mxu0 0
        %1923 = vmatpush1.bf16.msra.mxu0 0
        %1924 = vmatprep.subr.bf16.mxu0 0
        %1925 = vmatpush1.bf16.msra.mxu0 0
        %1926 = vmatprep.subr.bf16.mxu0 0
        %1927 = vmatpush1.bf16.msra.mxu0 0
        %1928 = vmatprep.subr.bf16.mxu0 0
        %1929 = vmatpush1.bf16.msra.mxu0 0
        %1930 = vmatprep.subr.bf16.mxu0 0
        %1931 = vmatpush1.bf16.msra.mxu0 0
        %1932 = vmatprep.subr.bf16.mxu0 0
        %1933 = vmatpush1.bf16.msra.mxu0 %v1914
        %1934 = vmatprep.subr.bf16.mxu0 0
        %1935 = vmatpush1.bf16.msra.mxu0 %v1913
        %1936 = vmatprep.subr.bf16.mxu0 0
        %1937 = vmatpush2.bf16.msra.mxu0 0
        %1938 = vmatprep.subr.bf16.mxu0 0
        %1939 = vmatpush2.bf16.msra.mxu0 0
        %1940 = vmatprep.subr.bf16.mxu0 0
        %1941 = vmatpush2.bf16.msra.mxu0 0
        %1942 = vmatprep.subr.bf16.mxu0 0
        %1943 = vmatpush2.bf16.msra.mxu0 0
        %1944 = vmatprep.subr.bf16.mxu0 0
        %1945 = vmatpush2.bf16.msra.mxu0 0
        %1946 = vmatprep.subr.bf16.mxu0 0
        %1947 = vmatpush2.bf16.msra.mxu0 0
        %1948 = vmatprep.subr.bf16.mxu0 0
        %1949 = vmatpush2.bf16.msra.mxu0 0
        %1950 = vmatprep.subr.bf16.mxu0 0
        %1951 = vmatpush2.bf16.msra.mxu0 0
        %1952 = vmatprep.mubr.bf16.mxu0 0
        %1953 = vmatmul.mubr.bf16.gmra.mxu0 %v1918
        %v1954 = vpop.f32.mrf.mxu0
        %v1955 = vadd.f32 0.0, %v1954
        %v1956 = vpop.f32.mrf.mxu0
        %v1957 = vpop.f32.mrf.mxu0
        %v1958 = vpop.f32.mrf.mxu0
        %1959 = vdwg.mxu0
        %v1960 = vadd.f32 %v1799, %v1955
        %1962 = vrot.lane.b32.xlu0 %v1065, 96
        %v1963 = vpop.permute.xlu0 %1962
        %1965 = vrot.lane.b32.xlu0 %v1067, 96
        %v1966 = vpop.permute.xlu0 %1965
        %v1968 = vsel %vm978, %v1963, 0
        %v1971 = vsel %vm978, %v1966, 0
        %1973 = vmatprep.subr.bf16.mxu0 0
        %1974 = vmatpush1.bf16.xpose.msra.mxu0 0
        %1975 = vmatprep.subr.bf16.mxu0 0
        %1976 = vmatpush1.bf16.xpose.msra.mxu0 0
        %1977 = vmatprep.subr.bf16.mxu0 0
        %1978 = vmatpush1.bf16.xpose.msra.mxu0 0
        %1979 = vmatprep.subr.bf16.mxu0 0
        %1980 = vmatpush1.bf16.xpose.msra.mxu0 0
        %1981 = vmatprep.subr.bf16.mxu0 0
        %1982 = vmatpush1.bf16.xpose.msra.mxu0 0
        %1983 = vmatprep.subr.bf16.mxu0 0
        %1984 = vmatpush1.bf16.xpose.msra.mxu0 0
        %1985 = vmatprep.subr.bf16.mxu0 0
        %1986 = vmatpush1.bf16.xpose.msra.mxu0 0
        %1987 = vmatprep.subr.bf16.mxu0 0
        %1988 = vmatpush1.bf16.xpose.msra.mxu0 %v1971
        %1989 = vmatprep.subr.bf16.mxu0 0
        %1990 = vmatpush2.bf16.xpose.msra.mxu0 0
        %1991 = vmatprep.subr.bf16.mxu0 0
        %1992 = vmatpush2.bf16.xpose.msra.mxu0 0
        %1993 = vmatprep.subr.bf16.mxu0 0
        %1994 = vmatpush2.bf16.xpose.msra.mxu0 0
        %1995 = vmatprep.subr.bf16.mxu0 0
        %1996 = vmatpush2.bf16.xpose.msra.mxu0 0
        %1997 = vmatprep.subr.bf16.mxu0 0
        %1998 = vmatpush2.bf16.xpose.msra.mxu0 0
        %1999 = vmatprep.subr.bf16.mxu0 0
        %2000 = vmatpush2.bf16.xpose.msra.mxu0 0
        %2001 = vmatprep.subr.bf16.mxu0 0
        %2002 = vmatpush2.bf16.xpose.msra.mxu0 0
        %2003 = vmatprep.subr.bf16.mxu0 0
        %2004 = vmatpush2.bf16.xpose.msra.mxu0 0
        %2005 = vmatprep.mubr.bf16.mxu0 0
        %2006 = vmatmul.mubr.bf16.gmra.mxu0 %v1968
        %v2007 = vpop.f32.mrf.mxu0
        %v2008 = vadd.f32 0.0, %v2007
        %v2009 = vpop.f32.mrf.mxu0
        %v2010 = vpop.f32.mrf.mxu0
        %v2011 = vpop.f32.mrf.mxu0
        %2012 = vdwg.mxu0
        %v2013 = vsel %vm1181, %v2008, -inf
        %2014 = vmax.xlane.f32.xlu0 %v2013
        %v2015 = vpop.xlane.xlu0 %2014
        %v2016 = vsub.f32 %v2008, %v2015
        %v2017 = vmul.f32 %v2016, 1.442695
        %v2018 = vpow.pop %v2017
        %v2019 = vsel %vm1181, %v2018, 0.0
        %2020 = vadd.xlane.f32.xlu0 %v2019
        %v2021 = vpop.xlane.xlu0 %2020
        %v2022 = vrcp.pop %v2021
        %v2023 = vmul.f32 %v2018, %v2022
        %v2024 = vpack.c.bf16 %v2023, %v2023
        %2026 = vrot.lane.b32.xlu0 %v1134, 96
        %v2027 = vpop.permute.xlu0 %2026
        %v2029 = vsel %vm1181, %v2024, 0
        %v2032 = vsel %vm1197, %v2027, 0
        %2034 = vmatprep.subr.bf16.mxu0 0
        %2035 = vmatpush1.bf16.msra.mxu0 0
        %2036 = vmatprep.subr.bf16.mxu0 0
        %2037 = vmatpush1.bf16.msra.mxu0 0
        %2038 = vmatprep.subr.bf16.mxu0 0
        %2039 = vmatpush1.bf16.msra.mxu0 0
        %2040 = vmatprep.subr.bf16.mxu0 0
        %2041 = vmatpush1.bf16.msra.mxu0 0
        %2042 = vmatprep.subr.bf16.mxu0 0
        %2043 = vmatpush1.bf16.msra.mxu0 0
        %2044 = vmatprep.subr.bf16.mxu0 0
        %2045 = vmatpush1.bf16.msra.mxu0 0
        %2046 = vmatprep.subr.bf16.mxu0 0
        %2047 = vmatpush1.bf16.msra.mxu0 0
        %2048 = vmatprep.subr.bf16.mxu0 0
        %2049 = vmatpush1.bf16.msra.mxu0 %v2032
        %2050 = vmatprep.subr.bf16.mxu0 0
        %2051 = vmatpush2.bf16.msra.mxu0 0
        %2052 = vmatprep.subr.bf16.mxu0 0
        %2053 = vmatpush2.bf16.msra.mxu0 0
        %2054 = vmatprep.subr.bf16.mxu0 0
        %2055 = vmatpush2.bf16.msra.mxu0 0
        %2056 = vmatprep.subr.bf16.mxu0 0
        %2057 = vmatpush2.bf16.msra.mxu0 0
        %2058 = vmatprep.subr.bf16.mxu0 0
        %2059 = vmatpush2.bf16.msra.mxu0 0
        %2060 = vmatprep.subr.bf16.mxu0 0
        %2061 = vmatpush2.bf16.msra.mxu0 0
        %2062 = vmatprep.subr.bf16.mxu0 0
        %2063 = vmatpush2.bf16.msra.mxu0 0
        %2064 = vmatprep.subr.bf16.mxu0 0
        %2065 = vmatpush2.bf16.msra.mxu0 0
        %2066 = vmatprep.mubr.bf16.mxu0 0
        %2067 = vmatmul.mubr.bf16.gmra.mxu0 %v2029
        %v2068 = vpop.f32.mrf.mxu0
        %v2069 = vadd.f32 0.0, %v2068
        %v2070 = vpop.f32.mrf.mxu0
        %v2071 = vpop.f32.mrf.mxu0
        %v2072 = vpop.f32.mrf.mxu0
        %2073 = vdwg.mxu0
        %v2074 = vpack.c.bf16 %v2069, %v2069
        %v2079 = vunpack.c.l.b16 %v850
        %v2080 = vunpack.c.l.b16 %v851
        %v2081 = vunpack.c.l.b16 %v852
        %v2082 = vunpack.c.l.b16 %v853
        %v2083 = vpack.c.b16 %v2080, %v2079
        %v2084 = vpack.c.b16 %v2082, %v2081
        %v2088 = vsel %vm978, %v2074, 0
        %2090 = vmatprep.subr.bf16.mxu0 0
        %2091 = vmatpush1.bf16.msra.mxu0 0
        %2092 = vmatprep.subr.bf16.mxu0 0
        %2093 = vmatpush1.bf16.msra.mxu0 0
        %2094 = vmatprep.subr.bf16.mxu0 0
        %2095 = vmatpush1.bf16.msra.mxu0 0
        %2096 = vmatprep.subr.bf16.mxu0 0
        %2097 = vmatpush1.bf16.msra.mxu0 0
        %2098 = vmatprep.subr.bf16.mxu0 0
        %2099 = vmatpush1.bf16.msra.mxu0 0
        %2100 = vmatprep.subr.bf16.mxu0 0
        %2101 = vmatpush1.bf16.msra.mxu0 0
        %2102 = vmatprep.subr.bf16.mxu0 0
        %2103 = vmatpush1.bf16.msra.mxu0 %v2084
        %2104 = vmatprep.subr.bf16.mxu0 0
        %2105 = vmatpush1.bf16.msra.mxu0 %v2083
        %2106 = vmatprep.subr.bf16.mxu0 0
        %2107 = vmatpush2.bf16.msra.mxu0 0
        %2108 = vmatprep.subr.bf16.mxu0 0
        %2109 = vmatpush2.bf16.msra.mxu0 0
        %2110 = vmatprep.subr.bf16.mxu0 0
        %2111 = vmatpush2.bf16.msra.mxu0 0
        %2112 = vmatprep.subr.bf16.mxu0 0
        %2113 = vmatpush2.bf16.msra.mxu0 0
        %2114 = vmatprep.subr.bf16.mxu0 0
        %2115 = vmatpush2.bf16.msra.mxu0 0
        %2116 = vmatprep.subr.bf16.mxu0 0
        %2117 = vmatpush2.bf16.msra.mxu0 0
        %2118 = vmatprep.subr.bf16.mxu0 0
        %2119 = vmatpush2.bf16.msra.mxu0 0
        %2120 = vmatprep.subr.bf16.mxu0 0
        %2121 = vmatpush2.bf16.msra.mxu0 0
        %2122 = vmatprep.mubr.bf16.mxu0 0
        %2123 = vmatmul.mubr.bf16.gmra.mxu0 %v2088
        %v2124 = vpop.f32.mrf.mxu0
        %v2125 = vadd.f32 0.0, %v2124
        %v2126 = vpop.f32.mrf.mxu0
        %v2127 = vpop.f32.mrf.mxu0
        %v2128 = vpop.f32.mrf.mxu0
        %2129 = vdwg.mxu0
        %v2130 = vadd.f32 %v1960, %v2125
        %2131 = vrot.lane.b32.xlu0 %v1065, 64
        %v2132 = vpop.permute.xlu0 %2131
        %2133 = vrot.lane.b32.xlu0 %v1067, 64
        %v2134 = vpop.permute.xlu0 %2133
        %v2136 = vsel %vm978, %v2132, 0
        %v2139 = vsel %vm978, %v2134, 0
        %2141 = vmatprep.subr.bf16.mxu0 0
        %2142 = vmatpush1.bf16.xpose.msra.mxu0 0
        %2143 = vmatprep.subr.bf16.mxu0 0
        %2144 = vmatpush1.bf16.xpose.msra.mxu0 0
        %2145 = vmatprep.subr.bf16.mxu0 0
        %2146 = vmatpush1.bf16.xpose.msra.mxu0 0
        %2147 = vmatprep.subr.bf16.mxu0 0
        %2148 = vmatpush1.bf16.xpose.msra.mxu0 0
        %2149 = vmatprep.subr.bf16.mxu0 0
        %2150 = vmatpush1.bf16.xpose.msra.mxu0 0
        %2151 = vmatprep.subr.bf16.mxu0 0
        %2152 = vmatpush1.bf16.xpose.msra.mxu0 0
        %2153 = vmatprep.subr.bf16.mxu0 0
        %2154 = vmatpush1.bf16.xpose.msra.mxu0 0
        %2155 = vmatprep.subr.bf16.mxu0 0
        %2156 = vmatpush1.bf16.xpose.msra.mxu0 %v2139
        %2157 = vmatprep.subr.bf16.mxu0 0
        %2158 = vmatpush2.bf16.xpose.msra.mxu0 0
        %2159 = vmatprep.subr.bf16.mxu0 0
        %2160 = vmatpush2.bf16.xpose.msra.mxu0 0
        %2161 = vmatprep.subr.bf16.mxu0 0
        %2162 = vmatpush2.bf16.xpose.msra.mxu0 0
        %2163 = vmatprep.subr.bf16.mxu0 0
        %2164 = vmatpush2.bf16.xpose.msra.mxu0 0
        %2165 = vmatprep.subr.bf16.mxu0 0
        %2166 = vmatpush2.bf16.xpose.msra.mxu0 0
        %2167 = vmatprep.subr.bf16.mxu0 0
        %2168 = vmatpush2.bf16.xpose.msra.mxu0 0
        %2169 = vmatprep.subr.bf16.mxu0 0
        %2170 = vmatpush2.bf16.xpose.msra.mxu0 0
        %2171 = vmatprep.subr.bf16.mxu0 0
        %2172 = vmatpush2.bf16.xpose.msra.mxu0 0
        %2173 = vmatprep.mubr.bf16.mxu0 0
        %2174 = vmatmul.mubr.bf16.gmra.mxu0 %v2136
        %v2175 = vpop.f32.mrf.mxu0
        %v2176 = vadd.f32 0.0, %v2175
        %v2177 = vpop.f32.mrf.mxu0
        %v2178 = vpop.f32.mrf.mxu0
        %v2179 = vpop.f32.mrf.mxu0
        %2180 = vdwg.mxu0
        %v2181 = vsel %vm1181, %v2176, -inf
        %2182 = vmax.xlane.f32.xlu0 %v2181
        %v2183 = vpop.xlane.xlu0 %2182
        %v2184 = vsub.f32 %v2176, %v2183
        %v2185 = vmul.f32 %v2184, 1.442695
        %v2186 = vpow.pop %v2185
        %v2187 = vsel %vm1181, %v2186, 0.0
        %2188 = vadd.xlane.f32.xlu0 %v2187
        %v2189 = vpop.xlane.xlu0 %2188
        %v2190 = vrcp.pop %v2189
        %v2191 = vmul.f32 %v2186, %v2190
        %v2192 = vpack.c.bf16 %v2191, %v2191
        %2193 = vrot.lane.b32.xlu0 %v1134, 64
        %v2194 = vpop.permute.xlu0 %2193
        %v2196 = vsel %vm1181, %v2192, 0
        %v2199 = vsel %vm1197, %v2194, 0
        %2201 = vmatprep.subr.bf16.mxu0 0
        %2202 = vmatpush1.bf16.msra.mxu0 0
        %2203 = vmatprep.subr.bf16.mxu0 0
        %2204 = vmatpush1.bf16.msra.mxu0 0
        %2205 = vmatprep.subr.bf16.mxu0 0
        %2206 = vmatpush1.bf16.msra.mxu0 0
        %2207 = vmatprep.subr.bf16.mxu0 0
        %2208 = vmatpush1.bf16.msra.mxu0 0
        %2209 = vmatprep.subr.bf16.mxu0 0
        %2210 = vmatpush1.bf16.msra.mxu0 0
        %2211 = vmatprep.subr.bf16.mxu0 0
        %2212 = vmatpush1.bf16.msra.mxu0 0
        %2213 = vmatprep.subr.bf16.mxu0 0
        %2214 = vmatpush1.bf16.msra.mxu0 0
        %2215 = vmatprep.subr.bf16.mxu0 0
        %2216 = vmatpush1.bf16.msra.mxu0 %v2199
        %2217 = vmatprep.subr.bf16.mxu0 0
        %2218 = vmatpush2.bf16.msra.mxu0 0
        %2219 = vmatprep.subr.bf16.mxu0 0
        %2220 = vmatpush2.bf16.msra.mxu0 0
        %2221 = vmatprep.subr.bf16.mxu0 0
        %2222 = vmatpush2.bf16.msra.mxu0 0
        %2223 = vmatprep.subr.bf16.mxu0 0
        %2224 = vmatpush2.bf16.msra.mxu0 0
        %2225 = vmatprep.subr.bf16.mxu0 0
        %2226 = vmatpush2.bf16.msra.mxu0 0
        %2227 = vmatprep.subr.bf16.mxu0 0
        %2228 = vmatpush2.bf16.msra.mxu0 0
        %2229 = vmatprep.subr.bf16.mxu0 0
        %2230 = vmatpush2.bf16.msra.mxu0 0
        %2231 = vmatprep.subr.bf16.mxu0 0
        %2232 = vmatpush2.bf16.msra.mxu0 0
        %2233 = vmatprep.mubr.bf16.mxu0 0
        %2234 = vmatmul.mubr.bf16.gmra.mxu0 %v2196
        %v2235 = vpop.f32.mrf.mxu0
        %v2236 = vadd.f32 0.0, %v2235
        %v2237 = vpop.f32.mrf.mxu0
        %v2238 = vpop.f32.mrf.mxu0
        %v2239 = vpop.f32.mrf.mxu0
        %2240 = vdwg.mxu0
        %v2241 = vpack.c.bf16 %v2236, %v2236
        %v2246 = vunpack.c.l.b16 %v854
        %v2247 = vunpack.c.l.b16 %v855
        %v2248 = vunpack.c.l.b16 %v856
        %v2249 = vunpack.c.l.b16 %v857
        %v2250 = vpack.c.b16 %v2247, %v2246
        %v2251 = vpack.c.b16 %v2249, %v2248
        %v2255 = vsel %vm978, %v2241, 0
        %2257 = vmatprep.subr.bf16.mxu0 0
        %2258 = vmatpush1.bf16.msra.mxu0 0
        %2259 = vmatprep.subr.bf16.mxu0 0
        %2260 = vmatpush1.bf16.msra.mxu0 0
        %2261 = vmatprep.subr.bf16.mxu0 0
        %2262 = vmatpush1.bf16.msra.mxu0 0
        %2263 = vmatprep.subr.bf16.mxu0 0
        %2264 = vmatpush1.bf16.msra.mxu0 0
        %2265 = vmatprep.subr.bf16.mxu0 0
        %2266 = vmatpush1.bf16.msra.mxu0 0
        %2267 = vmatprep.subr.bf16.mxu0 0
        %2268 = vmatpush1.bf16.msra.mxu0 0
        %2269 = vmatprep.subr.bf16.mxu0 0
        %2270 = vmatpush1.bf16.msra.mxu0 %v2251
        %2271 = vmatprep.subr.bf16.mxu0 0
        %2272 = vmatpush1.bf16.msra.mxu0 %v2250
        %2273 = vmatprep.subr.bf16.mxu0 0
        %2274 = vmatpush2.bf16.msra.mxu0 0
        %2275 = vmatprep.subr.bf16.mxu0 0
        %2276 = vmatpush2.bf16.msra.mxu0 0
        %2277 = vmatprep.subr.bf16.mxu0 0
        %2278 = vmatpush2.bf16.msra.mxu0 0
        %2279 = vmatprep.subr.bf16.mxu0 0
        %2280 = vmatpush2.bf16.msra.mxu0 0
        %2281 = vmatprep.subr.bf16.mxu0 0
        %2282 = vmatpush2.bf16.msra.mxu0 0
        %2283 = vmatprep.subr.bf16.mxu0 0
        %2284 = vmatpush2.bf16.msra.mxu0 0
        %2285 = vmatprep.subr.bf16.mxu0 0
        %2286 = vmatpush2.bf16.msra.mxu0 0
        %2287 = vmatprep.subr.bf16.mxu0 0
        %2288 = vmatpush2.bf16.msra.mxu0 0
        %2289 = vmatprep.mubr.bf16.mxu0 0
        %2290 = vmatmul.mubr.bf16.gmra.mxu0 %v2255
        %v2291 = vpop.f32.mrf.mxu0
        %v2292 = vadd.f32 0.0, %v2291
        %v2293 = vpop.f32.mrf.mxu0
        %v2294 = vpop.f32.mrf.mxu0
        %v2295 = vpop.f32.mrf.mxu0
        %2296 = vdwg.mxu0
        %v2297 = vadd.f32 %v2130, %v2292
        %2298 = vrot.lane.b32.xlu0 %v1065, 32
        %v2299 = vpop.permute.xlu0 %2298
        %2300 = vrot.lane.b32.xlu0 %v1067, 32
        %v2301 = vpop.permute.xlu0 %2300
        %v2303 = vsel %vm978, %v2299, 0
        %v2306 = vsel %vm978, %v2301, 0
        %2308 = vmatprep.subr.bf16.mxu0 0
        %2309 = vmatpush1.bf16.xpose.msra.mxu0 0
        %2310 = vmatprep.subr.bf16.mxu0 0
        %2311 = vmatpush1.bf16.xpose.msra.mxu0 0
        %2312 = vmatprep.subr.bf16.mxu0 0
        %2313 = vmatpush1.bf16.xpose.msra.mxu0 0
        %2314 = vmatprep.subr.bf16.mxu0 0
        %2315 = vmatpush1.bf16.xpose.msra.mxu0 0
        %2316 = vmatprep.subr.bf16.mxu0 0
        %2317 = vmatpush1.bf16.xpose.msra.mxu0 0
        %2318 = vmatprep.subr.bf16.mxu0 0
        %2319 = vmatpush1.bf16.xpose.msra.mxu0 0
        %2320 = vmatprep.subr.bf16.mxu0 0
        %2321 = vmatpush1.bf16.xpose.msra.mxu0 0
        %2322 = vmatprep.subr.bf16.mxu0 0
        %2323 = vmatpush1.bf16.xpose.msra.mxu0 %v2306
        %2324 = vmatprep.subr.bf16.mxu0 0
        %2325 = vmatpush2.bf16.xpose.msra.mxu0 0
        %2326 = vmatprep.subr.bf16.mxu0 0
        %2327 = vmatpush2.bf16.xpose.msra.mxu0 0
        %2328 = vmatprep.subr.bf16.mxu0 0
        %2329 = vmatpush2.bf16.xpose.msra.mxu0 0
        %2330 = vmatprep.subr.bf16.mxu0 0
        %2331 = vmatpush2.bf16.xpose.msra.mxu0 0
        %2332 = vmatprep.subr.bf16.mxu0 0
        %2333 = vmatpush2.bf16.xpose.msra.mxu0 0
        %2334 = vmatprep.subr.bf16.mxu0 0
        %2335 = vmatpush2.bf16.xpose.msra.mxu0 0
        %2336 = vmatprep.subr.bf16.mxu0 0
        %2337 = vmatpush2.bf16.xpose.msra.mxu0 0
        %2338 = vmatprep.subr.bf16.mxu0 0
        %2339 = vmatpush2.bf16.xpose.msra.mxu0 0
        %2340 = vmatprep.mubr.bf16.mxu0 0
        %2341 = vmatmul.mubr.bf16.gmra.mxu0 %v2303
        %v2342 = vpop.f32.mrf.mxu0
        %v2343 = vadd.f32 0.0, %v2342
        %v2344 = vpop.f32.mrf.mxu0
        %v2345 = vpop.f32.mrf.mxu0
        %v2346 = vpop.f32.mrf.mxu0
        %2347 = vdwg.mxu0
        %v2348 = vsel %vm1181, %v2343, -inf
        %2349 = vmax.xlane.f32.xlu0 %v2348
        %v2350 = vpop.xlane.xlu0 %2349
        %v2351 = vsub.f32 %v2343, %v2350
        %v2352 = vmul.f32 %v2351, 1.442695
        %v2353 = vpow.pop %v2352
        %v2354 = vsel %vm1181, %v2353, 0.0
        %2355 = vadd.xlane.f32.xlu0 %v2354
        %v2356 = vpop.xlane.xlu0 %2355
        %v2357 = vrcp.pop %v2356
        %v2358 = vmul.f32 %v2353, %v2357
        %v2359 = vpack.c.bf16 %v2358, %v2358
        %2360 = vrot.lane.b32.xlu0 %v1134, 32
        %v2361 = vpop.permute.xlu0 %2360
        %v2363 = vsel %vm1181, %v2359, 0
        %v2366 = vsel %vm1197, %v2361, 0
        %2368 = vmatprep.subr.bf16.mxu0 0
        %2369 = vmatpush1.bf16.msra.mxu0 0
        %2370 = vmatprep.subr.bf16.mxu0 0
        %2371 = vmatpush1.bf16.msra.mxu0 0
        %2372 = vmatprep.subr.bf16.mxu0 0
        %2373 = vmatpush1.bf16.msra.mxu0 0
        %2374 = vmatprep.subr.bf16.mxu0 0
        %2375 = vmatpush1.bf16.msra.mxu0 0
        %2376 = vmatprep.subr.bf16.mxu0 0
        %2377 = vmatpush1.bf16.msra.mxu0 0
        %2378 = vmatprep.subr.bf16.mxu0 0
        %2379 = vmatpush1.bf16.msra.mxu0 0
        %2380 = vmatprep.subr.bf16.mxu0 0
        %2381 = vmatpush1.bf16.msra.mxu0 0
        %2382 = vmatprep.subr.bf16.mxu0 0
        %2383 = vmatpush1.bf16.msra.mxu0 %v2366
        %2384 = vmatprep.subr.bf16.mxu0 0
        %2385 = vmatpush2.bf16.msra.mxu0 0
        %2386 = vmatprep.subr.bf16.mxu0 0
        %2387 = vmatpush2.bf16.msra.mxu0 0
        %2388 = vmatprep.subr.bf16.mxu0 0
        %2389 = vmatpush2.bf16.msra.mxu0 0
        %2390 = vmatprep.subr.bf16.mxu0 0
        %2391 = vmatpush2.bf16.msra.mxu0 0
        %2392 = vmatprep.subr.bf16.mxu0 0
        %2393 = vmatpush2.bf16.msra.mxu0 0
        %2394 = vmatprep.subr.bf16.mxu0 0
        %2395 = vmatpush2.bf16.msra.mxu0 0
        %2396 = vmatprep.subr.bf16.mxu0 0
        %2397 = vmatpush2.bf16.msra.mxu0 0
        %2398 = vmatprep.subr.bf16.mxu0 0
        %2399 = vmatpush2.bf16.msra.mxu0 0
        %2400 = vmatprep.mubr.bf16.mxu0 0
        %2401 = vmatmul.mubr.bf16.gmra.mxu0 %v2363
        %v2402 = vpop.f32.mrf.mxu0
        %v2403 = vadd.f32 0.0, %v2402
        %v2404 = vpop.f32.mrf.mxu0
        %v2405 = vpop.f32.mrf.mxu0
        %v2406 = vpop.f32.mrf.mxu0
        %2407 = vdwg.mxu0
        %v2408 = vpack.c.bf16 %v2403, %v2403
        %v2413 = vunpack.c.l.b16 %v858
        %v2414 = vunpack.c.l.b16 %v859
        %v2415 = vunpack.c.l.b16 %v860
        %v2416 = vunpack.c.l.b16 %v861
        %v2417 = vpack.c.b16 %v2414, %v2413
        %v2418 = vpack.c.b16 %v2416, %v2415
        %v2422 = vsel %vm978, %v2408, 0
        %2424 = vmatprep.subr.bf16.mxu0 0
        %2425 = vmatpush1.bf16.msra.mxu0 0
        %2426 = vmatprep.subr.bf16.mxu0 0
        %2427 = vmatpush1.bf16.msra.mxu0 0
        %2428 = vmatprep.subr.bf16.mxu0 0
        %2429 = vmatpush1.bf16.msra.mxu0 0
        %2430 = vmatprep.subr.bf16.mxu0 0
        %2431 = vmatpush1.bf16.msra.mxu0 0
        %2432 = vmatprep.subr.bf16.mxu0 0
        %2433 = vmatpush1.bf16.msra.mxu0 0
        %2434 = vmatprep.subr.bf16.mxu0 0
        %2435 = vmatpush1.bf16.msra.mxu0 0
        %2436 = vmatprep.subr.bf16.mxu0 0
        %2437 = vmatpush1.bf16.msra.mxu0 %v2418
        %2438 = vmatprep.subr.bf16.mxu0 0
        %2439 = vmatpush1.bf16.msra.mxu0 %v2417
        %2440 = vmatprep.subr.bf16.mxu0 0
        %2441 = vmatpush2.bf16.msra.mxu0 0
        %2442 = vmatprep.subr.bf16.mxu0 0
        %2443 = vmatpush2.bf16.msra.mxu0 0
        %2444 = vmatprep.subr.bf16.mxu0 0
        %2445 = vmatpush2.bf16.msra.mxu0 0
        %2446 = vmatprep.subr.bf16.mxu0 0
        %2447 = vmatpush2.bf16.msra.mxu0 0
        %2448 = vmatprep.subr.bf16.mxu0 0
        %2449 = vmatpush2.bf16.msra.mxu0 0
        %2450 = vmatprep.subr.bf16.mxu0 0
        %2451 = vmatpush2.bf16.msra.mxu0 0
        %2452 = vmatprep.subr.bf16.mxu0 0
        %2453 = vmatpush2.bf16.msra.mxu0 0
        %2454 = vmatprep.subr.bf16.mxu0 0
        %2455 = vmatpush2.bf16.msra.mxu0 0
        %2456 = vmatprep.mubr.bf16.mxu0 0
        %2457 = vmatmul.mubr.bf16.gmra.mxu0 %v2422
        %v2458 = vpop.f32.mrf.mxu0
        %v2459 = vadd.f32 0.0, %v2458
        %v2460 = vpop.f32.mrf.mxu0
        %v2461 = vpop.f32.mrf.mxu0
        %v2462 = vpop.f32.mrf.mxu0
        %2463 = vdwg.mxu0
        %v2464 = vadd.f32 %v2297, %v2459
        %v2465 = vadd.f32 %v2464, %v936
        %v2466 = vsel %vm978, %v2465, 0.0
        %2467 = vadd.xlane.f32.xlu0 %v2466
        %v2468 = vpop.xlane.xlu0 %2467
        %v2469 = vrcp.pop 32.0
        %v2470 = vmul.f32 %v2468, %v2469
        %v2471 = vmul.f32 %v2465, %v2465
        %v2472 = vsel %vm978, %v2471, 0.0
        %2473 = vadd.xlane.f32.xlu0 %v2472
        %v2474 = vpop.xlane.xlu0 %2473
        %v2475 = vmul.f32 %v2474, %v2469
        %v2476 = vmul.f32 %v2470, %v2470
        %v2477 = vsub.f32 %v2475, %v2476
        %v2478 = vsub.f32 %v2465, %v2470
        %v2479 = vadd.f32 %v2477, 1e-05
        %v2480 = vrsqrt.pop %v2479
        %v2481 = vmul.f32 %v2478, %v2480
        %v2483 = vlaneseq
        %v2484 = vshrl.u32 %v2483, 7
        %v2485 = vsub.s32 0, %v2484
        %v2486 = vrot.slane %v862, %v2485
        %v2488 = vmul.f32 %v2481, %v2486
        %v2490 = vlaneseq
        %v2491 = vshrl.u32 %v2490, 7
        %v2492 = vsub.s32 0, %v2491
        %v2493 = vrot.slane %v863, %v2492
        %v2495 = vadd.f32 %v2488, %v2493
        %v2496 = vadd.f32 %v930, %v2495
        %v2497 = vsel %vm978, %v2496, 0.0
        %2498 = vadd.xlane.f32.xlu0 %v2497
        %v2499 = vpop.xlane.xlu0 %2498
        %v2500 = vmul.f32 %v2499, %v2469
        %v2501 = vmul.f32 %v2496, %v2496
        %v2502 = vsel %vm978, %v2501, 0.0
        %2503 = vadd.xlane.f32.xlu0 %v2502
        %v2504 = vpop.xlane.xlu0 %2503
        %v2505 = vmul.f32 %v2504, %v2469
        %v2506 = vmul.f32 %v2500, %v2500
        %v2507 = vsub.f32 %v2505, %v2506
        %v2508 = vsub.f32 %v2496, %v2500
        %v2509 = vadd.f32 %v2507, 1e-05
        %v2510 = vrsqrt.pop %v2509
        %v2511 = vmul.f32 %v2508, %v2510
        %v2513 = vlaneseq
        %v2514 = vshrl.u32 %v2513, 7
        %v2515 = vsub.s32 0, %v2514
        %v2516 = vrot.slane %v864, %v2515
        %v2518 = vmul.f32 %v2511, %v2516
        %v2520 = vlaneseq
        %v2521 = vshrl.u32 %v2520, 7
        %v2522 = vsub.s32 0, %v2521
        %v2523 = vrot.slane %v865, %v2522
        %v2525 = vadd.f32 %v2518, %v2523
        %v2526 = vadd.f32 %v2525, %v933
        %v2527 = vadd.f32 %v931, %v934
        %v2528 = vadd.f32 %v932, %v935
        %v2529 = vpack.c.bf16 %v2526, %v2526
        %v2534 = vunpack.c.l.b16 %v866
        %v2535 = vunpack.c.h.b16 %v866
        %v2536 = vunpack.c.l.b16 %v867
        %v2537 = vunpack.c.h.b16 %v867
        %v2538 = vunpack.c.l.b16 %v868
        %v2539 = vunpack.c.h.b16 %v868
        %v2540 = vunpack.c.l.b16 %v869
        %v2541 = vunpack.c.h.b16 %v869
        %v2542 = vpack.c.b16 %v2536, %v2534
        %v2543 = vpack.c.b16 %v2537, %v2535
        %v2544 = vpack.c.b16 %v2540, %v2538
        %v2545 = vpack.c.b16 %v2541, %v2539
        %v2551 = vsel %vm978, %v2529, 0
        %2553 = vmatprep.subr.bf16.mxu0 0
        %2554 = vmatpush1.bf16.msra.mxu0 0
        %2555 = vmatprep.subr.bf16.mxu0 0
        %2556 = vmatpush1.bf16.msra.mxu0 0
        %2557 = vmatprep.subr.bf16.mxu0 0
        %2558 = vmatpush1.bf16.msra.mxu0 0
        %2559 = vmatprep.subr.bf16.mxu0 0
        %2560 = vmatpush1.bf16.msra.mxu0 0
        %2561 = vmatprep.subr.bf16.mxu0 0
        %2562 = vmatpush1.bf16.msra.mxu0 0
        %2563 = vmatprep.subr.bf16.mxu0 0
        %2564 = vmatpush1.bf16.msra.mxu0 0
        %2565 = vmatprep.subr.bf16.mxu0 %v2545
        %2566 = vmatpush1.bf16.msra.mxu0 %v2544
        %2567 = vmatprep.subr.bf16.mxu0 %v2543
        %2568 = vmatpush1.bf16.msra.mxu0 %v2542
        %2569 = vmatprep.subr.bf16.mxu0 0
        %2570 = vmatpush2.bf16.msra.mxu0 0
        %2571 = vmatprep.subr.bf16.mxu0 0
        %2572 = vmatpush2.bf16.msra.mxu0 0
        %2573 = vmatprep.subr.bf16.mxu0 0
        %2574 = vmatpush2.bf16.msra.mxu0 0
        %2575 = vmatprep.subr.bf16.mxu0 0
        %2576 = vmatpush2.bf16.msra.mxu0 0
        %2577 = vmatprep.subr.bf16.mxu0 0
        %2578 = vmatpush2.bf16.msra.mxu0 0
        %2579 = vmatprep.subr.bf16.mxu0 0
        %2580 = vmatpush2.bf16.msra.mxu0 0
        %2581 = vmatprep.subr.bf16.mxu0 0
        %2582 = vmatpush2.bf16.msra.mxu0 0
        %2583 = vmatprep.subr.bf16.mxu0 0
        %2584 = vmatpush2.bf16.msra.mxu0 0
        %2585 = vmatprep.mubr.bf16.mxu0 0
        %2586 = vmatmul.mubr.bf16.gmra.mxu0 %v2551
        %v2587 = vpop.f32.mrf.mxu0
        %v2588 = vadd.f32 0.0, %v2587
        %v2589 = vpop.f32.mrf.mxu0
        %v2590 = vadd.f32 0.0, %v2589
        %v2591 = vpop.f32.mrf.mxu0
        %v2592 = vpop.f32.mrf.mxu0
        %2593 = vdwg.mxu0
        %v2594 = vpack.c.bf16 %v2588, %v2588
        %v2595 = vpack.c.bf16 %v2590, %v2590
        %v2596 = vpack.c.bf16 %v2528, %v2527
        %v2601 = vunpack.c.l.b16 %v870
        %v2602 = vunpack.c.h.b16 %v870
        %v2603 = vunpack.c.l.b16 %v871
        %v2604 = vunpack.c.h.b16 %v871
        %v2605 = vunpack.c.l.b16 %v872
        %v2606 = vunpack.c.h.b16 %v872
        %v2607 = vunpack.c.l.b16 %v873
        %v2608 = vunpack.c.h.b16 %v873
        %v2609 = vpack.c.b16 %v2603, %v2601
        %v2610 = vpack.c.b16 %v2604, %v2602
        %v2611 = vpack.c.b16 %v2607, %v2605
        %v2612 = vpack.c.b16 %v2608, %v2606
        %v2618 = vsel %vm978, %v2596, 0
        %2620 = vmatprep.subr.bf16.mxu0 0
        %2621 = vmatpush1.bf16.msra.mxu0 0
        %2622 = vmatprep.subr.bf16.mxu0 0
        %2623 = vmatpush1.bf16.msra.mxu0 0
        %2624 = vmatprep.subr.bf16.mxu0 0
        %2625 = vmatpush1.bf16.msra.mxu0 0
        %2626 = vmatprep.subr.bf16.mxu0 0
        %2627 = vmatpush1.bf16.msra.mxu0 0
        %2628 = vmatprep.subr.bf16.mxu0 0
        %2629 = vmatpush1.bf16.msra.mxu0 0
        %2630 = vmatprep.subr.bf16.mxu0 0
        %2631 = vmatpush1.bf16.msra.mxu0 0
        %2632 = vmatprep.subr.bf16.mxu0 %v2612
        %2633 = vmatpush1.bf16.msra.mxu0 %v2611
        %2634 = vmatprep.subr.bf16.mxu0 %v2610
        %2635 = vmatpush1.bf16.msra.mxu0 %v2609
        %2636 = vmatprep.subr.bf16.mxu0 0
        %2637 = vmatpush2.bf16.msra.mxu0 0
        %2638 = vmatprep.subr.bf16.mxu0 0
        %2639 = vmatpush2.bf16.msra.mxu0 0
        %2640 = vmatprep.subr.bf16.mxu0 0
        %2641 = vmatpush2.bf16.msra.mxu0 0
        %2642 = vmatprep.subr.bf16.mxu0 0
        %2643 = vmatpush2.bf16.msra.mxu0 0
        %2644 = vmatprep.subr.bf16.mxu0 0
        %2645 = vmatpush2.bf16.msra.mxu0 0
        %2646 = vmatprep.subr.bf16.mxu0 0
        %2647 = vmatpush2.bf16.msra.mxu0 0
        %2648 = vmatprep.subr.bf16.mxu0 0
        %2649 = vmatpush2.bf16.msra.mxu0 0
        %2650 = vmatprep.subr.bf16.mxu0 0
        %2651 = vmatpush2.bf16.msra.mxu0 0
        %2652 = vmatprep.mubr.bf16.mxu0 0
        %2653 = vmatmul.mubr.bf16.gmra.mxu0 %v2618
        %v2654 = vpop.f32.mrf.mxu0
        %v2655 = vadd.f32 0.0, %v2654
        %v2656 = vpop.f32.mrf.mxu0
        %v2657 = vadd.f32 0.0, %v2656
        %v2658 = vpop.f32.mrf.mxu0
        %v2659 = vadd.f32 0.0, %v2658
        %v2660 = vpop.f32.mrf.mxu0
        %v2661 = vadd.f32 0.0, %v2660
        %2662 = vdwg.mxu0
        %v2663 = vpack.c.bf16 %v2659, %v2655
        %v2664 = vpack.c.bf16 %v2661, %v2657
        %v2665 = vpack.c.bf16 %v932, %v931
        %v2670 = vunpack.c.l.b16 %v874
        %v2671 = vunpack.c.h.b16 %v874
        %v2672 = vunpack.c.l.b16 %v875
        %v2673 = vunpack.c.h.b16 %v875
        %v2674 = vunpack.c.l.b16 %v876
        %v2675 = vunpack.c.h.b16 %v876
        %v2676 = vunpack.c.l.b16 %v877
        %v2677 = vunpack.c.h.b16 %v877
        %v2678 = vpack.c.b16 %v2672, %v2670
        %v2679 = vpack.c.b16 %v2673, %v2671
        %v2680 = vpack.c.b16 %v2676, %v2674
        %v2681 = vpack.c.b16 %v2677, %v2675
        %v2687 = vsel %vm978, %v2665, 0
        %2689 = vmatprep.subr.bf16.mxu0 0
        %2690 = vmatpush1.bf16.msra.mxu0 0
        %2691 = vmatprep.subr.bf16.mxu0 0
        %2692 = vmatpush1.bf16.msra.mxu0 0
        %2693 = vmatprep.subr.bf16.mxu0 0
        %2694 = vmatpush1.bf16.msra.mxu0 0
        %2695 = vmatprep.subr.bf16.mxu0 0
        %2696 = vmatpush1.bf16.msra.mxu0 0
        %2697 = vmatprep.subr.bf16.mxu0 0
        %2698 = vmatpush1.bf16.msra.mxu0 0
        %2699 = vmatprep.subr.bf16.mxu0 0
        %2700 = vmatpush1.bf16.msra.mxu0 0
        %2701 = vmatprep.subr.bf16.mxu0 %v2681
        %2702 = vmatpush1.bf16.msra.mxu0 %v2680
        %2703 = vmatprep.subr.bf16.mxu0 %v2679
        %2704 = vmatpush1.bf16.msra.mxu0 %v2678
        %2705 = vmatprep.subr.bf16.mxu0 0
        %2706 = vmatpush2.bf16.msra.mxu0 0
        %2707 = vmatprep.subr.bf16.mxu0 0
        %2708 = vmatpush2.bf16.msra.mxu0 0
        %2709 = vmatprep.subr.bf16.mxu0 0
        %2710 = vmatpush2.bf16.msra.mxu0 0
        %2711 = vmatprep.subr.bf16.mxu0 0
        %2712 = vmatpush2.bf16.msra.mxu0 0
        %2713 = vmatprep.subr.bf16.mxu0 0
        %2714 = vmatpush2.bf16.msra.mxu0 0
        %2715 = vmatprep.subr.bf16.mxu0 0
        %2716 = vmatpush2.bf16.msra.mxu0 0
        %2717 = vmatprep.subr.bf16.mxu0 0
        %2718 = vmatpush2.bf16.msra.mxu0 0
        %2719 = vmatprep.subr.bf16.mxu0 0
        %2720 = vmatpush2.bf16.msra.mxu0 0
        %2721 = vmatprep.mubr.bf16.mxu0 0
        %2722 = vmatmul.mubr.bf16.gmra.mxu0 %v2687
        %v2723 = vpop.f32.mrf.mxu0
        %v2724 = vadd.f32 0.0, %v2723
        %v2725 = vpop.f32.mrf.mxu0
        %v2726 = vadd.f32 0.0, %v2725
        %v2727 = vpop.f32.mrf.mxu0
        %v2728 = vadd.f32 0.0, %v2727
        %v2729 = vpop.f32.mrf.mxu0
        %v2730 = vadd.f32 0.0, %v2729
        %2731 = vdwg.mxu0
        %v2732 = vpack.c.bf16 %v2728, %v2724
        %v2733 = vpack.c.bf16 %v2730, %v2726
        %v2735 = vsel %vm978, %v2594, 0
        %v2738 = vsel %vm978, %v2663, 0
        %2740 = vmatprep.subr.bf16.mxu0 0
        %2741 = vmatpush1.bf16.xpose.msra.mxu0 0
        %2742 = vmatprep.subr.bf16.mxu0 0
        %2743 = vmatpush1.bf16.xpose.msra.mxu0 0
        %2744 = vmatprep.subr.bf16.mxu0 0
        %2745 = vmatpush1.bf16.xpose.msra.mxu0 0
        %2746 = vmatprep.subr.bf16.mxu0 0
        %2747 = vmatpush1.bf16.xpose.msra.mxu0 0
        %2748 = vmatprep.subr.bf16.mxu0 0
        %2749 = vmatpush1.bf16.xpose.msra.mxu0 0
        %2750 = vmatprep.subr.bf16.mxu0 0
        %2751 = vmatpush1.bf16.xpose.msra.mxu0 0
        %2752 = vmatprep.subr.bf16.mxu0 0
        %2753 = vmatpush1.bf16.xpose.msra.mxu0 0
        %2754 = vmatprep.subr.bf16.mxu0 0
        %2755 = vmatpush1.bf16.xpose.msra.mxu0 %v2738
        %2756 = vmatprep.subr.bf16.mxu0 0
        %2757 = vmatpush2.bf16.xpose.msra.mxu0 0
        %2758 = vmatprep.subr.bf16.mxu0 0
        %2759 = vmatpush2.bf16.xpose.msra.mxu0 0
        %2760 = vmatprep.subr.bf16.mxu0 0
        %2761 = vmatpush2.bf16.xpose.msra.mxu0 0
        %2762 = vmatprep.subr.bf16.mxu0 0
        %2763 = vmatpush2.bf16.xpose.msra.mxu0 0
        %2764 = vmatprep.subr.bf16.mxu0 0
        %2765 = vmatpush2.bf16.xpose.msra.mxu0 0
        %2766 = vmatprep.subr.bf16.mxu0 0
        %2767 = vmatpush2.bf16.xpose.msra.mxu0 0
        %2768 = vmatprep.subr.bf16.mxu0 0
        %2769 = vmatpush2.bf16.xpose.msra.mxu0 0
        %2770 = vmatprep.subr.bf16.mxu0 0
        %2771 = vmatpush2.bf16.xpose.msra.mxu0 0
        %2772 = vmatprep.mubr.bf16.mxu0 0
        %2773 = vmatmul.mubr.bf16.gmra.mxu0 %v2735
        %v2774 = vpop.f32.mrf.mxu0
        %v2775 = vadd.f32 0.0, %v2774
        %v2776 = vpop.f32.mrf.mxu0
        %v2777 = vpop.f32.mrf.mxu0
        %v2778 = vpop.f32.mrf.mxu0
        %2779 = vdwg.mxu0
        %vm2780 = vcmask 130048
        %v2781 = vsel %vm2780, %v2775, -inf
        %2782 = vmax.xlane.f32.xlu0 %v2781
        %v2783 = vpop.xlane.xlu0 %2782
        %v2784 = vsub.f32 %v2775, %v2783
        %v2785 = vmul.f32 %v2784, 1.442695
        %v2786 = vpow.pop %v2785
        %v2787 = vsel %vm2780, %v2786, 0.0
        %2788 = vadd.xlane.f32.xlu0 %v2787
        %v2789 = vpop.xlane.xlu0 %2788
        %v2790 = vrcp.pop %v2789
        %v2791 = vmul.f32 %v2786, %v2790
        %v2792 = vpack.c.bf16 %v2791, %v2791
        %v2794 = vsel %vm2780, %v2792, 0
        %2796 = vmatprep.subr.bf16.mxu0 0
        %2797 = vmatpush1.bf16.msra.mxu0 0
        %2798 = vmatprep.subr.bf16.mxu0 0
        %2799 = vmatpush1.bf16.msra.mxu0 0
        %2800 = vmatprep.subr.bf16.mxu0 0
        %2801 = vmatpush1.bf16.msra.mxu0 0
        %2802 = vmatprep.subr.bf16.mxu0 0
        %2803 = vmatpush1.bf16.msra.mxu0 0
        %2804 = vmatprep.subr.bf16.mxu0 0
        %2805 = vmatpush1.bf16.msra.mxu0 0
        %2806 = vmatprep.subr.bf16.mxu0 0
        %2807 = vmatpush1.bf16.msra.mxu0 0
        %2808 = vmatprep.subr.bf16.mxu0 0
        %2809 = vmatpush1.bf16.msra.mxu0 0
        %2810 = vmatprep.subr.bf16.mxu0 0
        %2811 = vmatpush1.bf16.msra.mxu0 %v2732
        %2812 = vmatprep.subr.bf16.mxu0 0
        %2813 = vmatpush2.bf16.msra.mxu0 0
        %2814 = vmatprep.subr.bf16.mxu0 0
        %2815 = vmatpush2.bf16.msra.mxu0 0
        %2816 = vmatprep.subr.bf16.mxu0 0
        %2817 = vmatpush2.bf16.msra.mxu0 0
        %2818 = vmatprep.subr.bf16.mxu0 0
        %2819 = vmatpush2.bf16.msra.mxu0 0
        %2820 = vmatprep.subr.bf16.mxu0 0
        %2821 = vmatpush2.bf16.msra.mxu0 0
        %2822 = vmatprep.subr.bf16.mxu0 0
        %2823 = vmatpush2.bf16.msra.mxu0 0
        %2824 = vmatprep.subr.bf16.mxu0 0
        %2825 = vmatpush2.bf16.msra.mxu0 0
        %2826 = vmatprep.subr.bf16.mxu0 0
        %2827 = vmatpush2.bf16.msra.mxu0 0
        %2828 = vmatprep.mubr.bf16.mxu0 0
        %2829 = vmatmul.mubr.bf16.gmra.mxu0 %v2794
        %v2830 = vpop.f32.mrf.mxu0
        %v2831 = vadd.f32 0.0, %v2830
        %v2832 = vpop.f32.mrf.mxu0
        %v2833 = vpop.f32.mrf.mxu0
        %v2834 = vpop.f32.mrf.mxu0
        %2835 = vdwg.mxu0
        %v2836 = vpack.c.bf16 %v2831, %v2831
        %2838 = vrot.lane.b32.xlu0 %v2594, 96
        %v2839 = vpop.permute.xlu0 %2838
        %2841 = vrot.lane.b32.xlu0 %v2663, 96
        %v2842 = vpop.permute.xlu0 %2841
        %v2844 = vsel %vm978, %v2839, 0
        %v2847 = vsel %vm978, %v2842, 0
        %2849 = vmatprep.subr.bf16.mxu0 0
        %2850 = vmatpush1.bf16.xpose.msra.mxu0 0
        %2851 = vmatprep.subr.bf16.mxu0 0
        %2852 = vmatpush1.bf16.xpose.msra.mxu0 0
        %2853 = vmatprep.subr.bf16.mxu0 0
        %2854 = vmatpush1.bf16.xpose.msra.mxu0 0
        %2855 = vmatprep.subr.bf16.mxu0 0
        %2856 = vmatpush1.bf16.xpose.msra.mxu0 0
        %2857 = vmatprep.subr.bf16.mxu0 0
        %2858 = vmatpush1.bf16.xpose.msra.mxu0 0
        %2859 = vmatprep.subr.bf16.mxu0 0
        %2860 = vmatpush1.bf16.xpose.msra.mxu0 0
        %2861 = vmatprep.subr.bf16.mxu0 0
        %2862 = vmatpush1.bf16.xpose.msra.mxu0 0
        %2863 = vmatprep.subr.bf16.mxu0 0
        %2864 = vmatpush1.bf16.xpose.msra.mxu0 %v2847
        %2865 = vmatprep.subr.bf16.mxu0 0
        %2866 = vmatpush2.bf16.xpose.msra.mxu0 0
        %2867 = vmatprep.subr.bf16.mxu0 0
        %2868 = vmatpush2.bf16.xpose.msra.mxu0 0
        %2869 = vmatprep.subr.bf16.mxu0 0
        %2870 = vmatpush2.bf16.xpose.msra.mxu0 0
        %2871 = vmatprep.subr.bf16.mxu0 0
        %2872 = vmatpush2.bf16.xpose.msra.mxu0 0
        %2873 = vmatprep.subr.bf16.mxu0 0
        %2874 = vmatpush2.bf16.xpose.msra.mxu0 0
        %2875 = vmatprep.subr.bf16.mxu0 0
        %2876 = vmatpush2.bf16.xpose.msra.mxu0 0
        %2877 = vmatprep.subr.bf16.mxu0 0
        %2878 = vmatpush2.bf16.xpose.msra.mxu0 0
        %2879 = vmatprep.subr.bf16.mxu0 0
        %2880 = vmatpush2.bf16.xpose.msra.mxu0 0
        %2881 = vmatprep.mubr.bf16.mxu0 0
        %2882 = vmatmul.mubr.bf16.gmra.mxu0 %v2844
        %v2883 = vpop.f32.mrf.mxu0
        %v2884 = vadd.f32 0.0, %v2883
        %v2885 = vpop.f32.mrf.mxu0
        %v2886 = vpop.f32.mrf.mxu0
        %v2887 = vpop.f32.mrf.mxu0
        %2888 = vdwg.mxu0
        %v2889 = vsel %vm2780, %v2884, -inf
        %2890 = vmax.xlane.f32.xlu0 %v2889
        %v2891 = vpop.xlane.xlu0 %2890
        %v2892 = vsub.f32 %v2884, %v2891
        %v2893 = vmul.f32 %v2892, 1.442695
        %v2894 = vpow.pop %v2893
        %v2895 = vsel %vm2780, %v2894, 0.0
        %2896 = vadd.xlane.f32.xlu0 %v2895
        %v2897 = vpop.xlane.xlu0 %2896
        %v2898 = vrcp.pop %v2897
        %v2899 = vmul.f32 %v2894, %v2898
        %v2900 = vpack.c.bf16 %v2899, %v2899
        %2902 = vrot.lane.b32.xlu0 %v2732, 96
        %v2903 = vpop.permute.xlu0 %2902
        %v2906 = vsel %vm2780, %v2900, 0
        %2908 = vmatprep.subr.bf16.mxu0 0
        %2909 = vmatpush1.bf16.msra.mxu0 0
        %2910 = vmatprep.subr.bf16.mxu0 0
        %2911 = vmatpush1.bf16.msra.mxu0 0
        %2912 = vmatprep.subr.bf16.mxu0 0
        %2913 = vmatpush1.bf16.msra.mxu0 0
        %2914 = vmatprep.subr.bf16.mxu0 0
        %2915 = vmatpush1.bf16.msra.mxu0 0
        %2916 = vmatprep.subr.bf16.mxu0 0
        %2917 = vmatpush1.bf16.msra.mxu0 0
        %2918 = vmatprep.subr.bf16.mxu0 0
        %2919 = vmatpush1.bf16.msra.mxu0 0
        %2920 = vmatprep.subr.bf16.mxu0 0
        %2921 = vmatpush1.bf16.msra.mxu0 0
        %2922 = vmatprep.subr.bf16.mxu0 0
        %2923 = vmatpush1.bf16.msra.mxu0 %v2903
        %2924 = vmatprep.subr.bf16.mxu0 0
        %2925 = vmatpush2.bf16.msra.mxu0 0
        %2926 = vmatprep.subr.bf16.mxu0 0
        %2927 = vmatpush2.bf16.msra.mxu0 0
        %2928 = vmatprep.subr.bf16.mxu0 0
        %2929 = vmatpush2.bf16.msra.mxu0 0
        %2930 = vmatprep.subr.bf16.mxu0 0
        %2931 = vmatpush2.bf16.msra.mxu0 0
        %2932 = vmatprep.subr.bf16.mxu0 0
        %2933 = vmatpush2.bf16.msra.mxu0 0
        %2934 = vmatprep.subr.bf16.mxu0 0
        %2935 = vmatpush2.bf16.msra.mxu0 0
        %2936 = vmatprep.subr.bf16.mxu0 0
        %2937 = vmatpush2.bf16.msra.mxu0 0
        %2938 = vmatprep.subr.bf16.mxu0 0
        %2939 = vmatpush2.bf16.msra.mxu0 0
        %2940 = vmatprep.mubr.bf16.mxu0 0
        %2941 = vmatmul.mubr.bf16.gmra.mxu0 %v2906
        %v2942 = vpop.f32.mrf.mxu0
        %v2943 = vadd.f32 0.0, %v2942
        %v2944 = vpop.f32.mrf.mxu0
        %v2945 = vpop.f32.mrf.mxu0
        %v2946 = vpop.f32.mrf.mxu0
        %2947 = vdwg.mxu0
        %v2948 = vpack.c.bf16 %v2943, %v2943
        %v2953 = vunpack.c.l.b16 %v882
        %v2954 = vunpack.c.l.b16 %v883
        %v2955 = vunpack.c.l.b16 %v884
        %v2956 = vunpack.c.l.b16 %v885
        %v2957 = vpack.c.b16 %v2954, %v2953
        %v2958 = vpack.c.b16 %v2956, %v2955
        %v2962 = vsel %vm978, %v2948, 0
        %2964 = vmatprep.subr.bf16.mxu0 0
        %2965 = vmatpush1.bf16.msra.mxu0 0
        %2966 = vmatprep.subr.bf16.mxu0 0
        %2967 = vmatpush1.bf16.msra.mxu0 0
        %2968 = vmatprep.subr.bf16.mxu0 0
        %2969 = vmatpush1.bf16.msra.mxu0 0
        %2970 = vmatprep.subr.bf16.mxu0 0
        %2971 = vmatpush1.bf16.msra.mxu0 0
        %2972 = vmatprep.subr.bf16.mxu0 0
        %2973 = vmatpush1.bf16.msra.mxu0 0
        %2974 = vmatprep.subr.bf16.mxu0 0
        %2975 = vmatpush1.bf16.msra.mxu0 0
        %2976 = vmatprep.subr.bf16.mxu0 0
        %2977 = vmatpush1.bf16.msra.mxu0 %v2958
        %2978 = vmatprep.subr.bf16.mxu0 0
        %2979 = vmatpush1.bf16.msra.mxu0 %v2957
        %2980 = vmatprep.subr.bf16.mxu0 0
        %2981 = vmatpush2.bf16.msra.mxu0 0
        %2982 = vmatprep.subr.bf16.mxu0 0
        %2983 = vmatpush2.bf16.msra.mxu0 0
        %2984 = vmatprep.subr.bf16.mxu0 0
        %2985 = vmatpush2.bf16.msra.mxu0 0
        %2986 = vmatprep.subr.bf16.mxu0 0
        %2987 = vmatpush2.bf16.msra.mxu0 0
        %2988 = vmatprep.subr.bf16.mxu0 0
        %2989 = vmatpush2.bf16.msra.mxu0 0
        %2990 = vmatprep.subr.bf16.mxu0 0
        %2991 = vmatpush2.bf16.msra.mxu0 0
        %2992 = vmatprep.subr.bf16.mxu0 0
        %2993 = vmatpush2.bf16.msra.mxu0 0
        %2994 = vmatprep.subr.bf16.mxu0 0
        %2995 = vmatpush2.bf16.msra.mxu0 0
        %2996 = vmatprep.mubr.bf16.mxu0 0
        %2997 = vmatmul.mubr.bf16.gmra.mxu0 %v2962
        %v2998 = vpop.f32.mrf.mxu0
        %v2999 = vadd.f32 0.0, %v2998
        %v3000 = vpop.f32.mrf.mxu0
        %v3001 = vpop.f32.mrf.mxu0
        %v3002 = vpop.f32.mrf.mxu0
        %3003 = vdwg.mxu0
        %v3008 = vunpack.c.l.b16 %v878
        %v3009 = vunpack.c.l.b16 %v879
        %v3010 = vunpack.c.l.b16 %v880
        %v3011 = vunpack.c.l.b16 %v881
        %v3012 = vpack.c.b16 %v3009, %v3008
        %v3013 = vpack.c.b16 %v3011, %v3010
        %v3017 = vsel %vm978, %v2836, 0
        %3019 = vmatprep.subr.bf16.mxu0 0
        %3020 = vmatpush1.bf16.msra.mxu0 0
        %3021 = vmatprep.subr.bf16.mxu0 0
        %3022 = vmatpush1.bf16.msra.mxu0 0
        %3023 = vmatprep.subr.bf16.mxu0 0
        %3024 = vmatpush1.bf16.msra.mxu0 0
        %3025 = vmatprep.subr.bf16.mxu0 0
        %3026 = vmatpush1.bf16.msra.mxu0 0
        %3027 = vmatprep.subr.bf16.mxu0 0
        %3028 = vmatpush1.bf16.msra.mxu0 0
        %3029 = vmatprep.subr.bf16.mxu0 0
        %3030 = vmatpush1.bf16.msra.mxu0 0
        %3031 = vmatprep.subr.bf16.mxu0 0
        %3032 = vmatpush1.bf16.msra.mxu0 %v3013
        %3033 = vmatprep.subr.bf16.mxu0 0
        %3034 = vmatpush1.bf16.msra.mxu0 %v3012
        %3035 = vmatprep.subr.bf16.mxu0 0
        %3036 = vmatpush2.bf16.msra.mxu0 0
        %3037 = vmatprep.subr.bf16.mxu0 0
        %3038 = vmatpush2.bf16.msra.mxu0 0
        %3039 = vmatprep.subr.bf16.mxu0 0
        %3040 = vmatpush2.bf16.msra.mxu0 0
        %3041 = vmatprep.subr.bf16.mxu0 0
        %3042 = vmatpush2.bf16.msra.mxu0 0
        %3043 = vmatprep.subr.bf16.mxu0 0
        %3044 = vmatpush2.bf16.msra.mxu0 0
        %3045 = vmatprep.subr.bf16.mxu0 0
        %3046 = vmatpush2.bf16.msra.mxu0 0
        %3047 = vmatprep.subr.bf16.mxu0 0
        %3048 = vmatpush2.bf16.msra.mxu0 0
        %3049 = vmatprep.subr.bf16.mxu0 0
        %3050 = vmatpush2.bf16.msra.mxu0 0
        %3051 = vmatprep.mubr.bf16.mxu0 0
        %3052 = vmatmul.mubr.bf16.gmra.mxu0 %v3017
        %v3053 = vpop.f32.mrf.mxu0
        %v3054 = vadd.f32 %v2999, %v3053
        %v3055 = vpop.f32.mrf.mxu0
        %v3056 = vpop.f32.mrf.mxu0
        %v3057 = vpop.f32.mrf.mxu0
        %3058 = vdwg.mxu0
        %3059 = vrot.lane.b32.xlu0 %v2594, 64
        %v3060 = vpop.permute.xlu0 %3059
        %3061 = vrot.lane.b32.xlu0 %v2663, 64
        %v3062 = vpop.permute.xlu0 %3061
        %v3064 = vsel %vm978, %v3060, 0
        %v3067 = vsel %vm978, %v3062, 0
        %3069 = vmatprep.subr.bf16.mxu0 0
        %3070 = vmatpush1.bf16.xpose.msra.mxu0 0
        %3071 = vmatprep.subr.bf16.mxu0 0
        %3072 = vmatpush1.bf16.xpose.msra.mxu0 0
        %3073 = vmatprep.subr.bf16.mxu0 0
        %3074 = vmatpush1.bf16.xpose.msra.mxu0 0
        %3075 = vmatprep.subr.bf16.mxu0 0
        %3076 = vmatpush1.bf16.xpose.msra.mxu0 0
        %3077 = vmatprep.subr.bf16.mxu0 0
        %3078 = vmatpush1.bf16.xpose.msra.mxu0 0
        %3079 = vmatprep.subr.bf16.mxu0 0
        %3080 = vmatpush1.bf16.xpose.msra.mxu0 0
        %3081 = vmatprep.subr.bf16.mxu0 0
        %3082 = vmatpush1.bf16.xpose.msra.mxu0 0
        %3083 = vmatprep.subr.bf16.mxu0 0
        %3084 = vmatpush1.bf16.xpose.msra.mxu0 %v3067
        %3085 = vmatprep.subr.bf16.mxu0 0
        %3086 = vmatpush2.bf16.xpose.msra.mxu0 0
        %3087 = vmatprep.subr.bf16.mxu0 0
        %3088 = vmatpush2.bf16.xpose.msra.mxu0 0
        %3089 = vmatprep.subr.bf16.mxu0 0
        %3090 = vmatpush2.bf16.xpose.msra.mxu0 0
        %3091 = vmatprep.subr.bf16.mxu0 0
        %3092 = vmatpush2.bf16.xpose.msra.mxu0 0
        %3093 = vmatprep.subr.bf16.mxu0 0
        %3094 = vmatpush2.bf16.xpose.msra.mxu0 0
        %3095 = vmatprep.subr.bf16.mxu0 0
        %3096 = vmatpush2.bf16.xpose.msra.mxu0 0
        %3097 = vmatprep.subr.bf16.mxu0 0
        %3098 = vmatpush2.bf16.xpose.msra.mxu0 0
        %3099 = vmatprep.subr.bf16.mxu0 0
        %3100 = vmatpush2.bf16.xpose.msra.mxu0 0
        %3101 = vmatprep.mubr.bf16.mxu0 0
        %3102 = vmatmul.mubr.bf16.gmra.mxu0 %v3064
        %v3103 = vpop.f32.mrf.mxu0
        %v3104 = vadd.f32 0.0, %v3103
        %v3105 = vpop.f32.mrf.mxu0
        %v3106 = vpop.f32.mrf.mxu0
        %v3107 = vpop.f32.mrf.mxu0
        %3108 = vdwg.mxu0
        %v3109 = vsel %vm2780, %v3104, -inf
        %3110 = vmax.xlane.f32.xlu0 %v3109
        %v3111 = vpop.xlane.xlu0 %3110
        %v3112 = vsub.f32 %v3104, %v3111
        %v3113 = vmul.f32 %v3112, 1.442695
        %v3114 = vpow.pop %v3113
        %v3115 = vsel %vm2780, %v3114, 0.0
        %3116 = vadd.xlane.f32.xlu0 %v3115
        %v3117 = vpop.xlane.xlu0 %3116
        %v3118 = vrcp.pop %v3117
        %v3119 = vmul.f32 %v3114, %v3118
        %v3120 = vpack.c.bf16 %v3119, %v3119
        %3121 = vrot.lane.b32.xlu0 %v2732, 64
        %v3122 = vpop.permute.xlu0 %3121
        %v3125 = vsel %vm2780, %v3120, 0
        %3127 = vmatprep.subr.bf16.mxu0 0
        %3128 = vmatpush1.bf16.msra.mxu0 0
        %3129 = vmatprep.subr.bf16.mxu0 0
        %3130 = vmatpush1.bf16.msra.mxu0 0
        %3131 = vmatprep.subr.bf16.mxu0 0
        %3132 = vmatpush1.bf16.msra.mxu0 0
        %3133 = vmatprep.subr.bf16.mxu0 0
        %3134 = vmatpush1.bf16.msra.mxu0 0
        %3135 = vmatprep.subr.bf16.mxu0 0
        %3136 = vmatpush1.bf16.msra.mxu0 0
        %3137 = vmatprep.subr.bf16.mxu0 0
        %3138 = vmatpush1.bf16.msra.mxu0 0
        %3139 = vmatprep.subr.bf16.mxu0 0
        %3140 = vmatpush1.bf16.msra.mxu0 0
        %3141 = vmatprep.subr.bf16.mxu0 0
        %3142 = vmatpush1.bf16.msra.mxu0 %v3122
        %3143 = vmatprep.subr.bf16.mxu0 0
        %3144 = vmatpush2.bf16.msra.mxu0 0
        %3145 = vmatprep.subr.bf16.mxu0 0
        %3146 = vmatpush2.bf16.msra.mxu0 0
        %3147 = vmatprep.subr.bf16.mxu0 0
        %3148 = vmatpush2.bf16.msra.mxu0 0
        %3149 = vmatprep.subr.bf16.mxu0 0
        %3150 = vmatpush2.bf16.msra.mxu0 0
        %3151 = vmatprep.subr.bf16.mxu0 0
        %3152 = vmatpush2.bf16.msra.mxu0 0
        %3153 = vmatprep.subr.bf16.mxu0 0
        %3154 = vmatpush2.bf16.msra.mxu0 0
        %3155 = vmatprep.subr.bf16.mxu0 0
        %3156 = vmatpush2.bf16.msra.mxu0 0
        %3157 = vmatprep.subr.bf16.mxu0 0
        %3158 = vmatpush2.bf16.msra.mxu0 0
        %3159 = vmatprep.mubr.bf16.mxu0 0
        %3160 = vmatmul.mubr.bf16.gmra.mxu0 %v3125
        %v3161 = vpop.f32.mrf.mxu0
        %v3162 = vadd.f32 0.0, %v3161
        %v3163 = vpop.f32.mrf.mxu0
        %v3164 = vpop.f32.mrf.mxu0
        %v3165 = vpop.f32.mrf.mxu0
        %3166 = vdwg.mxu0
        %v3167 = vpack.c.bf16 %v3162, %v3162
        %v3172 = vunpack.c.l.b16 %v886
        %v3173 = vunpack.c.l.b16 %v887
        %v3174 = vunpack.c.l.b16 %v888
        %v3175 = vunpack.c.l.b16 %v889
        %v3176 = vpack.c.b16 %v3173, %v3172
        %v3177 = vpack.c.b16 %v3175, %v3174
        %v3181 = vsel %vm978, %v3167, 0
        %3183 = vmatprep.subr.bf16.mxu0 0
        %3184 = vmatpush1.bf16.msra.mxu0 0
        %3185 = vmatprep.subr.bf16.mxu0 0
        %3186 = vmatpush1.bf16.msra.mxu0 0
        %3187 = vmatprep.subr.bf16.mxu0 0
        %3188 = vmatpush1.bf16.msra.mxu0 0
        %3189 = vmatprep.subr.bf16.mxu0 0
        %3190 = vmatpush1.bf16.msra.mxu0 0
        %3191 = vmatprep.subr.bf16.mxu0 0
        %3192 = vmatpush1.bf16.msra.mxu0 0
        %3193 = vmatprep.subr.bf16.mxu0 0
        %3194 = vmatpush1.bf16.msra.mxu0 0
        %3195 = vmatprep.subr.bf16.mxu0 0
        %3196 = vmatpush1.bf16.msra.mxu0 %v3177
        %3197 = vmatprep.subr.bf16.mxu0 0
        %3198 = vmatpush1.bf16.msra.mxu0 %v3176
        %3199 = vmatprep.subr.bf16.mxu0 0
        %3200 = vmatpush2.bf16.msra.mxu0 0
        %3201 = vmatprep.subr.bf16.mxu0 0
        %3202 = vmatpush2.bf16.msra.mxu0 0
        %3203 = vmatprep.subr.bf16.mxu0 0
        %3204 = vmatpush2.bf16.msra.mxu0 0
        %3205 = vmatprep.subr.bf16.mxu0 0
        %3206 = vmatpush2.bf16.msra.mxu0 0
        %3207 = vmatprep.subr.bf16.mxu0 0
        %3208 = vmatpush2.bf16.msra.mxu0 0
        %3209 = vmatprep.subr.bf16.mxu0 0
        %3210 = vmatpush2.bf16.msra.mxu0 0
        %3211 = vmatprep.subr.bf16.mxu0 0
        %3212 = vmatpush2.bf16.msra.mxu0 0
        %3213 = vmatprep.subr.bf16.mxu0 0
        %3214 = vmatpush2.bf16.msra.mxu0 0
        %3215 = vmatprep.mubr.bf16.mxu0 0
        %3216 = vmatmul.mubr.bf16.gmra.mxu0 %v3181
        %v3217 = vpop.f32.mrf.mxu0
        %v3218 = vadd.f32 0.0, %v3217
        %v3219 = vpop.f32.mrf.mxu0
        %v3220 = vpop.f32.mrf.mxu0
        %v3221 = vpop.f32.mrf.mxu0
        %3222 = vdwg.mxu0
        %v3223 = vadd.f32 %v3054, %v3218
        %3224 = vrot.lane.b32.xlu0 %v2594, 32
        %v3225 = vpop.permute.xlu0 %3224
        %3226 = vrot.lane.b32.xlu0 %v2663, 32
        %v3227 = vpop.permute.xlu0 %3226
        %v3229 = vsel %vm978, %v3225, 0
        %v3232 = vsel %vm978, %v3227, 0
        %3234 = vmatprep.subr.bf16.mxu0 0
        %3235 = vmatpush1.bf16.xpose.msra.mxu0 0
        %3236 = vmatprep.subr.bf16.mxu0 0
        %3237 = vmatpush1.bf16.xpose.msra.mxu0 0
        %3238 = vmatprep.subr.bf16.mxu0 0
        %3239 = vmatpush1.bf16.xpose.msra.mxu0 0
        %3240 = vmatprep.subr.bf16.mxu0 0
        %3241 = vmatpush1.bf16.xpose.msra.mxu0 0
        %3242 = vmatprep.subr.bf16.mxu0 0
        %3243 = vmatpush1.bf16.xpose.msra.mxu0 0
        %3244 = vmatprep.subr.bf16.mxu0 0
        %3245 = vmatpush1.bf16.xpose.msra.mxu0 0
        %3246 = vmatprep.subr.bf16.mxu0 0
        %3247 = vmatpush1.bf16.xpose.msra.mxu0 0
        %3248 = vmatprep.subr.bf16.mxu0 0
        %3249 = vmatpush1.bf16.xpose.msra.mxu0 %v3232
        %3250 = vmatprep.subr.bf16.mxu0 0
        %3251 = vmatpush2.bf16.xpose.msra.mxu0 0
        %3252 = vmatprep.subr.bf16.mxu0 0
        %3253 = vmatpush2.bf16.xpose.msra.mxu0 0
        %3254 = vmatprep.subr.bf16.mxu0 0
        %3255 = vmatpush2.bf16.xpose.msra.mxu0 0
        %3256 = vmatprep.subr.bf16.mxu0 0
        %3257 = vmatpush2.bf16.xpose.msra.mxu0 0
        %3258 = vmatprep.subr.bf16.mxu0 0
        %3259 = vmatpush2.bf16.xpose.msra.mxu0 0
        %3260 = vmatprep.subr.bf16.mxu0 0
        %3261 = vmatpush2.bf16.xpose.msra.mxu0 0
        %3262 = vmatprep.subr.bf16.mxu0 0
        %3263 = vmatpush2.bf16.xpose.msra.mxu0 0
        %3264 = vmatprep.subr.bf16.mxu0 0
        %3265 = vmatpush2.bf16.xpose.msra.mxu0 0
        %3266 = vmatprep.mubr.bf16.mxu0 0
        %3267 = vmatmul.mubr.bf16.gmra.mxu0 %v3229
        %v3268 = vpop.f32.mrf.mxu0
        %v3269 = vadd.f32 0.0, %v3268
        %v3270 = vpop.f32.mrf.mxu0
        %v3271 = vpop.f32.mrf.mxu0
        %v3272 = vpop.f32.mrf.mxu0
        %3273 = vdwg.mxu0
        %v3274 = vsel %vm2780, %v3269, -inf
        %3275 = vmax.xlane.f32.xlu0 %v3274
        %v3276 = vpop.xlane.xlu0 %3275
        %v3277 = vsub.f32 %v3269, %v3276
        %v3278 = vmul.f32 %v3277, 1.442695
        %v3279 = vpow.pop %v3278
        %v3280 = vsel %vm2780, %v3279, 0.0
        %3281 = vadd.xlane.f32.xlu0 %v3280
        %v3282 = vpop.xlane.xlu0 %3281
        %v3283 = vrcp.pop %v3282
        %v3284 = vmul.f32 %v3279, %v3283
        %v3285 = vpack.c.bf16 %v3284, %v3284
        %3286 = vrot.lane.b32.xlu0 %v2732, 32
        %v3287 = vpop.permute.xlu0 %3286
        %v3290 = vsel %vm2780, %v3285, 0
        %3292 = vmatprep.subr.bf16.mxu0 0
        %3293 = vmatpush1.bf16.msra.mxu0 0
        %3294 = vmatprep.subr.bf16.mxu0 0
        %3295 = vmatpush1.bf16.msra.mxu0 0
        %3296 = vmatprep.subr.bf16.mxu0 0
        %3297 = vmatpush1.bf16.msra.mxu0 0
        %3298 = vmatprep.subr.bf16.mxu0 0
        %3299 = vmatpush1.bf16.msra.mxu0 0
        %3300 = vmatprep.subr.bf16.mxu0 0
        %3301 = vmatpush1.bf16.msra.mxu0 0
        %3302 = vmatprep.subr.bf16.mxu0 0
        %3303 = vmatpush1.bf16.msra.mxu0 0
        %3304 = vmatprep.subr.bf16.mxu0 0
        %3305 = vmatpush1.bf16.msra.mxu0 0
        %3306 = vmatprep.subr.bf16.mxu0 0
        %3307 = vmatpush1.bf16.msra.mxu0 %v3287
        %3308 = vmatprep.subr.bf16.mxu0 0
        %3309 = vmatpush2.bf16.msra.mxu0 0
        %3310 = vmatprep.subr.bf16.mxu0 0
        %3311 = vmatpush2.bf16.msra.mxu0 0
        %3312 = vmatprep.subr.bf16.mxu0 0
        %3313 = vmatpush2.bf16.msra.mxu0 0
        %3314 = vmatprep.subr.bf16.mxu0 0
        %3315 = vmatpush2.bf16.msra.mxu0 0
        %3316 = vmatprep.subr.bf16.mxu0 0
        %3317 = vmatpush2.bf16.msra.mxu0 0
        %3318 = vmatprep.subr.bf16.mxu0 0
        %3319 = vmatpush2.bf16.msra.mxu0 0
        %3320 = vmatprep.subr.bf16.mxu0 0
        %3321 = vmatpush2.bf16.msra.mxu0 0
        %3322 = vmatprep.subr.bf16.mxu0 0
        %3323 = vmatpush2.bf16.msra.mxu0 0
        %3324 = vmatprep.mubr.bf16.mxu0 0
        %3325 = vmatmul.mubr.bf16.gmra.mxu0 %v3290
        %v3326 = vpop.f32.mrf.mxu0
        %v3327 = vadd.f32 0.0, %v3326
        %v3328 = vpop.f32.mrf.mxu0
        %v3329 = vpop.f32.mrf.mxu0
        %v3330 = vpop.f32.mrf.mxu0
        %3331 = vdwg.mxu0
        %v3332 = vpack.c.bf16 %v3327, %v3327
        %v3337 = vunpack.c.l.b16 %v890
        %v3338 = vunpack.c.l.b16 %v891
        %v3339 = vunpack.c.l.b16 %v892
        %v3340 = vunpack.c.l.b16 %v893
        %v3341 = vpack.c.b16 %v3338, %v3337
        %v3342 = vpack.c.b16 %v3340, %v3339
        %v3346 = vsel %vm978, %v3332, 0
        %3348 = vmatprep.subr.bf16.mxu0 0
        %3349 = vmatpush1.bf16.msra.mxu0 0
        %3350 = vmatprep.subr.bf16.mxu0 0
        %3351 = vmatpush1.bf16.msra.mxu0 0
        %3352 = vmatprep.subr.bf16.mxu0 0
        %3353 = vmatpush1.bf16.msra.mxu0 0
        %3354 = vmatprep.subr.bf16.mxu0 0
        %3355 = vmatpush1.bf16.msra.mxu0 0
        %3356 = vmatprep.subr.bf16.mxu0 0
        %3357 = vmatpush1.bf16.msra.mxu0 0
        %3358 = vmatprep.subr.bf16.mxu0 0
        %3359 = vmatpush1.bf16.msra.mxu0 0
        %3360 = vmatprep.subr.bf16.mxu0 0
        %3361 = vmatpush1.bf16.msra.mxu0 %v3342
        %3362 = vmatprep.subr.bf16.mxu0 0
        %3363 = vmatpush1.bf16.msra.mxu0 %v3341
        %3364 = vmatprep.subr.bf16.mxu0 0
        %3365 = vmatpush2.bf16.msra.mxu0 0
        %3366 = vmatprep.subr.bf16.mxu0 0
        %3367 = vmatpush2.bf16.msra.mxu0 0
        %3368 = vmatprep.subr.bf16.mxu0 0
        %3369 = vmatpush2.bf16.msra.mxu0 0
        %3370 = vmatprep.subr.bf16.mxu0 0
        %3371 = vmatpush2.bf16.msra.mxu0 0
        %3372 = vmatprep.subr.bf16.mxu0 0
        %3373 = vmatpush2.bf16.msra.mxu0 0
        %3374 = vmatprep.subr.bf16.mxu0 0
        %3375 = vmatpush2.bf16.msra.mxu0 0
        %3376 = vmatprep.subr.bf16.mxu0 0
        %3377 = vmatpush2.bf16.msra.mxu0 0
        %3378 = vmatprep.subr.bf16.mxu0 0
        %3379 = vmatpush2.bf16.msra.mxu0 0
        %3380 = vmatprep.mubr.bf16.mxu0 0
        %3381 = vmatmul.mubr.bf16.gmra.mxu0 %v3346
        %v3382 = vpop.f32.mrf.mxu0
        %v3383 = vadd.f32 0.0, %v3382
        %v3384 = vpop.f32.mrf.mxu0
        %v3385 = vpop.f32.mrf.mxu0
        %v3386 = vpop.f32.mrf.mxu0
        %3387 = vdwg.mxu0
        %v3388 = vadd.f32 %v3223, %v3383
        %v3390 = vsel %vm978, %v2595, 0
        %v3393 = vsel %vm978, %v2664, 0
        %3395 = vmatprep.subr.bf16.mxu0 0
        %3396 = vmatpush1.bf16.xpose.msra.mxu0 0
        %3397 = vmatprep.subr.bf16.mxu0 0
        %3398 = vmatpush1.bf16.xpose.msra.mxu0 0
        %3399 = vmatprep.subr.bf16.mxu0 0
        %3400 = vmatpush1.bf16.xpose.msra.mxu0 0
        %3401 = vmatprep.subr.bf16.mxu0 0
        %3402 = vmatpush1.bf16.xpose.msra.mxu0 0
        %3403 = vmatprep.subr.bf16.mxu0 0
        %3404 = vmatpush1.bf16.xpose.msra.mxu0 0
        %3405 = vmatprep.subr.bf16.mxu0 0
        %3406 = vmatpush1.bf16.xpose.msra.mxu0 0
        %3407 = vmatprep.subr.bf16.mxu0 0
        %3408 = vmatpush1.bf16.xpose.msra.mxu0 0
        %3409 = vmatprep.subr.bf16.mxu0 0
        %3410 = vmatpush1.bf16.xpose.msra.mxu0 %v3393
        %3411 = vmatprep.subr.bf16.mxu0 0
        %3412 = vmatpush2.bf16.xpose.msra.mxu0 0
        %3413 = vmatprep.subr.bf16.mxu0 0
        %3414 = vmatpush2.bf16.xpose.msra.mxu0 0
        %3415 = vmatprep.subr.bf16.mxu0 0
        %3416 = vmatpush2.bf16.xpose.msra.mxu0 0
        %3417 = vmatprep.subr.bf16.mxu0 0
        %3418 = vmatpush2.bf16.xpose.msra.mxu0 0
        %3419 = vmatprep.subr.bf16.mxu0 0
        %3420 = vmatpush2.bf16.xpose.msra.mxu0 0
        %3421 = vmatprep.subr.bf16.mxu0 0
        %3422 = vmatpush2.bf16.xpose.msra.mxu0 0
        %3423 = vmatprep.subr.bf16.mxu0 0
        %3424 = vmatpush2.bf16.xpose.msra.mxu0 0
        %3425 = vmatprep.subr.bf16.mxu0 0
        %3426 = vmatpush2.bf16.xpose.msra.mxu0 0
        %3427 = vmatprep.mubr.bf16.mxu0 0
        %3428 = vmatmul.mubr.bf16.gmra.mxu0 %v3390
        %v3429 = vpop.f32.mrf.mxu0
        %v3430 = vadd.f32 0.0, %v3429
        %v3431 = vpop.f32.mrf.mxu0
        %v3432 = vpop.f32.mrf.mxu0
        %v3433 = vpop.f32.mrf.mxu0
        %3434 = vdwg.mxu0
        %v3435 = vsel %vm2780, %v3430, -inf
        %3436 = vmax.xlane.f32.xlu0 %v3435
        %v3437 = vpop.xlane.xlu0 %3436
        %v3438 = vsub.f32 %v3430, %v3437
        %v3439 = vmul.f32 %v3438, 1.442695
        %v3440 = vpow.pop %v3439
        %v3441 = vsel %vm2780, %v3440, 0.0
        %3442 = vadd.xlane.f32.xlu0 %v3441
        %v3443 = vpop.xlane.xlu0 %3442
        %v3444 = vrcp.pop %v3443
        %v3445 = vmul.f32 %v3440, %v3444
        %v3446 = vpack.c.bf16 %v3445, %v3445
        %v3448 = vsel %vm2780, %v3446, 0
        %3450 = vmatprep.subr.bf16.mxu0 0
        %3451 = vmatpush1.bf16.msra.mxu0 0
        %3452 = vmatprep.subr.bf16.mxu0 0
        %3453 = vmatpush1.bf16.msra.mxu0 0
        %3454 = vmatprep.subr.bf16.mxu0 0
        %3455 = vmatpush1.bf16.msra.mxu0 0
        %3456 = vmatprep.subr.bf16.mxu0 0
        %3457 = vmatpush1.bf16.msra.mxu0 0
        %3458 = vmatprep.subr.bf16.mxu0 0
        %3459 = vmatpush1.bf16.msra.mxu0 0
        %3460 = vmatprep.subr.bf16.mxu0 0
        %3461 = vmatpush1.bf16.msra.mxu0 0
        %3462 = vmatprep.subr.bf16.mxu0 0
        %3463 = vmatpush1.bf16.msra.mxu0 0
        %3464 = vmatprep.subr.bf16.mxu0 0
        %3465 = vmatpush1.bf16.msra.mxu0 %v2733
        %3466 = vmatprep.subr.bf16.mxu0 0
        %3467 = vmatpush2.bf16.msra.mxu0 0
        %3468 = vmatprep.subr.bf16.mxu0 0
        %3469 = vmatpush2.bf16.msra.mxu0 0
        %3470 = vmatprep.subr.bf16.mxu0 0
        %3471 = vmatpush2.bf16.msra.mxu0 0
        %3472 = vmatprep.subr.bf16.mxu0 0
        %3473 = vmatpush2.bf16.msra.mxu0 0
        %3474 = vmatprep.subr.bf16.mxu0 0
        %3475 = vmatpush2.bf16.msra.mxu0 0
        %3476 = vmatprep.subr.bf16.mxu0 0
        %3477 = vmatpush2.bf16.msra.mxu0 0
        %3478 = vmatprep.subr.bf16.mxu0 0
        %3479 = vmatpush2.bf16.msra.mxu0 0
        %3480 = vmatprep.subr.bf16.mxu0 0
        %3481 = vmatpush2.bf16.msra.mxu0 0
        %3482 = vmatprep.mubr.bf16.mxu0 0
        %3483 = vmatmul.mubr.bf16.gmra.mxu0 %v3448
        %v3484 = vpop.f32.mrf.mxu0
        %v3485 = vadd.f32 0.0, %v3484
        %v3486 = vpop.f32.mrf.mxu0
        %v3487 = vpop.f32.mrf.mxu0
        %v3488 = vpop.f32.mrf.mxu0
        %3489 = vdwg.mxu0
        %v3490 = vpack.c.bf16 %v3485, %v3485
        %v3495 = vunpack.c.l.b16 %v894
        %v3496 = vunpack.c.l.b16 %v895
        %v3497 = vunpack.c.l.b16 %v896
        %v3498 = vunpack.c.l.b16 %v897
        %v3499 = vpack.c.b16 %v3496, %v3495
        %v3500 = vpack.c.b16 %v3498, %v3497
        %v3504 = vsel %vm978, %v3490, 0
        %3506 = vmatprep.subr.bf16.mxu0 0
        %3507 = vmatpush1.bf16.msra.mxu0 0
        %3508 = vmatprep.subr.bf16.mxu0 0
        %3509 = vmatpush1.bf16.msra.mxu0 0
        %3510 = vmatprep.subr.bf16.mxu0 0
        %3511 = vmatpush1.bf16.msra.mxu0 0
        %3512 = vmatprep.subr.bf16.mxu0 0
        %3513 = vmatpush1.bf16.msra.mxu0 0
        %3514 = vmatprep.subr.bf16.mxu0 0
        %3515 = vmatpush1.bf16.msra.mxu0 0
        %3516 = vmatprep.subr.bf16.mxu0 0
        %3517 = vmatpush1.bf16.msra.mxu0 0
        %3518 = vmatprep.subr.bf16.mxu0 0
        %3519 = vmatpush1.bf16.msra.mxu0 %v3500
        %3520 = vmatprep.subr.bf16.mxu0 0
        %3521 = vmatpush1.bf16.msra.mxu0 %v3499
        %3522 = vmatprep.subr.bf16.mxu0 0
        %3523 = vmatpush2.bf16.msra.mxu0 0
        %3524 = vmatprep.subr.bf16.mxu0 0
        %3525 = vmatpush2.bf16.msra.mxu0 0
        %3526 = vmatprep.subr.bf16.mxu0 0
        %3527 = vmatpush2.bf16.msra.mxu0 0
        %3528 = vmatprep.subr.bf16.mxu0 0
        %3529 = vmatpush2.bf16.msra.mxu0 0
        %3530 = vmatprep.subr.bf16.mxu0 0
        %3531 = vmatpush2.bf16.msra.mxu0 0
        %3532 = vmatprep.subr.bf16.mxu0 0
        %3533 = vmatpush2.bf16.msra.mxu0 0
        %3534 = vmatprep.subr.bf16.mxu0 0
        %3535 = vmatpush2.bf16.msra.mxu0 0
        %3536 = vmatprep.subr.bf16.mxu0 0
        %3537 = vmatpush2.bf16.msra.mxu0 0
        %3538 = vmatprep.mubr.bf16.mxu0 0
        %3539 = vmatmul.mubr.bf16.gmra.mxu0 %v3504
        %v3540 = vpop.f32.mrf.mxu0
        %v3541 = vadd.f32 0.0, %v3540
        %v3542 = vpop.f32.mrf.mxu0
        %v3543 = vpop.f32.mrf.mxu0
        %v3544 = vpop.f32.mrf.mxu0
        %3545 = vdwg.mxu0
        %v3546 = vadd.f32 %v3388, %v3541
        %3548 = vrot.lane.b32.xlu0 %v2595, 96
        %v3549 = vpop.permute.xlu0 %3548
        %3551 = vrot.lane.b32.xlu0 %v2664, 96
        %v3552 = vpop.permute.xlu0 %3551
        %v3554 = vsel %vm978, %v3549, 0
        %v3557 = vsel %vm978, %v3552, 0
        %3559 = vmatprep.subr.bf16.mxu0 0
        %3560 = vmatpush1.bf16.xpose.msra.mxu0 0
        %3561 = vmatprep.subr.bf16.mxu0 0
        %3562 = vmatpush1.bf16.xpose.msra.mxu0 0
        %3563 = vmatprep.subr.bf16.mxu0 0
        %3564 = vmatpush1.bf16.xpose.msra.mxu0 0
        %3565 = vmatprep.subr.bf16.mxu0 0
        %3566 = vmatpush1.bf16.xpose.msra.mxu0 0
        %3567 = vmatprep.subr.bf16.mxu0 0
        %3568 = vmatpush1.bf16.xpose.msra.mxu0 0
        %3569 = vmatprep.subr.bf16.mxu0 0
        %3570 = vmatpush1.bf16.xpose.msra.mxu0 0
        %3571 = vmatprep.subr.bf16.mxu0 0
        %3572 = vmatpush1.bf16.xpose.msra.mxu0 0
        %3573 = vmatprep.subr.bf16.mxu0 0
        %3574 = vmatpush1.bf16.xpose.msra.mxu0 %v3557
        %3575 = vmatprep.subr.bf16.mxu0 0
        %3576 = vmatpush2.bf16.xpose.msra.mxu0 0
        %3577 = vmatprep.subr.bf16.mxu0 0
        %3578 = vmatpush2.bf16.xpose.msra.mxu0 0
        %3579 = vmatprep.subr.bf16.mxu0 0
        %3580 = vmatpush2.bf16.xpose.msra.mxu0 0
        %3581 = vmatprep.subr.bf16.mxu0 0
        %3582 = vmatpush2.bf16.xpose.msra.mxu0 0
        %3583 = vmatprep.subr.bf16.mxu0 0
        %3584 = vmatpush2.bf16.xpose.msra.mxu0 0
        %3585 = vmatprep.subr.bf16.mxu0 0
        %3586 = vmatpush2.bf16.xpose.msra.mxu0 0
        %3587 = vmatprep.subr.bf16.mxu0 0
        %3588 = vmatpush2.bf16.xpose.msra.mxu0 0
        %3589 = vmatprep.subr.bf16.mxu0 0
        %3590 = vmatpush2.bf16.xpose.msra.mxu0 0
        %3591 = vmatprep.mubr.bf16.mxu0 0
        %3592 = vmatmul.mubr.bf16.gmra.mxu0 %v3554
        %v3593 = vpop.f32.mrf.mxu0
        %v3594 = vadd.f32 0.0, %v3593
        %v3595 = vpop.f32.mrf.mxu0
        %v3596 = vpop.f32.mrf.mxu0
        %v3597 = vpop.f32.mrf.mxu0
        %3598 = vdwg.mxu0
        %v3599 = vsel %vm2780, %v3594, -inf
        %3600 = vmax.xlane.f32.xlu0 %v3599
        %v3601 = vpop.xlane.xlu0 %3600
        %v3602 = vsub.f32 %v3594, %v3601
        %v3603 = vmul.f32 %v3602, 1.442695
        %v3604 = vpow.pop %v3603
        %v3605 = vsel %vm2780, %v3604, 0.0
        %3606 = vadd.xlane.f32.xlu0 %v3605
        %v3607 = vpop.xlane.xlu0 %3606
        %v3608 = vrcp.pop %v3607
        %v3609 = vmul.f32 %v3604, %v3608
        %v3610 = vpack.c.bf16 %v3609, %v3609
        %3612 = vrot.lane.b32.xlu0 %v2733, 96
        %v3613 = vpop.permute.xlu0 %3612
        %v3616 = vsel %vm2780, %v3610, 0
        %3618 = vmatprep.subr.bf16.mxu0 0
        %3619 = vmatpush1.bf16.msra.mxu0 0
        %3620 = vmatprep.subr.bf16.mxu0 0
        %3621 = vmatpush1.bf16.msra.mxu0 0
        %3622 = vmatprep.subr.bf16.mxu0 0
        %3623 = vmatpush1.bf16.msra.mxu0 0
        %3624 = vmatprep.subr.bf16.mxu0 0
        %3625 = vmatpush1.bf16.msra.mxu0 0
        %3626 = vmatprep.subr.bf16.mxu0 0
        %3627 = vmatpush1.bf16.msra.mxu0 0
        %3628 = vmatprep.subr.bf16.mxu0 0
        %3629 = vmatpush1.bf16.msra.mxu0 0
        %3630 = vmatprep.subr.bf16.mxu0 0
        %3631 = vmatpush1.bf16.msra.mxu0 0
        %3632 = vmatprep.subr.bf16.mxu0 0
        %3633 = vmatpush1.bf16.msra.mxu0 %v3613
        %3634 = vmatprep.subr.bf16.mxu0 0
        %3635 = vmatpush2.bf16.msra.mxu0 0
        %3636 = vmatprep.subr.bf16.mxu0 0
        %3637 = vmatpush2.bf16.msra.mxu0 0
        %3638 = vmatprep.subr.bf16.mxu0 0
        %3639 = vmatpush2.bf16.msra.mxu0 0
        %3640 = vmatprep.subr.bf16.mxu0 0
        %3641 = vmatpush2.bf16.msra.mxu0 0
        %3642 = vmatprep.subr.bf16.mxu0 0
        %3643 = vmatpush2.bf16.msra.mxu0 0
        %3644 = vmatprep.subr.bf16.mxu0 0
        %3645 = vmatpush2.bf16.msra.mxu0 0
        %3646 = vmatprep.subr.bf16.mxu0 0
        %3647 = vmatpush2.bf16.msra.mxu0 0
        %3648 = vmatprep.subr.bf16.mxu0 0
        %3649 = vmatpush2.bf16.msra.mxu0 0
        %3650 = vmatprep.mubr.bf16.mxu0 0
        %3651 = vmatmul.mubr.bf16.gmra.mxu0 %v3616
        %v3652 = vpop.f32.mrf.mxu0
        %v3653 = vadd.f32 0.0, %v3652
        %v3654 = vpop.f32.mrf.mxu0
        %v3655 = vpop.f32.mrf.mxu0
        %v3656 = vpop.f32.mrf.mxu0
        %3657 = vdwg.mxu0
        %v3658 = vpack.c.bf16 %v3653, %v3653
        %v3663 = vunpack.c.l.b16 %v898
        %v3664 = vunpack.c.l.b16 %v899
        %v3665 = vunpack.c.l.b16 %v900
        %v3666 = vunpack.c.l.b16 %v901
        %v3667 = vpack.c.b16 %v3664, %v3663
        %v3668 = vpack.c.b16 %v3666, %v3665
        %v3672 = vsel %vm978, %v3658, 0
        %3674 = vmatprep.subr.bf16.mxu0 0
        %3675 = vmatpush1.bf16.msra.mxu0 0
        %3676 = vmatprep.subr.bf16.mxu0 0
        %3677 = vmatpush1.bf16.msra.mxu0 0
        %3678 = vmatprep.subr.bf16.mxu0 0
        %3679 = vmatpush1.bf16.msra.mxu0 0
        %3680 = vmatprep.subr.bf16.mxu0 0
        %3681 = vmatpush1.bf16.msra.mxu0 0
        %3682 = vmatprep.subr.bf16.mxu0 0
        %3683 = vmatpush1.bf16.msra.mxu0 0
        %3684 = vmatprep.subr.bf16.mxu0 0
        %3685 = vmatpush1.bf16.msra.mxu0 0
        %3686 = vmatprep.subr.bf16.mxu0 0
        %3687 = vmatpush1.bf16.msra.mxu0 %v3668
        %3688 = vmatprep.subr.bf16.mxu0 0
        %3689 = vmatpush1.bf16.msra.mxu0 %v3667
        %3690 = vmatprep.subr.bf16.mxu0 0
        %3691 = vmatpush2.bf16.msra.mxu0 0
        %3692 = vmatprep.subr.bf16.mxu0 0
        %3693 = vmatpush2.bf16.msra.mxu0 0
        %3694 = vmatprep.subr.bf16.mxu0 0
        %3695 = vmatpush2.bf16.msra.mxu0 0
        %3696 = vmatprep.subr.bf16.mxu0 0
        %3697 = vmatpush2.bf16.msra.mxu0 0
        %3698 = vmatprep.subr.bf16.mxu0 0
        %3699 = vmatpush2.bf16.msra.mxu0 0
        %3700 = vmatprep.subr.bf16.mxu0 0
        %3701 = vmatpush2.bf16.msra.mxu0 0
        %3702 = vmatprep.subr.bf16.mxu0 0
        %3703 = vmatpush2.bf16.msra.mxu0 0
        %3704 = vmatprep.subr.bf16.mxu0 0
        %3705 = vmatpush2.bf16.msra.mxu0 0
        %3706 = vmatprep.mubr.bf16.mxu0 0
        %3707 = vmatmul.mubr.bf16.gmra.mxu0 %v3672
        %v3708 = vpop.f32.mrf.mxu0
        %v3709 = vadd.f32 0.0, %v3708
        %v3710 = vpop.f32.mrf.mxu0
        %v3711 = vpop.f32.mrf.mxu0
        %v3712 = vpop.f32.mrf.mxu0
        %3713 = vdwg.mxu0
        %v3714 = vadd.f32 %v3546, %v3709
        %3715 = vrot.lane.b32.xlu0 %v2595, 64
        %v3716 = vpop.permute.xlu0 %3715
        %3717 = vrot.lane.b32.xlu0 %v2664, 64
        %v3718 = vpop.permute.xlu0 %3717
        %v3720 = vsel %vm978, %v3716, 0
        %v3723 = vsel %vm978, %v3718, 0
        %3725 = vmatprep.subr.bf16.mxu0 0
        %3726 = vmatpush1.bf16.xpose.msra.mxu0 0
        %3727 = vmatprep.subr.bf16.mxu0 0
        %3728 = vmatpush1.bf16.xpose.msra.mxu0 0
        %3729 = vmatprep.subr.bf16.mxu0 0
        %3730 = vmatpush1.bf16.xpose.msra.mxu0 0
        %3731 = vmatprep.subr.bf16.mxu0 0
        %3732 = vmatpush1.bf16.xpose.msra.mxu0 0
        %3733 = vmatprep.subr.bf16.mxu0 0
        %3734 = vmatpush1.bf16.xpose.msra.mxu0 0
        %3735 = vmatprep.subr.bf16.mxu0 0
        %3736 = vmatpush1.bf16.xpose.msra.mxu0 0
        %3737 = vmatprep.subr.bf16.mxu0 0
        %3738 = vmatpush1.bf16.xpose.msra.mxu0 0
        %3739 = vmatprep.subr.bf16.mxu0 0
        %3740 = vmatpush1.bf16.xpose.msra.mxu0 %v3723
        %3741 = vmatprep.subr.bf16.mxu0 0
        %3742 = vmatpush2.bf16.xpose.msra.mxu0 0
        %3743 = vmatprep.subr.bf16.mxu0 0
        %3744 = vmatpush2.bf16.xpose.msra.mxu0 0
        %3745 = vmatprep.subr.bf16.mxu0 0
        %3746 = vmatpush2.bf16.xpose.msra.mxu0 0
        %3747 = vmatprep.subr.bf16.mxu0 0
        %3748 = vmatpush2.bf16.xpose.msra.mxu0 0
        %3749 = vmatprep.subr.bf16.mxu0 0
        %3750 = vmatpush2.bf16.xpose.msra.mxu0 0
        %3751 = vmatprep.subr.bf16.mxu0 0
        %3752 = vmatpush2.bf16.xpose.msra.mxu0 0
        %3753 = vmatprep.subr.bf16.mxu0 0
        %3754 = vmatpush2.bf16.xpose.msra.mxu0 0
        %3755 = vmatprep.subr.bf16.mxu0 0
        %3756 = vmatpush2.bf16.xpose.msra.mxu0 0
        %3757 = vmatprep.mubr.bf16.mxu0 0
        %3758 = vmatmul.mubr.bf16.gmra.mxu0 %v3720
        %v3759 = vpop.f32.mrf.mxu0
        %v3760 = vadd.f32 0.0, %v3759
        %v3761 = vpop.f32.mrf.mxu0
        %v3762 = vpop.f32.mrf.mxu0
        %v3763 = vpop.f32.mrf.mxu0
        %3764 = vdwg.mxu0
        %v3765 = vsel %vm2780, %v3760, -inf
        %3766 = vmax.xlane.f32.xlu0 %v3765
        %v3767 = vpop.xlane.xlu0 %3766
        %v3768 = vsub.f32 %v3760, %v3767
        %v3769 = vmul.f32 %v3768, 1.442695
        %v3770 = vpow.pop %v3769
        %v3771 = vsel %vm2780, %v3770, 0.0
        %3772 = vadd.xlane.f32.xlu0 %v3771
        %v3773 = vpop.xlane.xlu0 %3772
        %v3774 = vrcp.pop %v3773
        %v3775 = vmul.f32 %v3770, %v3774
        %v3776 = vpack.c.bf16 %v3775, %v3775
        %3777 = vrot.lane.b32.xlu0 %v2733, 64
        %v3778 = vpop.permute.xlu0 %3777
        %v3781 = vsel %vm2780, %v3776, 0
        %3783 = vmatprep.subr.bf16.mxu0 0
        %3784 = vmatpush1.bf16.msra.mxu0 0
        %3785 = vmatprep.subr.bf16.mxu0 0
        %3786 = vmatpush1.bf16.msra.mxu0 0
        %3787 = vmatprep.subr.bf16.mxu0 0
        %3788 = vmatpush1.bf16.msra.mxu0 0
        %3789 = vmatprep.subr.bf16.mxu0 0
        %3790 = vmatpush1.bf16.msra.mxu0 0
        %3791 = vmatprep.subr.bf16.mxu0 0
        %3792 = vmatpush1.bf16.msra.mxu0 0
        %3793 = vmatprep.subr.bf16.mxu0 0
        %3794 = vmatpush1.bf16.msra.mxu0 0
        %3795 = vmatprep.subr.bf16.mxu0 0
        %3796 = vmatpush1.bf16.msra.mxu0 0
        %3797 = vmatprep.subr.bf16.mxu0 0
        %3798 = vmatpush1.bf16.msra.mxu0 %v3778
        %3799 = vmatprep.subr.bf16.mxu0 0
        %3800 = vmatpush2.bf16.msra.mxu0 0
        %3801 = vmatprep.subr.bf16.mxu0 0
        %3802 = vmatpush2.bf16.msra.mxu0 0
        %3803 = vmatprep.subr.bf16.mxu0 0
        %3804 = vmatpush2.bf16.msra.mxu0 0
        %3805 = vmatprep.subr.bf16.mxu0 0
        %3806 = vmatpush2.bf16.msra.mxu0 0
        %3807 = vmatprep.subr.bf16.mxu0 0
        %3808 = vmatpush2.bf16.msra.mxu0 0
        %3809 = vmatprep.subr.bf16.mxu0 0
        %3810 = vmatpush2.bf16.msra.mxu0 0
        %3811 = vmatprep.subr.bf16.mxu0 0
        %3812 = vmatpush2.bf16.msra.mxu0 0
        %3813 = vmatprep.subr.bf16.mxu0 0
        %3814 = vmatpush2.bf16.msra.mxu0 0
        %3815 = vmatprep.mubr.bf16.mxu0 0
        %3816 = vmatmul.mubr.bf16.gmra.mxu0 %v3781
        %v3817 = vpop.f32.mrf.mxu0
        %v3818 = vadd.f32 0.0, %v3817
        %v3819 = vpop.f32.mrf.mxu0
        %v3820 = vpop.f32.mrf.mxu0
        %v3821 = vpop.f32.mrf.mxu0
        %3822 = vdwg.mxu0
        %v3823 = vpack.c.bf16 %v3818, %v3818
        %v3828 = vunpack.c.l.b16 %v902
        %v3829 = vunpack.c.l.b16 %v903
        %v3830 = vunpack.c.l.b16 %v904
        %v3831 = vunpack.c.l.b16 %v905
        %v3832 = vpack.c.b16 %v3829, %v3828
        %v3833 = vpack.c.b16 %v3831, %v3830
        %v3837 = vsel %vm978, %v3823, 0
        %3839 = vmatprep.subr.bf16.mxu0 0
        %3840 = vmatpush1.bf16.msra.mxu0 0
        %3841 = vmatprep.subr.bf16.mxu0 0
        %3842 = vmatpush1.bf16.msra.mxu0 0
        %3843 = vmatprep.subr.bf16.mxu0 0
        %3844 = vmatpush1.bf16.msra.mxu0 0
        %3845 = vmatprep.subr.bf16.mxu0 0
        %3846 = vmatpush1.bf16.msra.mxu0 0
        %3847 = vmatprep.subr.bf16.mxu0 0
        %3848 = vmatpush1.bf16.msra.mxu0 0
        %3849 = vmatprep.subr.bf16.mxu0 0
        %3850 = vmatpush1.bf16.msra.mxu0 0
        %3851 = vmatprep.subr.bf16.mxu0 0
        %3852 = vmatpush1.bf16.msra.mxu0 %v3833
        %3853 = vmatprep.subr.bf16.mxu0 0
        %3854 = vmatpush1.bf16.msra.mxu0 %v3832
        %3855 = vmatprep.subr.bf16.mxu0 0
        %3856 = vmatpush2.bf16.msra.mxu0 0
        %3857 = vmatprep.subr.bf16.mxu0 0
        %3858 = vmatpush2.bf16.msra.mxu0 0
        %3859 = vmatprep.subr.bf16.mxu0 0
        %3860 = vmatpush2.bf16.msra.mxu0 0
        %3861 = vmatprep.subr.bf16.mxu0 0
        %3862 = vmatpush2.bf16.msra.mxu0 0
        %3863 = vmatprep.subr.bf16.mxu0 0
        %3864 = vmatpush2.bf16.msra.mxu0 0
        %3865 = vmatprep.subr.bf16.mxu0 0
        %3866 = vmatpush2.bf16.msra.mxu0 0
        %3867 = vmatprep.subr.bf16.mxu0 0
        %3868 = vmatpush2.bf16.msra.mxu0 0
        %3869 = vmatprep.subr.bf16.mxu0 0
        %3870 = vmatpush2.bf16.msra.mxu0 0
        %3871 = vmatprep.mubr.bf16.mxu0 0
        %3872 = vmatmul.mubr.bf16.gmra.mxu0 %v3837
        %v3873 = vpop.f32.mrf.mxu0
        %v3874 = vadd.f32 0.0, %v3873
        %v3875 = vpop.f32.mrf.mxu0
        %v3876 = vpop.f32.mrf.mxu0
        %v3877 = vpop.f32.mrf.mxu0
        %3878 = vdwg.mxu0
        %v3879 = vadd.f32 %v3714, %v3874
        %3880 = vrot.lane.b32.xlu0 %v2595, 32
        %v3881 = vpop.permute.xlu0 %3880
        %3882 = vrot.lane.b32.xlu0 %v2664, 32
        %v3883 = vpop.permute.xlu0 %3882
        %v3885 = vsel %vm978, %v3881, 0
        %v3888 = vsel %vm978, %v3883, 0
        %3890 = vmatprep.subr.bf16.mxu0 0
        %3891 = vmatpush1.bf16.xpose.msra.mxu0 0
        %3892 = vmatprep.subr.bf16.mxu0 0
        %3893 = vmatpush1.bf16.xpose.msra.mxu0 0
        %3894 = vmatprep.subr.bf16.mxu0 0
        %3895 = vmatpush1.bf16.xpose.msra.mxu0 0
        %3896 = vmatprep.subr.bf16.mxu0 0
        %3897 = vmatpush1.bf16.xpose.msra.mxu0 0
        %3898 = vmatprep.subr.bf16.mxu0 0
        %3899 = vmatpush1.bf16.xpose.msra.mxu0 0
        %3900 = vmatprep.subr.bf16.mxu0 0
        %3901 = vmatpush1.bf16.xpose.msra.mxu0 0
        %3902 = vmatprep.subr.bf16.mxu0 0
        %3903 = vmatpush1.bf16.xpose.msra.mxu0 0
        %3904 = vmatprep.subr.bf16.mxu0 0
        %3905 = vmatpush1.bf16.xpose.msra.mxu0 %v3888
        %3906 = vmatprep.subr.bf16.mxu0 0
        %3907 = vmatpush2.bf16.xpose.msra.mxu0 0
        %3908 = vmatprep.subr.bf16.mxu0 0
        %3909 = vmatpush2.bf16.xpose.msra.mxu0 0
        %3910 = vmatprep.subr.bf16.mxu0 0
        %3911 = vmatpush2.bf16.xpose.msra.mxu0 0
        %3912 = vmatprep.subr.bf16.mxu0 0
        %3913 = vmatpush2.bf16.xpose.msra.mxu0 0
        %3914 = vmatprep.subr.bf16.mxu0 0
        %3915 = vmatpush2.bf16.xpose.msra.mxu0 0
        %3916 = vmatprep.subr.bf16.mxu0 0
        %3917 = vmatpush2.bf16.xpose.msra.mxu0 0
        %3918 = vmatprep.subr.bf16.mxu0 0
        %3919 = vmatpush2.bf16.xpose.msra.mxu0 0
        %3920 = vmatprep.subr.bf16.mxu0 0
        %3921 = vmatpush2.bf16.xpose.msra.mxu0 0
        %3922 = vmatprep.mubr.bf16.mxu0 0
        %3923 = vmatmul.mubr.bf16.gmra.mxu0 %v3885
        %v3924 = vpop.f32.mrf.mxu0
        %v3925 = vadd.f32 0.0, %v3924
        %v3926 = vpop.f32.mrf.mxu0
        %v3927 = vpop.f32.mrf.mxu0
        %v3928 = vpop.f32.mrf.mxu0
        %3929 = vdwg.mxu0
        %v3930 = vsel %vm2780, %v3925, -inf
        %3931 = vmax.xlane.f32.xlu0 %v3930
        %v3932 = vpop.xlane.xlu0 %3931
        %v3933 = vsub.f32 %v3925, %v3932
        %v3934 = vmul.f32 %v3933, 1.442695
        %v3935 = vpow.pop %v3934
        %v3936 = vsel %vm2780, %v3935, 0.0
        %3937 = vadd.xlane.f32.xlu0 %v3936
        %v3938 = vpop.xlane.xlu0 %3937
        %v3939 = vrcp.pop %v3938
        %v3940 = vmul.f32 %v3935, %v3939
        %v3941 = vpack.c.bf16 %v3940, %v3940
        %3942 = vrot.lane.b32.xlu0 %v2733, 32
        %v3943 = vpop.permute.xlu0 %3942
        %v3946 = vsel %vm2780, %v3941, 0
        %3948 = vmatprep.subr.bf16.mxu0 0
        %3949 = vmatpush1.bf16.msra.mxu0 0
        %3950 = vmatprep.subr.bf16.mxu0 0
        %3951 = vmatpush1.bf16.msra.mxu0 0
        %3952 = vmatprep.subr.bf16.mxu0 0
        %3953 = vmatpush1.bf16.msra.mxu0 0
        %3954 = vmatprep.subr.bf16.mxu0 0
        %3955 = vmatpush1.bf16.msra.mxu0 0
        %3956 = vmatprep.subr.bf16.mxu0 0
        %3957 = vmatpush1.bf16.msra.mxu0 0
        %3958 = vmatprep.subr.bf16.mxu0 0
        %3959 = vmatpush1.bf16.msra.mxu0 0
        %3960 = vmatprep.subr.bf16.mxu0 0
        %3961 = vmatpush1.bf16.msra.mxu0 0
        %3962 = vmatprep.subr.bf16.mxu0 0
        %3963 = vmatpush1.bf16.msra.mxu0 %v3943
        %3964 = vmatprep.subr.bf16.mxu0 0
        %3965 = vmatpush2.bf16.msra.mxu0 0
        %3966 = vmatprep.subr.bf16.mxu0 0
        %3967 = vmatpush2.bf16.msra.mxu0 0
        %3968 = vmatprep.subr.bf16.mxu0 0
        %3969 = vmatpush2.bf16.msra.mxu0 0
        %3970 = vmatprep.subr.bf16.mxu0 0
        %3971 = vmatpush2.bf16.msra.mxu0 0
        %3972 = vmatprep.subr.bf16.mxu0 0
        %3973 = vmatpush2.bf16.msra.mxu0 0
        %3974 = vmatprep.subr.bf16.mxu0 0
        %3975 = vmatpush2.bf16.msra.mxu0 0
        %3976 = vmatprep.subr.bf16.mxu0 0
        %3977 = vmatpush2.bf16.msra.mxu0 0
        %3978 = vmatprep.subr.bf16.mxu0 0
        %3979 = vmatpush2.bf16.msra.mxu0 0
        %3980 = vmatprep.mubr.bf16.mxu0 0
        %3981 = vmatmul.mubr.bf16.gmra.mxu0 %v3946
        %v3982 = vpop.f32.mrf.mxu0
        %v3983 = vadd.f32 0.0, %v3982
        %v3984 = vpop.f32.mrf.mxu0
        %v3985 = vpop.f32.mrf.mxu0
        %v3986 = vpop.f32.mrf.mxu0
        %3987 = vdwg.mxu0
        %v3988 = vpack.c.bf16 %v3983, %v3983
        %v3993 = vunpack.c.l.b16 %v906
        %v3994 = vunpack.c.l.b16 %v907
        %v3995 = vunpack.c.l.b16 %v908
        %v3996 = vunpack.c.l.b16 %v909
        %v3997 = vpack.c.b16 %v3994, %v3993
        %v3998 = vpack.c.b16 %v3996, %v3995
        %v4002 = vsel %vm978, %v3988, 0
        %4004 = vmatprep.subr.bf16.mxu0 0
        %4005 = vmatpush1.bf16.msra.mxu0 0
        %4006 = vmatprep.subr.bf16.mxu0 0
        %4007 = vmatpush1.bf16.msra.mxu0 0
        %4008 = vmatprep.subr.bf16.mxu0 0
        %4009 = vmatpush1.bf16.msra.mxu0 0
        %4010 = vmatprep.subr.bf16.mxu0 0
        %4011 = vmatpush1.bf16.msra.mxu0 0
        %4012 = vmatprep.subr.bf16.mxu0 0
        %4013 = vmatpush1.bf16.msra.mxu0 0
        %4014 = vmatprep.subr.bf16.mxu0 0
        %4015 = vmatpush1.bf16.msra.mxu0 0
        %4016 = vmatprep.subr.bf16.mxu0 0
        %4017 = vmatpush1.bf16.msra.mxu0 %v3998
        %4018 = vmatprep.subr.bf16.mxu0 0
        %4019 = vmatpush1.bf16.msra.mxu0 %v3997
        %4020 = vmatprep.subr.bf16.mxu0 0
        %4021 = vmatpush2.bf16.msra.mxu0 0
        %4022 = vmatprep.subr.bf16.mxu0 0
        %4023 = vmatpush2.bf16.msra.mxu0 0
        %4024 = vmatprep.subr.bf16.mxu0 0
        %4025 = vmatpush2.bf16.msra.mxu0 0
        %4026 = vmatprep.subr.bf16.mxu0 0
        %4027 = vmatpush2.bf16.msra.mxu0 0
        %4028 = vmatprep.subr.bf16.mxu0 0
        %4029 = vmatpush2.bf16.msra.mxu0 0
        %4030 = vmatprep.subr.bf16.mxu0 0
        %4031 = vmatpush2.bf16.msra.mxu0 0
        %4032 = vmatprep.subr.bf16.mxu0 0
        %4033 = vmatpush2.bf16.msra.mxu0 0
        %4034 = vmatprep.subr.bf16.mxu0 0
        %4035 = vmatpush2.bf16.msra.mxu0 0
        %4036 = vmatprep.mubr.bf16.mxu0 0
        %4037 = vmatmul.mubr.bf16.gmra.mxu0 %v4002
        %v4038 = vpop.f32.mrf.mxu0
        %v4039 = vadd.f32 0.0, %v4038
        %v4040 = vpop.f32.mrf.mxu0
        %v4041 = vpop.f32.mrf.mxu0
        %v4042 = vpop.f32.mrf.mxu0
        %4043 = vdwg.mxu0
        %v4044 = vadd.f32 %v3879, %v4039
        %v4045 = vadd.f32 %v4044, %v2526
        %v4046 = vsel %vm978, %v4045, 0.0
        %4047 = vadd.xlane.f32.xlu0 %v4046
        %v4048 = vpop.xlane.xlu0 %4047
        %v4049 = vmul.f32 %v4048, %v2469
        %v4050 = vmul.f32 %v4045, %v4045
        %v4051 = vsel %vm978, %v4050, 0.0
        %4052 = vadd.xlane.f32.xlu0 %v4051
        %v4053 = vpop.xlane.xlu0 %4052
        %v4054 = vmul.f32 %v4053, %v2469
        %v4055 = vmul.f32 %v4049, %v4049
        %v4056 = vsub.f32 %v4054, %v4055
        %v4057 = vsub.f32 %v4045, %v4049
        %v4058 = vadd.f32 %v4056, 1e-05
        %v4059 = vrsqrt.pop %v4058
        %v4060 = vmul.f32 %v4057, %v4059
        %v4062 = vlaneseq
        %v4063 = vshrl.u32 %v4062, 7
        %v4064 = vsub.s32 0, %v4063
        %v4065 = vrot.slane %v910, %v4064
        %v4067 = vmul.f32 %v4060, %v4065
        %v4069 = vlaneseq
        %v4070 = vshrl.u32 %v4069, 7
        %v4071 = vsub.s32 0, %v4070
        %v4072 = vrot.slane %v911, %v4071
        %v4074 = vadd.f32 %v4067, %v4072
        %v4075 = vadd.f32 %v2525, %v4074
        %v4076 = vsel %vm978, %v4075, 0.0
        %4077 = vadd.xlane.f32.xlu0 %v4076
        %v4078 = vpop.xlane.xlu0 %4077
        %v4079 = vmul.f32 %v4078, %v2469
        %v4080 = vmul.f32 %v4075, %v4075
        %v4081 = vsel %vm978, %v4080, 0.0
        %4082 = vadd.xlane.f32.xlu0 %v4081
        %v4083 = vpop.xlane.xlu0 %4082
        %v4084 = vmul.f32 %v4083, %v2469
        %v4085 = vmul.f32 %v4079, %v4079
        %v4086 = vsub.f32 %v4084, %v4085
        %v4087 = vsub.f32 %v4075, %v4079
        %v4088 = vadd.f32 %v4086, 1e-05
        %v4089 = vrsqrt.pop %v4088
        %v4090 = vmul.f32 %v4087, %v4089
        %v4092 = vlaneseq
        %v4093 = vshrl.u32 %v4092, 7
        %v4094 = vsub.s32 0, %v4093
        %v4095 = vrot.slane %v912, %v4094
        %v4097 = vmul.f32 %v4090, %v4095
        %v4099 = vlaneseq
        %v4100 = vshrl.u32 %v4099, 7
        %v4101 = vsub.s32 0, %v4100
        %v4102 = vrot.slane %v913, %v4101
        %v4104 = vadd.f32 %v4097, %v4102
        %v4105 = vpack.c.bf16 %v4104, %v4104
        %v4107 = vlaneseq
        %v4108 = vshrl.u32 %v4107, 7
        %v4109 = vsub.s32 0, %v4108
        %v4110 = vrot.slane %v918, %v4109
        %v4116 = vunpack.c.l.b16 %v914
        %v4117 = vunpack.c.l.b16 %v915
        %v4118 = vunpack.c.l.b16 %v916
        %v4119 = vunpack.c.l.b16 %v917
        %v4120 = vpack.c.b16 %v4117, %v4116
        %v4121 = vpack.c.b16 %v4119, %v4118
        %v4125 = vsel %vm978, %v4105, 0
        %4127 = vmatprep.subr.bf16.mxu0 0
        %4128 = vmatpush1.bf16.msra.mxu0 0
        %4129 = vmatprep.subr.bf16.mxu0 0
        %4130 = vmatpush1.bf16.msra.mxu0 0
        %4131 = vmatprep.subr.bf16.mxu0 0
        %4132 = vmatpush1.bf16.msra.mxu0 0
        %4133 = vmatprep.subr.bf16.mxu0 0
        %4134 = vmatpush1.bf16.msra.mxu0 0
        %4135 = vmatprep.subr.bf16.mxu0 0
        %4136 = vmatpush1.bf16.msra.mxu0 0
        %4137 = vmatprep.subr.bf16.mxu0 0
        %4138 = vmatpush1.bf16.msra.mxu0 0
        %4139 = vmatprep.subr.bf16.mxu0 0
        %4140 = vmatpush1.bf16.msra.mxu0 %v4121
        %4141 = vmatprep.subr.bf16.mxu0 0
        %4142 = vmatpush1.bf16.msra.mxu0 %v4120
        %4143 = vmatprep.subr.bf16.mxu0 0
        %4144 = vmatpush2.bf16.msra.mxu0 0
        %4145 = vmatprep.subr.bf16.mxu0 0
        %4146 = vmatpush2.bf16.msra.mxu0 0
        %4147 = vmatprep.subr.bf16.mxu0 0
        %4148 = vmatpush2.bf16.msra.mxu0 0
        %4149 = vmatprep.subr.bf16.mxu0 0
        %4150 = vmatpush2.bf16.msra.mxu0 0
        %4151 = vmatprep.subr.bf16.mxu0 0
        %4152 = vmatpush2.bf16.msra.mxu0 0
        %4153 = vmatprep.subr.bf16.mxu0 0
        %4154 = vmatpush2.bf16.msra.mxu0 0
        %4155 = vmatprep.subr.bf16.mxu0 0
        %4156 = vmatpush2.bf16.msra.mxu0 0
        %4157 = vmatprep.subr.bf16.mxu0 0
        %4158 = vmatpush2.bf16.msra.mxu0 0
        %4159 = vmatprep.mubr.bf16.mxu0 0
        %4160 = vmatmul.mubr.bf16.gmra.mxu0 %v4125
        %v4161 = vpop.f32.mrf.mxu0
        %v4162 = vadd.f32 %v4110, %v4161
        %v4163 = vpop.f32.mrf.mxu0
        %v4164 = vpop.f32.mrf.mxu0
        %v4165 = vpop.f32.mrf.mxu0
        %4166 = vdwg.mxu0
        %v4167 = vmax.f32 %v4162, 0.0
        %v4168 = vpack.c.bf16 %v4167, %v4167
        %v4170 = vlaneseq
        %v4171 = vshrl.u32 %v4170, 7
        %v4172 = vsub.s32 0, %v4171
        %v4173 = vrot.slane %v927, %v4172
        %v4183 = vunpack.c.l.b16 %v919
        %v4184 = vunpack.c.l.b16 %v920
        %v4185 = vunpack.c.l.b16 %v921
        %v4186 = vunpack.c.l.b16 %v922
        %v4187 = vunpack.c.l.b16 %v923
        %v4188 = vunpack.c.l.b16 %v924
        %v4189 = vunpack.c.l.b16 %v925
        %v4190 = vunpack.c.l.b16 %v926
        %v4191 = vpack.c.b16 %v4184, %v4183
        %v4192 = vpack.c.b16 %v4186, %v4185
        %v4193 = vpack.c.b16 %v4188, %v4187
        %v4194 = vpack.c.b16 %v4190, %v4189
        %vm4199 = vcmask 523264
        %v4201 = vsel %vm4199, %v4168, 0
        %4203 = vmatprep.subr.bf16.mxu0 0
        %4204 = vmatpush1.bf16.msra.mxu0 0
        %4205 = vmatprep.subr.bf16.mxu0 0
        %4206 = vmatpush1.bf16.msra.mxu0 0
        %4207 = vmatprep.subr.bf16.mxu0 0
        %4208 = vmatpush1.bf16.msra.mxu0 0
        %4209 = vmatprep.subr.bf16.mxu0 0
        %4210 = vmatpush1.bf16.msra.mxu0 0
        %4211 = vmatprep.subr.bf16.mxu0 0
        %4212 = vmatpush1.bf16.msra.mxu0 %v4194
        %4213 = vmatprep.subr.bf16.mxu0 0
        %4214 = vmatpush1.bf16.msra.mxu0 %v4193
        %4215 = vmatprep.subr.bf16.mxu0 0
        %4216 = vmatpush1.bf16.msra.mxu0 %v4192
        %4217 = vmatprep.subr.bf16.mxu0 0
        %4218 = vmatpush1.bf16.msra.mxu0 %v4191
        %4219 = vmatprep.subr.bf16.mxu0 0
        %4220 = vmatpush2.bf16.msra.mxu0 0
        %4221 = vmatprep.subr.bf16.mxu0 0
        %4222 = vmatpush2.bf16.msra.mxu0 0
        %4223 = vmatprep.subr.bf16.mxu0 0
        %4224 = vmatpush2.bf16.msra.mxu0 0
        %4225 = vmatprep.subr.bf16.mxu0 0
        %4226 = vmatpush2.bf16.msra.mxu0 0
        %4227 = vmatprep.subr.bf16.mxu0 0
        %4228 = vmatpush2.bf16.msra.mxu0 0
        %4229 = vmatprep.subr.bf16.mxu0 0
        %4230 = vmatpush2.bf16.msra.mxu0 0
        %4231 = vmatprep.subr.bf16.mxu0 0
        %4232 = vmatpush2.bf16.msra.mxu0 0
        %4233 = vmatprep.subr.bf16.mxu0 0
        %4234 = vmatpush2.bf16.msra.mxu0 0
        %4235 = vmatprep.mubr.bf16.mxu0 0
        %4236 = vmatmul.mubr.bf16.gmra.mxu0 %v4201
        %v4237 = vpop.f32.mrf.mxu0
        %v4238 = vadd.f32 %v4173, %v4237
        %v4239 = vpop.f32.mrf.mxu0
        %v4240 = vpop.f32.mrf.mxu0
        %v4241 = vpop.f32.mrf.mxu0
        %4242 = vdwg.mxu0
        %v4243 = vadd.f32 %v4104, %v4238
        %v4244 = vsel %vm978, %v4243, 0.0
        %4245 = vadd.xlane.f32.xlu0 %v4244
        %v4246 = vpop.xlane.xlu0 %4245
        %v4247 = vmul.f32 %v4246, %v2469
        %v4248 = vmul.f32 %v4243, %v4243
        %v4249 = vsel %vm978, %v4248, 0.0
        %4250 = vadd.xlane.f32.xlu0 %v4249
        %v4251 = vpop.xlane.xlu0 %4250
        %v4252 = vmul.f32 %v4251, %v2469
        %v4253 = vmul.f32 %v4247, %v4247
        %v4254 = vsub.f32 %v4252, %v4253
        %v4255 = vsub.f32 %v4243, %v4247
        %v4256 = vadd.f32 %v4254, 1e-05
        %v4257 = vrsqrt.pop %v4256
        %v4258 = vmul.f32 %v4255, %v4257
        %v4260 = vlaneseq
        %v4261 = vshrl.u32 %v4260, 7
        %v4262 = vsub.s32 0, %v4261
        %v4263 = vrot.slane %v928, %v4262
        %v4265 = vmul.f32 %v4258, %v4263
        %v4267 = vlaneseq
        %v4268 = vshrl.u32 %v4267, 7
        %v4269 = vsub.s32 0, %v4268
        %v4270 = vrot.slane %v929, %v4269
        %v4272 = vadd.f32 %v4265, %v4270
        %4273 = vst.msk [vmem:[%s798] sm:$0xff] %vm978, %v4272
        %s4274 = sand.u32 %s592, 1
        %s4275 = scalar_lea.sflag [#allocation3], %s4274
        %s4276 = sand.u32 %s592, 1
        %s4277 = smul.addr %s4276, 8
        %s4278 = scalar_lea.vmem [#allocation2], %s4277
        // Predicated region
        $region121: #{tpu_custom_call.1} parent=119 // pred_check
          %p4279 = pneg %p602
        $region122: #{tpu_custom_call.1} parent=119 // pred_check_branch
          %4281 = sbr.rel (%p4279) target = $region124
        $region123: #{tpu_custom_call.1} parent=119 // pred_region
          %s4283 = ssub.s32 128, 128
          %4284 = vsyncadd %s4275, %s4283
          %s4285 = smul.addr %s39, 128
          %s4286 = scalar_lea.hbm %s25, %s4285
          %s4288 = sshll.u32 %s4278, 4
          %s4289 = int_to_ptr.vmem [resolvable:$true] %s4288
          %4291 = dma.vmem_to_hbm [thread:$0]  %s4289, 128, %s4286, %s4275
        $region124: #{tpu_custom_call.1} parent=119 // pred_fallthru
          _
      $region120: #{tpu_custom_call.1} parent=5 // pred_fallthru
        _
      %p4292 = scmp.le.s32.totalorder 2, %s34
      // Predicated region
      $region125: #{tpu_custom_call.1} parent=5 // pred_check
        %p4293 = pneg %p4292
      $region126: #{tpu_custom_call.1} parent=5 // pred_check_branch
        %4295 = sbr.rel (%p4293) target = $region128
      $region127: #{tpu_custom_call.1} parent=5 // pred_region
        %s4296 = ssub.s32 %s34, 2
        // Predicated region
        $region129: #{tpu_custom_call.1} parent=127 // pred_check
          %p4297 = pneg %p608
        $region130: #{tpu_custom_call.1} parent=127 // pred_check_branch
          %4299 = sbr.rel (%p4297) target = $region132
        $region131: #{tpu_custom_call.1} parent=127 // pred_region
          %s4300 = sand.u32 %s593, 1
          %s4301 = scalar_lea.sflag [#allocation3], %s4300
          %s4302 = sand.u32 %s593, 1
          %s4303 = smul.addr %s4302, 8
          %s4304 = scalar_lea.vmem [#allocation2], %s4303
          %4305 = dma.done %s4301, 128
        $region132: #{tpu_custom_call.1} parent=127 // pred_fallthru
          _
      $region128: #{tpu_custom_call.1} parent=5 // pred_fallthru
        _
    $region6: #{tpu_custom_call.1} parent=1 // loop_footer
      %s38 = sadd.s32 1, %s34
    $region7: #{tpu_custom_call.1} parent=1 // loop_footer_branch
      %33 = sbr.rel target = $region3
    $region8: #{tpu_custom_call.1} parent=1 // loop_exit
      _
    %4306 = vsyncpa [#allocation3], 1
    %s4307 = scalar_lea.sflag [#allocation3], 1
    %4308 = vsyncpa %s4307, 1

</llo_original>
